<compile_context>
chip_gen: v7x
topology: tpu7x:2x2x1
jax: 0.10.0
libtpu: 0.0.40
codegen_flags: <defaults>
</compile_context>

<pallas_src>
import jax
import jax.numpy as jnp
from jax.experimental import pallas as pl
from jax.experimental.pallas import tpu as pltpu

IN_DIM = 28 * 28          # 784
IN_PAD = 896              # 7 * 128 : lane-dense pad of 784
HID = 400
LATENT = 20
LAT_PAD = 128             # latent dims padded to one vreg lane width
HALF = 64                 # lane offset of logvar inside the fused head


def _round_up(n, m):
    return -(-n // m) * m


def _vae_forward_kernel(
    x_ref, eps_ref,
    w1_ref, b1_ref,
    wh_ref, bh_ref,
    w3_ref, b3_ref,
    w4_ref, b4_ref,
    recon_ref, head_ref,
):
    x = x_ref[...]            # (TM, 896) bf16 (cols >= 784 are zero)
    eps = eps_ref[...]        # (TM, 128) f32  (lanes >= 20 are zero)

    # ---- encode: fc1 + relu (bf16 MXU inputs, f32 accumulate & elementwise) ----
    h1 = jnp.dot(x, w1_ref[...], preferred_element_type=jnp.float32) + b1_ref[...]
    h1 = jnp.maximum(h1, 0.0)

    # ---- fused fc21/fc22 head: mu in lanes [0,20), logvar in lanes [64,84) ----
    head = jnp.dot(h1.astype(jnp.bfloat16), wh_ref[...],
                   preferred_element_type=jnp.float32) + bh_ref[...]

    # Bring logvar down to lanes [0, 20): rotate the two 64-lane halves.
    logvar_lo = jnp.concatenate([head[:, HALF:], head[:, :HALF]], axis=1)

    # ---- reparameterize: z = mu + eps * exp(0.5 * logvar) ----
    # No lane mask: eps is zero outside [0, 20) and w3 rows >= 20 are zero, so
    # garbage lanes of z (e.g. logvar sitting in lanes [64, 84)) never reach
    # the decoder.
    z = head + eps * jnp.exp(0.5 * logvar_lo)            # (TM, 128) f32

    # ---- decode: fc3 + relu, fc4 + sigmoid ----
    h3 = jnp.dot(z.astype(jnp.bfloat16), w3_ref[...],
                 preferred_element_type=jnp.float32) + b3_ref[...]
    h3 = jnp.maximum(h3, 0.0)
    logits = jnp.dot(h3.astype(jnp.bfloat16), w4_ref[...],
                     preferred_element_type=jnp.float32) + b4_ref[...]

    # EUP-friendly sigmoid: sigmoid(x) = 0.5*tanh(0.5*x) + 0.5 (no VPU divide).
    recon_ref[...] = (0.5 * jnp.tanh(0.5 * logits) + 0.5).astype(recon_ref.dtype)
    # Single fused head output; wrapper slices mu=[:, :20], logvar=[:, 64:84].
    head_ref[...] = head


def init_params(key):
    """Deterministic synthetic params (PyTorch default Linear init).

    Weights stored pre-transposed as (in, out) f32; biases as (out,) f32.
    """
    ks = jax.random.split(key, 10)

    def lin(kw, kb, fan_in, fan_out):
        bound = 1.0 / jnp.sqrt(fan_in)
        w = jax.random.uniform(kw, (fan_in, fan_out), jnp.float32, -bound, bound)
        b = jax.random.uniform(kb, (fan_out,), jnp.float32, -bound, bound)
        return w, b

    w1, b1 = lin(ks[0], ks[1], IN_DIM, HID)
    w21, b21 = lin(ks[2], ks[3], HID, LATENT)
    w22, b22 = lin(ks[4], ks[5], HID, LATENT)
    w3, b3 = lin(ks[6], ks[7], LATENT, HID)
    w4, b4 = lin(ks[8], ks[9], HID, IN_DIM)
    return (w1, b1, w21, b21, w22, b22, w3, b3, w4, b4)


def pack_params(params):
    """Pack f32 params into the padded bf16 kernel layout (do once, reuse)."""
    w1, b1, w21, b21, w22, b22, w3, b3, w4, b4 = params

    w1p = jnp.zeros((IN_PAD, HID), jnp.bfloat16).at[:IN_DIM, :].set(
        w1.astype(jnp.bfloat16))
    b1p = b1.reshape(1, HID).astype(jnp.float32)

    # Fused mu/logvar head, padded to 128 lanes.
    whp = jnp.zeros((HID, LAT_PAD), jnp.bfloat16)
    whp = whp.at[:, :LATENT].set(w21.astype(jnp.bfloat16))
    whp = whp.at[:, HALF:HALF + LATENT].set(w22.astype(jnp.bfloat16))
    bhp = jnp.zeros((1, LAT_PAD), jnp.float32)
    bhp = bhp.at[0, :LATENT].set(b21)
    bhp = bhp.at[0, HALF:HALF + LATENT].set(b22)

    w3p = jnp.zeros((LAT_PAD, HID), jnp.bfloat16).at[:LATENT, :].set(
        w3.astype(jnp.bfloat16))
    b3p = b3.reshape(1, HID).astype(jnp.float32)

    w4p = jnp.zeros((HID, IN_PAD), jnp.bfloat16).at[:, :IN_DIM].set(
        w4.astype(jnp.bfloat16))
    b4p = jnp.zeros((1, IN_PAD), jnp.float32).at[0, :IN_DIM].set(b4)

    return (w1p, b1p, whp, bhp, w3p, b3p, w4p, b4p)


def vae_forward(x, eps, packed, *, tm=None):
    """x: (B,1,28,28) or (B,784); eps: (B,20) f32 ~ N(0,1); packed: pack_params(...).

    Returns (recon bf16 (B,784), mu f32 (B,20), logvar f32 (B,20)).
    """
    B = x.shape[0]
    x2d = jnp.asarray(x).reshape(B, IN_DIM).astype(jnp.bfloat16)
    eps = jnp.asarray(eps, jnp.float32)

    if tm is None:
        if B >= 1024:
            tm = 512          # v6e roofline amortization (~8 MiB working set)
        elif B >= 256:
            tm = 256
        else:
            # Keep >= 2 grid steps where possible so v7x's two TensorCores both
            # get a batch slice; bf16 x needs a sublane multiple of 16.
            tm = _round_up(max(-(-B // 2), 1), 16)
    nb = pl.cdiv(B, tm)
    b_pad = nb * tm

    x_p = jnp.zeros((b_pad, IN_PAD), jnp.bfloat16).at[:B, :IN_DIM].set(x2d)
    eps_p = jnp.zeros((b_pad, LAT_PAD), jnp.float32).at[:B, :LATENT].set(eps)

    w1p, b1p, whp, bhp, w3p, b3p, w4p, b4p = packed

    def batch_spec(width):
        return pl.BlockSpec((tm, width), lambda i: (i, 0))

    def fixed_spec(shape):
        # Same block every grid step -> weight stays VMEM-resident.
        return pl.BlockSpec(shape, lambda i: (0, 0))

    grid_spec = pltpu.PrefetchScalarGridSpec(
        num_scalar_prefetch=0,
        grid=(nb,),
        in_specs=[
            batch_spec(IN_PAD),            # x (bf16)
            batch_spec(LAT_PAD),           # eps (f32)
            fixed_spec((IN_PAD, HID)),     # w1 (bf16)
            fixed_spec((1, HID)),          # b1
            fixed_spec((HID, LAT_PAD)),    # fused fc21||fc22 weight (bf16)
            fixed_spec((1, LAT_PAD)),      # fused head bias
            fixed_spec((LAT_PAD, HID)),    # w3 (bf16, zero rows >= LATENT)
            fixed_spec((1, HID)),          # b3
            fixed_spec((HID, IN_PAD)),     # w4 (bf16)
            fixed_spec((1, IN_PAD)),       # b4
        ],
        out_specs=[
            batch_spec(IN_PAD),            # recon (bf16, padded)
            batch_spec(LAT_PAD),           # fused head slab (mu | logvar), f32
        ],
    )

    recon_p, head_p = pl.pallas_call(
        _vae_forward_kernel,
        out_shape=(
            jax.ShapeDtypeStruct((b_pad, IN_PAD), jnp.bfloat16),
            jax.ShapeDtypeStruct((b_pad, LAT_PAD), jnp.float32),
        ),
        grid_spec=grid_spec,
        compiler_params=pltpu.CompilerParams(
            dimension_semantics=("parallel",),
            # Only needed when tiles grow past the v5e 16 MiB default scope.
            vmem_limit_bytes=(48 * 1024 * 1024) if tm > 256 else None,
        ),
    )(x_p, eps_p, w1p, b1p, whp, bhp, w3p, b3p, w4p, b4p)

    recon = recon_p[:B, :IN_DIM]                       # bf16
    mu = head_p[:B, :LATENT]                           # f32
    logvar = head_p[:B, HALF:HALF + LATENT]            # f32
    return recon, mu, logvar


def vae_forward_ref(x, eps, params):
    """Pure-JAX f32 reference (matches the PyTorch module)."""
    B = x.shape[0]
    x2d = x.reshape(B, IN_DIM).astype(jnp.float32)
    w1, b1, w21, b21, w22, b22, w3, b3, w4, b4 = params
    h1 = jnp.maximum(x2d @ w1 + b1, 0.0)
    mu = h1 @ w21 + b21
    logvar = h1 @ w22 + b22
    std = jnp.exp(0.5 * logvar)
    z = mu + eps * std
    h3 = jnp.maximum(z @ w3 + b3, 0.0)
    recon = jax.nn.sigmoid(h3 @ w4 + b4)
    return recon, mu, logvar


if __name__ == "__main__":
    key = jax.random.PRNGKey(0)
    k_param, k_x, k_eps = jax.random.split(key, 3)

    B = 32
    # Input shaped like MNIST batches fed to the torch module (NCHW).
    x = jax.random.uniform(k_x, (B, 1, 28, 28), jnp.float32)
    # eps corresponds to torch.randn_like(std) in reparameterize; supplied as a
    # deterministic input so the kernel matches the reference exactly.
    eps = jax.random.normal(k_eps, (B, LATENT), jnp.float32)

    params = init_params(k_param)
    packed = pack_params(params)

    # Default tm at B=32 -> 16, giving a 2-step batch grid with VMEM-resident
    # weights (and both TensorCores busy on v7x).
    recon, mu, logvar = jax.block_until_ready(vae_forward(x, eps, packed))
    recon_r, mu_r, logvar_r = vae_forward_ref(x, eps, params)

    assert recon.shape == (B, IN_DIM)
    assert mu.shape == (B, LATENT) and logvar.shape == (B, LATENT)
    # bf16 weights/activations on the MXU + bf16 recon store => relaxed tolerance.
    assert jnp.allclose(mu, mu_r, atol=2e-2, rtol=2e-2)
    assert jnp.allclose(logvar, logvar_r, atol=2e-2, rtol=2e-2)
    assert jnp.allclose(recon.astype(jnp.float32), recon_r, atol=3e-2, rtol=3e-2)

    print("KERNEL_OK")
</pallas_src>

<mosaic_0001>
module attributes {stable_mosaic.version = 11 : i64} {
  func.func @_vae_forward_kernel(%arg0: i32, %arg1: memref<16x896xbf16, #tpu.memory_space<vmem>>, %arg2: memref<16x128xf32, #tpu.memory_space<vmem>>, %arg3: memref<896x400xbf16, #tpu.memory_space<vmem>>, %arg4: memref<1x400xf32, #tpu.memory_space<vmem>>, %arg5: memref<400x128xbf16, #tpu.memory_space<vmem>>, %arg6: memref<1x128xf32, #tpu.memory_space<vmem>>, %arg7: memref<128x400xbf16, #tpu.memory_space<vmem>>, %arg8: memref<1x400xf32, #tpu.memory_space<vmem>>, %arg9: memref<400x896xbf16, #tpu.memory_space<vmem>>, %arg10: memref<1x896xf32, #tpu.memory_space<vmem>>, %arg11: memref<16x896xbf16, #tpu.memory_space<vmem>>, %arg12: memref<16x128xf32, #tpu.memory_space<vmem>>) attributes {dimension_semantics = [#tpu.dimension_semantics<parallel>], iteration_bounds = array<i64: 2>, scalar_prefetch = 0 : i64, scratch_operands = 0 : i64, tpu.core_type = #tpu.core_type<tc>, window_params = [{transform_indices = @transform_0, window_bounds = array<i64: 16, 896>}, {transform_indices = @transform_1, window_bounds = array<i64: 16, 128>}, {pipeline_mode = #tpu.pipeline_mode<synchronous>, transform_indices = @transform_2, window_bounds = array<i64: 896, 400>}, {pipeline_mode = #tpu.pipeline_mode<synchronous>, transform_indices = @transform_3, window_bounds = array<i64: 1, 400>}, {pipeline_mode = #tpu.pipeline_mode<synchronous>, transform_indices = @transform_4, window_bounds = array<i64: 400, 128>}, {pipeline_mode = #tpu.pipeline_mode<synchronous>, transform_indices = @transform_5, window_bounds = array<i64: 1, 128>}, {pipeline_mode = #tpu.pipeline_mode<synchronous>, transform_indices = @transform_6, window_bounds = array<i64: 128, 400>}, {pipeline_mode = #tpu.pipeline_mode<synchronous>, transform_indices = @transform_7, window_bounds = array<i64: 1, 400>}, {pipeline_mode = #tpu.pipeline_mode<synchronous>, transform_indices = @transform_8, window_bounds = array<i64: 400, 896>}, {pipeline_mode = #tpu.pipeline_mode<synchronous>, transform_indices = @transform_9, window_bounds = array<i64: 1, 896>}, {transform_indices = @transform_10, window_bounds = array<i64: 16, 896>}, {transform_indices = @transform_11, window_bounds = array<i64: 16, 128>}]} {
    %c0 = arith.constant 0 : index
    %c0_0 = arith.constant 0 : index
    %0 = vector.load %arg1[%c0, %c0_0] : memref<16x896xbf16, #tpu.memory_space<vmem>>, vector<16x896xbf16>
    %c0_1 = arith.constant 0 : index
    %c0_2 = arith.constant 0 : index
    %1 = vector.load %arg2[%c0_1, %c0_2] : memref<16x128xf32, #tpu.memory_space<vmem>>, vector<16x128xf32>
    %c0_3 = arith.constant 0 : index
    %c0_4 = arith.constant 0 : index
    %2 = vector.load %arg3[%c0_3, %c0_4] : memref<896x400xbf16, #tpu.memory_space<vmem>>, vector<896x400xbf16>
    %cst = arith.constant dense<0.000000e+00> : vector<16x400xf32>
    %3 = tpu.matmul %0, %2, %cst {dimension_numbers = #tpu.dot_dimension_numbers<[1], [0], [0], [1], [0, 0, 1, 1], [], []>} : vector<16x896xbf16>, vector<896x400xbf16>, vector<16x400xf32> -> vector<16x400xf32>
    %c0_5 = arith.constant 0 : index
    %c0_6 = arith.constant 0 : index
    %4 = vector.load %arg4[%c0_5, %c0_6] : memref<1x400xf32, #tpu.memory_space<vmem>>, vector<1x400xf32>
    %5 = vector.broadcast %4 : vector<1x400xf32> to vector<16x400xf32>
    %6 = arith.addf %3, %5 : vector<16x400xf32>
    %cst_7 = arith.constant 0.000000e+00 : f32
    %7 = vector.broadcast %cst_7 : f32 to vector<16x400xf32>
    %8 = arith.maximumf %6, %7 : vector<16x400xf32>
    %9 = arith.truncf %8 : vector<16x400xf32> to vector<16x400xbf16>
    %c0_8 = arith.constant 0 : index
    %c0_9 = arith.constant 0 : index
    %10 = vector.load %arg5[%c0_8, %c0_9] : memref<400x128xbf16, #tpu.memory_space<vmem>>, vector<400x128xbf16>
    %cst_10 = arith.constant dense<0.000000e+00> : vector<16x128xf32>
    %11 = tpu.matmul %9, %10, %cst_10 {dimension_numbers = #tpu.dot_dimension_numbers<[1], [0], [0], [1], [0, 0, 1, 1], [], []>} : vector<16x400xbf16>, vector<400x128xbf16>, vector<16x128xf32> -> vector<16x128xf32>
    %c0_11 = arith.constant 0 : index
    %c0_12 = arith.constant 0 : index
    %12 = vector.load %arg6[%c0_11, %c0_12] : memref<1x128xf32, #tpu.memory_space<vmem>>, vector<1x128xf32>
    %13 = vector.broadcast %12 : vector<1x128xf32> to vector<16x128xf32>
    %14 = arith.addf %11, %13 : vector<16x128xf32>
    %15 = vector.extract_strided_slice %14 {offsets = [0, 64], sizes = [16, 64], strides = [1, 1]} : vector<16x128xf32> to vector<16x64xf32>
    %16 = vector.extract_strided_slice %14 {offsets = [0, 0], sizes = [16, 64], strides = [1, 1]} : vector<16x128xf32> to vector<16x64xf32>
    %17 = tpu.concatenate %15, %16 in 1 : vector<16x64xf32>, vector<16x64xf32> -> vector<16x128xf32>
    %cst_13 = arith.constant 5.000000e-01 : f32
    %18 = vector.broadcast %cst_13 : f32 to vector<16x128xf32>
    %19 = arith.mulf %18, %17 : vector<16x128xf32>
    %20 = math.exp %19 : vector<16x128xf32>
    %21 = arith.mulf %1, %20 : vector<16x128xf32>
    %22 = arith.addf %14, %21 : vector<16x128xf32>
    %23 = arith.truncf %22 : vector<16x128xf32> to vector<16x128xbf16>
    %c0_14 = arith.constant 0 : index
    %c0_15 = arith.constant 0 : index
    %24 = vector.load %arg7[%c0_14, %c0_15] : memref<128x400xbf16, #tpu.memory_space<vmem>>, vector<128x400xbf16>
    %cst_16 = arith.constant dense<0.000000e+00> : vector<16x400xf32>
    %25 = tpu.matmul %23, %24, %cst_16 {dimension_numbers = #tpu.dot_dimension_numbers<[1], [0], [0], [1], [0, 0, 1, 1], [], []>} : vector<16x128xbf16>, vector<128x400xbf16>, vector<16x400xf32> -> vector<16x400xf32>
    %c0_17 = arith.constant 0 : index
    %c0_18 = arith.constant 0 : index
    %26 = vector.load %arg8[%c0_17, %c0_18] : memref<1x400xf32, #tpu.memory_space<vmem>>, vector<1x400xf32>
    %27 = vector.broadcast %26 : vector<1x400xf32> to vector<16x400xf32>
    %28 = arith.addf %25, %27 : vector<16x400xf32>
    %cst_19 = arith.constant 0.000000e+00 : f32
    %29 = vector.broadcast %cst_19 : f32 to vector<16x400xf32>
    %30 = arith.maximumf %28, %29 : vector<16x400xf32>
    %31 = arith.truncf %30 : vector<16x400xf32> to vector<16x400xbf16>
    %c0_20 = arith.constant 0 : index
    %c0_21 = arith.constant 0 : index
    %32 = vector.load %arg9[%c0_20, %c0_21] : memref<400x896xbf16, #tpu.memory_space<vmem>>, vector<400x896xbf16>
    %cst_22 = arith.constant dense<0.000000e+00> : vector<16x896xf32>
    %33 = tpu.matmul %31, %32, %cst_22 {dimension_numbers = #tpu.dot_dimension_numbers<[1], [0], [0], [1], [0, 0, 1, 1], [], []>} : vector<16x400xbf16>, vector<400x896xbf16>, vector<16x896xf32> -> vector<16x896xf32>
    %c0_23 = arith.constant 0 : index
    %c0_24 = arith.constant 0 : index
    %34 = vector.load %arg10[%c0_23, %c0_24] : memref<1x896xf32, #tpu.memory_space<vmem>>, vector<1x896xf32>
    %35 = vector.broadcast %34 : vector<1x896xf32> to vector<16x896xf32>
    %36 = arith.addf %33, %35 : vector<16x896xf32>
    %cst_25 = arith.constant 5.000000e-01 : f32
    %37 = vector.broadcast %cst_25 : f32 to vector<16x896xf32>
    %38 = arith.mulf %37, %36 : vector<16x896xf32>
    %39 = math.tanh %38 : vector<16x896xf32>
    %cst_26 = arith.constant 5.000000e-01 : f32
    %40 = vector.broadcast %cst_26 : f32 to vector<16x896xf32>
    %41 = arith.mulf %40, %39 : vector<16x896xf32>
    %cst_27 = arith.constant 5.000000e-01 : f32
    %42 = vector.broadcast %cst_27 : f32 to vector<16x896xf32>
    %43 = arith.addf %41, %42 : vector<16x896xf32>
    %44 = arith.truncf %43 : vector<16x896xf32> to vector<16x896xbf16>
    %c0_28 = arith.constant 0 : index
    %c0_29 = arith.constant 0 : index
    %45 = vector.load %arg11[%c0_28, %c0_29] : memref<16x896xbf16, #tpu.memory_space<vmem>>, vector<16x896xbf16>
    tpu.vector_store %arg11[%c0_28, %c0_29], %44 {strides = array<i32>} : memref<16x896xbf16, #tpu.memory_space<vmem>>, vector<16x896xbf16>,
    %c0_30 = arith.constant 0 : index
    %c0_31 = arith.constant 0 : index
    %46 = vector.load %arg12[%c0_30, %c0_31] : memref<16x128xf32, #tpu.memory_space<vmem>>, vector<16x128xf32>
    tpu.vector_store %arg12[%c0_30, %c0_31], %14 {strides = array<i32>} : memref<16x128xf32, #tpu.memory_space<vmem>>, vector<16x128xf32>,
    return
  }
  func.func @transform_0(%arg0: i32) -> (i32, i32) {
    %c0_i32 = arith.constant 0 : i32
    %c0_i32_0 = arith.constant 0 : i32
    return %arg0, %c0_i32 : i32, i32
  }
  func.func @transform_1(%arg0: i32) -> (i32, i32) {
    %c0_i32 = arith.constant 0 : i32
    %c0_i32_0 = arith.constant 0 : i32
    return %arg0, %c0_i32 : i32, i32
  }
  func.func @transform_2(%arg0: i32) -> (i32, i32) {
    %c0_i32 = arith.constant 0 : i32
    %c0_i32_0 = arith.constant 0 : i32
    %c0_i32_1 = arith.constant 0 : i32
    return %c0_i32, %c0_i32_0 : i32, i32
  }
  func.func @transform_3(%arg0: i32) -> (i32, i32) {
    %c0_i32 = arith.constant 0 : i32
    %c0_i32_0 = arith.constant 0 : i32
    %c0_i32_1 = arith.constant 0 : i32
    return %c0_i32, %c0_i32_0 : i32, i32
  }
  func.func @transform_4(%arg0: i32) -> (i32, i32) {
    %c0_i32 = arith.constant 0 : i32
    %c0_i32_0 = arith.constant 0 : i32
    %c0_i32_1 = arith.constant 0 : i32
    return %c0_i32, %c0_i32_0 : i32, i32
  }
  func.func @transform_5(%arg0: i32) -> (i32, i32) {
    %c0_i32 = arith.constant 0 : i32
    %c0_i32_0 = arith.constant 0 : i32
    %c0_i32_1 = arith.constant 0 : i32
    return %c0_i32, %c0_i32_0 : i32, i32
  }
  func.func @transform_6(%arg0: i32) -> (i32, i32) {
    %c0_i32 = arith.constant 0 : i32
    %c0_i32_0 = arith.constant 0 : i32
    %c0_i32_1 = arith.constant 0 : i32
    return %c0_i32, %c0_i32_0 : i32, i32
  }
  func.func @transform_7(%arg0: i32) -> (i32, i32) {
    %c0_i32 = arith.constant 0 : i32
    %c0_i32_0 = arith.constant 0 : i32
    %c0_i32_1 = arith.constant 0 : i32
    return %c0_i32, %c0_i32_0 : i32, i32
  }
  func.func @transform_8(%arg0: i32) -> (i32, i32) {
    %c0_i32 = arith.constant 0 : i32
    %c0_i32_0 = arith.constant 0 : i32
    %c0_i32_1 = arith.constant 0 : i32
    return %c0_i32, %c0_i32_0 : i32, i32
  }
  func.func @transform_9(%arg0: i32) -> (i32, i32) {
    %c0_i32 = arith.constant 0 : i32
    %c0_i32_0 = arith.constant 0 : i32
    %c0_i32_1 = arith.constant 0 : i32
    return %c0_i32, %c0_i32_0 : i32, i32
  }
  func.func @transform_10(%arg0: i32) -> (i32, i32) {
    %c0_i32 = arith.constant 0 : i32
    %c0_i32_0 = arith.constant 0 : i32
    return %arg0, %c0_i32 : i32, i32
  }
  func.func @transform_11(%arg0: i32) -> (i32, i32) {
    %c0_i32 = arith.constant 0 : i32
    %c0_i32_0 = arith.constant 0 : i32
    return %arg0, %c0_i32 : i32, i32
  }
}

</mosaic_0001>

<llo_original>
// kernel: tpu_custom_call.1
$region0: #{tpu_custom_call.1}
  #allocation0 [shape = 'u32[]', space=smem, size = 0x4, offset = 0x4, fixed_abs, tag = 'smem constant byte address 0x4 - core index']
  #allocation1 [shape = 'u32[144,128]{1,0:T(1,128)}', space=vmem, size = 0x12000, scoped, tag = 'internal scratch']
  %s0 = inlined_call_operand.vmem [shape: bf16[32,896], index: 0, kind: input, shape index: {}]
  %s1 = inlined_call_operand.vmem [shape: f32[32,128], index: 1, kind: input, shape index: {}]
  %s2 = inlined_call_operand.vmem [shape: bf16[896,400], index: 2, kind: input, shape index: {}]
  %s3 = inlined_call_operand.vmem [shape: f32[1,400], index: 3, kind: input, shape index: {}]
  %s4 = inlined_call_operand.vmem [shape: bf16[400,128], index: 4, kind: input, shape index: {}]
  %s5 = inlined_call_operand.vmem [shape: f32[1,128], index: 5, kind: input, shape index: {}]
  %s6 = inlined_call_operand.vmem [shape: bf16[128,400], index: 6, kind: input, shape index: {}]
  %s7 = inlined_call_operand.vmem [shape: f32[1,400], index: 7, kind: input, shape index: {}]
  %s8 = inlined_call_operand.vmem [shape: bf16[400,896], index: 8, kind: input, shape index: {}]
  %s9 = inlined_call_operand.vmem [shape: f32[1,896], index: 9, kind: input, shape index: {}]
  %s10 = inlined_call_operand.hbm [shape: bf16[32,896], index: 10, kind: output, shape index: {0}]
  %s11 = inlined_call_operand.hbm [shape: f32[32,128], index: 11, kind: output, shape index: {1}]
  %12 = xla_tuple %s10, %s11
  %s13 = sld [smem:[#allocation0]]
  $region81: #{tpu_custom_call.1} parent=0
    _
  %s15 = ssub.s32 1, %s13
  %s16 = scalar_select 0, %s15, %s13
  $region1: #{tpu_custom_call.1} parent=0
    #allocation2 [shape = 'u8[57344]{0}', space=vmem, size = 0xe000, scoped, tag = 'output window, operand 0']
    #allocation3 [shape = 's32[2]{0}', space=sflag, size = 0x8, scoped, tag = 'scoped memory for tpu_custom_call.1']
    #allocation4 [shape = 'u8[16384]{0}', space=vmem, size = 0x4000, scoped, tag = 'output window, operand 1']
    #allocation5 [shape = 's32[2]{0}', space=sflag, size = 0x8, scoped, tag = 'scoped memory for tpu_custom_call.1']
    %17 = vsyncpa [#allocation3], 0
    %s18 = scalar_lea.sflag [#allocation3], 1
    %19 = vsyncpa %s18, 0
    %20 = vsyncpa [#allocation5], 0
    %s21 = scalar_lea.sflag [#allocation5], 1
    %22 = vsyncpa %s21, 0
    loop: start=0, step=1, limit=4
    $region2: #{tpu_custom_call.1} parent=1 // loop_pre_header
      _
    $region3: #{tpu_custom_call.1} parent=1 // loop_header
      %s24 = sphi 0, %s28
      %p25 = scmp.ge.s32.totalorder %s24, 4
      %s34 = sphi 0, %s36
      %s37 = sphi 0, %s34
      %s38 = sphi 0, %s37
      %s54 = sphi 0, %s38
      %s60 = sphi 0, %s62
      %s63 = sphi 0, %s60
      %s64 = sphi 0, %s63
      %s80 = sphi 0, %s64
      %s84 = sphi 0, %s84
      %s86 = sphi 0, %s84
      %s87 = sphi 0, %s86
      %s101 = sphi 0, %s87
      %s105 = sphi 0, %s105
      %s107 = sphi 0, %s105
      %s108 = sphi 0, %s107
      %s122 = sphi 0, %s108
      %s126 = sphi 0, %s126
      %s128 = sphi 0, %s126
      %s129 = sphi 0, %s128
      %s143 = sphi 0, %s129
      %s147 = sphi 0, %s147
      %s149 = sphi 0, %s147
      %s150 = sphi 0, %s149
      %s164 = sphi 0, %s150
      %s168 = sphi 0, %s168
      %s170 = sphi 0, %s168
      %s171 = sphi 0, %s170
      %s185 = sphi 0, %s171
      %s189 = sphi 0, %s189
      %s191 = sphi 0, %s189
      %s192 = sphi 0, %s191
      %s206 = sphi 0, %s192
      %s210 = sphi 0, %s210
      %s212 = sphi 0, %s210
      %s213 = sphi 0, %s212
      %s227 = sphi 0, %s213
      %s231 = sphi 0, %s231
      %s233 = sphi 0, %s231
      %s234 = sphi 0, %s233
      %s248 = sphi 0, %s234
      %s254 = sphi 0, %s256
      %s257 = sphi 0, %s254
      %s258 = sphi 0, %s257
      %s274 = sphi 0, %s258
      %s280 = sphi 0, %s282
      %s283 = sphi 0, %s280
      %s284 = sphi 0, %s283
      %s300 = sphi 0, %s284
    $region4: #{tpu_custom_call.1} parent=1 // loop_header_branch
      %27 = sbr.rel (%p25) target = $region8
    $region5: #{tpu_custom_call.1} parent=1 // loop_body
      %s29 = ssub.s32 %s24, 1
      %s30 = ssub.s32 %s24, 2
      %s31 = sadd.s32 %s24, 1
      %s32 = ssub.s32 %s24, %s31
      %p33 = scmp.eq.s32.totalorder %s32, 0
      %s35 = sadd.s32 %s34, 1
      %s36 = scalar_select %p33, %s34, %s35
      %p39 = pneg %p33
      %p40 = scmp.eq.s32.totalorder %s24, 1
      %p41 = por %p39, %p40
      %p42 = scmp.ne.s32.totalorder %s34, %s37
      %p43 = scmp.eq.s32.totalorder %s24, 0
      %p44 = por %p42, %p43
      %p45 = scmp.ne.s32.totalorder %s34, %s37
      %p46 = scmp.eq.s32.totalorder %s29, 1
      %p47 = por %p45, %p46
      %p48 = scmp.ne.s32.totalorder %s37, %s38
      %p49 = scmp.eq.s32.totalorder %s29, 0
      %p50 = por %p48, %p49
      %p51 = scmp.ne.s32.totalorder %s37, %s38
      %p52 = scmp.eq.s32.totalorder %s30, 1
      %p53 = por %p51, %p52
      %p55 = scmp.ne.s32.totalorder %s38, %s54
      %p56 = scmp.eq.s32.totalorder %s30, 0
      %p57 = por %p55, %p56
      %s58 = ssub.s32 %s24, %s31
      %p59 = scmp.eq.s32.totalorder %s58, 0
      %s61 = sadd.s32 %s60, 1
      %s62 = scalar_select %p59, %s60, %s61
      %p65 = pneg %p59
      %p66 = scmp.eq.s32.totalorder %s24, 1
      %p67 = por %p65, %p66
      %p68 = scmp.ne.s32.totalorder %s60, %s63
      %p69 = scmp.eq.s32.totalorder %s24, 0
      %p70 = por %p68, %p69
      %p71 = scmp.ne.s32.totalorder %s60, %s63
      %p72 = scmp.eq.s32.totalorder %s29, 1
      %p73 = por %p71, %p72
      %p74 = scmp.ne.s32.totalorder %s63, %s64
      %p75 = scmp.eq.s32.totalorder %s29, 0
      %p76 = por %p74, %p75
      %p77 = scmp.ne.s32.totalorder %s63, %s64
      %p78 = scmp.eq.s32.totalorder %s30, 1
      %p79 = por %p77, %p78
      %p81 = scmp.ne.s32.totalorder %s64, %s80
      %p82 = scmp.eq.s32.totalorder %s30, 0
      %p83 = por %p81, %p82
      %s85 = sadd.s32 %s84, 1
      %p88 = scmp.eq.s32.totalorder %s24, 1
      %p89 = scmp.ne.s32.totalorder %s84, %s86
      %p90 = scmp.eq.s32.totalorder %s24, 0
      %p91 = por %p89, %p90
      %p92 = scmp.ne.s32.totalorder %s84, %s86
      %p93 = scmp.eq.s32.totalorder %s29, 1
      %p94 = por %p92, %p93
      %p95 = scmp.ne.s32.totalorder %s86, %s87
      %p96 = scmp.eq.s32.totalorder %s29, 0
      %p97 = por %p95, %p96
      %p98 = scmp.ne.s32.totalorder %s86, %s87
      %p99 = scmp.eq.s32.totalorder %s30, 1
      %p100 = por %p98, %p99
      %p102 = scmp.ne.s32.totalorder %s87, %s101
      %p103 = scmp.eq.s32.totalorder %s30, 0
      %p104 = por %p102, %p103
      %s106 = sadd.s32 %s105, 1
      %p109 = scmp.eq.s32.totalorder %s24, 1
      %p110 = scmp.ne.s32.totalorder %s105, %s107
      %p111 = scmp.eq.s32.totalorder %s24, 0
      %p112 = por %p110, %p111
      %p113 = scmp.ne.s32.totalorder %s105, %s107
      %p114 = scmp.eq.s32.totalorder %s29, 1
      %p115 = por %p113, %p114
      %p116 = scmp.ne.s32.totalorder %s107, %s108
      %p117 = scmp.eq.s32.totalorder %s29, 0
      %p118 = por %p116, %p117
      %p119 = scmp.ne.s32.totalorder %s107, %s108
      %p120 = scmp.eq.s32.totalorder %s30, 1
      %p121 = por %p119, %p120
      %p123 = scmp.ne.s32.totalorder %s108, %s122
      %p124 = scmp.eq.s32.totalorder %s30, 0
      %p125 = por %p123, %p124
      %s127 = sadd.s32 %s126, 1
      %p130 = scmp.eq.s32.totalorder %s24, 1
      %p131 = scmp.ne.s32.totalorder %s126, %s128
      %p132 = scmp.eq.s32.totalorder %s24, 0
      %p133 = por %p131, %p132
      %p134 = scmp.ne.s32.totalorder %s126, %s128
      %p135 = scmp.eq.s32.totalorder %s29, 1
      %p136 = por %p134, %p135
      %p137 = scmp.ne.s32.totalorder %s128, %s129
      %p138 = scmp.eq.s32.totalorder %s29, 0
      %p139 = por %p137, %p138
      %p140 = scmp.ne.s32.totalorder %s128, %s129
      %p141 = scmp.eq.s32.totalorder %s30, 1
      %p142 = por %p140, %p141
      %p144 = scmp.ne.s32.totalorder %s129, %s143
      %p145 = scmp.eq.s32.totalorder %s30, 0
      %p146 = por %p144, %p145
      %s148 = sadd.s32 %s147, 1
      %p151 = scmp.eq.s32.totalorder %s24, 1
      %p152 = scmp.ne.s32.totalorder %s147, %s149
      %p153 = scmp.eq.s32.totalorder %s24, 0
      %p154 = por %p152, %p153
      %p155 = scmp.ne.s32.totalorder %s147, %s149
      %p156 = scmp.eq.s32.totalorder %s29, 1
      %p157 = por %p155, %p156
      %p158 = scmp.ne.s32.totalorder %s149, %s150
      %p159 = scmp.eq.s32.totalorder %s29, 0
      %p160 = por %p158, %p159
      %p161 = scmp.ne.s32.totalorder %s149, %s150
      %p162 = scmp.eq.s32.totalorder %s30, 1
      %p163 = por %p161, %p162
      %p165 = scmp.ne.s32.totalorder %s150, %s164
      %p166 = scmp.eq.s32.totalorder %s30, 0
      %p167 = por %p165, %p166
      %s169 = sadd.s32 %s168, 1
      %p172 = scmp.eq.s32.totalorder %s24, 1
      %p173 = scmp.ne.s32.totalorder %s168, %s170
      %p174 = scmp.eq.s32.totalorder %s24, 0
      %p175 = por %p173, %p174
      %p176 = scmp.ne.s32.totalorder %s168, %s170
      %p177 = scmp.eq.s32.totalorder %s29, 1
      %p178 = por %p176, %p177
      %p179 = scmp.ne.s32.totalorder %s170, %s171
      %p180 = scmp.eq.s32.totalorder %s29, 0
      %p181 = por %p179, %p180
      %p182 = scmp.ne.s32.totalorder %s170, %s171
      %p183 = scmp.eq.s32.totalorder %s30, 1
      %p184 = por %p182, %p183
      %p186 = scmp.ne.s32.totalorder %s171, %s185
      %p187 = scmp.eq.s32.totalorder %s30, 0
      %p188 = por %p186, %p187
      %s190 = sadd.s32 %s189, 1
      %p193 = scmp.eq.s32.totalorder %s24, 1
      %p194 = scmp.ne.s32.totalorder %s189, %s191
      %p195 = scmp.eq.s32.totalorder %s24, 0
      %p196 = por %p194, %p195
      %p197 = scmp.ne.s32.totalorder %s189, %s191
      %p198 = scmp.eq.s32.totalorder %s29, 1
      %p199 = por %p197, %p198
      %p200 = scmp.ne.s32.totalorder %s191, %s192
      %p201 = scmp.eq.s32.totalorder %s29, 0
      %p202 = por %p200, %p201
      %p203 = scmp.ne.s32.totalorder %s191, %s192
      %p204 = scmp.eq.s32.totalorder %s30, 1
      %p205 = por %p203, %p204
      %p207 = scmp.ne.s32.totalorder %s192, %s206
      %p208 = scmp.eq.s32.totalorder %s30, 0
      %p209 = por %p207, %p208
      %s211 = sadd.s32 %s210, 1
      %p214 = scmp.eq.s32.totalorder %s24, 1
      %p215 = scmp.ne.s32.totalorder %s210, %s212
      %p216 = scmp.eq.s32.totalorder %s24, 0
      %p217 = por %p215, %p216
      %p218 = scmp.ne.s32.totalorder %s210, %s212
      %p219 = scmp.eq.s32.totalorder %s29, 1
      %p220 = por %p218, %p219
      %p221 = scmp.ne.s32.totalorder %s212, %s213
      %p222 = scmp.eq.s32.totalorder %s29, 0
      %p223 = por %p221, %p222
      %p224 = scmp.ne.s32.totalorder %s212, %s213
      %p225 = scmp.eq.s32.totalorder %s30, 1
      %p226 = por %p224, %p225
      %p228 = scmp.ne.s32.totalorder %s213, %s227
      %p229 = scmp.eq.s32.totalorder %s30, 0
      %p230 = por %p228, %p229
      %s232 = sadd.s32 %s231, 1
      %p235 = scmp.eq.s32.totalorder %s24, 1
      %p236 = scmp.ne.s32.totalorder %s231, %s233
      %p237 = scmp.eq.s32.totalorder %s24, 0
      %p238 = por %p236, %p237
      %p239 = scmp.ne.s32.totalorder %s231, %s233
      %p240 = scmp.eq.s32.totalorder %s29, 1
      %p241 = por %p239, %p240
      %p242 = scmp.ne.s32.totalorder %s233, %s234
      %p243 = scmp.eq.s32.totalorder %s29, 0
      %p244 = por %p242, %p243
      %p245 = scmp.ne.s32.totalorder %s233, %s234
      %p246 = scmp.eq.s32.totalorder %s30, 1
      %p247 = por %p245, %p246
      %p249 = scmp.ne.s32.totalorder %s234, %s248
      %p250 = scmp.eq.s32.totalorder %s30, 0
      %p251 = por %p249, %p250
      %s252 = ssub.s32 %s24, %s31
      %p253 = scmp.eq.s32.totalorder %s252, 0
      %s255 = sadd.s32 %s254, 1
      %s256 = scalar_select %p253, %s254, %s255
      %p259 = pneg %p253
      %p260 = scmp.eq.s32.totalorder %s24, 1
      %p261 = por %p259, %p260
      %p262 = scmp.ne.s32.totalorder %s254, %s257
      %p263 = scmp.eq.s32.totalorder %s24, 0
      %p264 = por %p262, %p263
      %p265 = scmp.ne.s32.totalorder %s254, %s257
      %p266 = scmp.eq.s32.totalorder %s29, 1
      %p267 = por %p265, %p266
      %p268 = scmp.ne.s32.totalorder %s257, %s258
      %p269 = scmp.eq.s32.totalorder %s29, 0
      %p270 = por %p268, %p269
      %p271 = scmp.ne.s32.totalorder %s257, %s258
      %p272 = scmp.eq.s32.totalorder %s30, 1
      %p273 = por %p271, %p272
      %p275 = scmp.ne.s32.totalorder %s258, %s274
      %p276 = scmp.eq.s32.totalorder %s30, 0
      %p277 = por %p275, %p276
      %s278 = ssub.s32 %s24, %s31
      %p279 = scmp.eq.s32.totalorder %s278, 0
      %s281 = sadd.s32 %s280, 1
      %s282 = scalar_select %p279, %s280, %s281
      %p285 = pneg %p279
      %p286 = scmp.eq.s32.totalorder %s24, 1
      %p287 = por %p285, %p286
      %p288 = scmp.ne.s32.totalorder %s280, %s283
      %p289 = scmp.eq.s32.totalorder %s24, 0
      %p290 = por %p288, %p289
      %p291 = scmp.ne.s32.totalorder %s280, %s283
      %p292 = scmp.eq.s32.totalorder %s29, 1
      %p293 = por %p291, %p292
      %p294 = scmp.ne.s32.totalorder %s283, %s284
      %p295 = scmp.eq.s32.totalorder %s29, 0
      %p296 = por %p294, %p295
      %p297 = scmp.ne.s32.totalorder %s283, %s284
      %p298 = scmp.eq.s32.totalorder %s30, 1
      %p299 = por %p297, %p298
      %p301 = scmp.ne.s32.totalorder %s284, %s300
      %p302 = scmp.eq.s32.totalorder %s30, 0
      %p303 = por %p301, %p302
      %p304 = scmp.le.s32.totalorder 1, %s24
      %p305 = scmp.lt.s32.totalorder %s24, 3
      %p306 = pnand %p304, %p305
      %p307 = pneg %p306
      // Predicated region
      $region9: #{tpu_custom_call.1} parent=5 // pred_check
        _
      $region10: #{tpu_custom_call.1} parent=5 // pred_check_branch
        %309 = sbr.rel (%p306) target = $region12
      $region11: #{tpu_custom_call.1} parent=5 // pred_region
        %s310 = ssub.s32 %s24, 1
        // Predicated region
        $region13: #{tpu_custom_call.1} parent=11 // pred_check
          %p311 = pneg %p97
        $region14: #{tpu_custom_call.1} parent=11 // pred_check_branch
          %313 = sbr.rel (%p311) target = $region16
        $region15: #{tpu_custom_call.1} parent=11 // pred_region
          _
        $region16: #{tpu_custom_call.1} parent=11 // pred_fallthru
          _
        // Predicated region
        $region17: #{tpu_custom_call.1} parent=11 // pred_check
          %p314 = pneg %p118
        $region18: #{tpu_custom_call.1} parent=11 // pred_check_branch
          %316 = sbr.rel (%p314) target = $region20
        $region19: #{tpu_custom_call.1} parent=11 // pred_region
          _
        $region20: #{tpu_custom_call.1} parent=11 // pred_fallthru
          _
        // Predicated region
        $region21: #{tpu_custom_call.1} parent=11 // pred_check
          %p317 = pneg %p139
        $region22: #{tpu_custom_call.1} parent=11 // pred_check_branch
          %319 = sbr.rel (%p317) target = $region24
        $region23: #{tpu_custom_call.1} parent=11 // pred_region
          _
        $region24: #{tpu_custom_call.1} parent=11 // pred_fallthru
          _
        // Predicated region
        $region25: #{tpu_custom_call.1} parent=11 // pred_check
          %p320 = pneg %p160
        $region26: #{tpu_custom_call.1} parent=11 // pred_check_branch
          %322 = sbr.rel (%p320) target = $region28
        $region27: #{tpu_custom_call.1} parent=11 // pred_region
          _
        $region28: #{tpu_custom_call.1} parent=11 // pred_fallthru
          _
        // Predicated region
        $region29: #{tpu_custom_call.1} parent=11 // pred_check
          %p323 = pneg %p181
        $region30: #{tpu_custom_call.1} parent=11 // pred_check_branch
          %325 = sbr.rel (%p323) target = $region32
        $region31: #{tpu_custom_call.1} parent=11 // pred_region
          _
        $region32: #{tpu_custom_call.1} parent=11 // pred_fallthru
          _
        // Predicated region
        $region33: #{tpu_custom_call.1} parent=11 // pred_check
          %p326 = pneg %p202
        $region34: #{tpu_custom_call.1} parent=11 // pred_check_branch
          %328 = sbr.rel (%p326) target = $region36
        $region35: #{tpu_custom_call.1} parent=11 // pred_region
          _
        $region36: #{tpu_custom_call.1} parent=11 // pred_fallthru
          _
        // Predicated region
        $region37: #{tpu_custom_call.1} parent=11 // pred_check
          %p329 = pneg %p223
        $region38: #{tpu_custom_call.1} parent=11 // pred_check_branch
          %331 = sbr.rel (%p329) target = $region40
        $region39: #{tpu_custom_call.1} parent=11 // pred_region
          _
        $region40: #{tpu_custom_call.1} parent=11 // pred_fallthru
          _
        // Predicated region
        $region41: #{tpu_custom_call.1} parent=11 // pred_check
          %p332 = pneg %p244
        $region42: #{tpu_custom_call.1} parent=11 // pred_check_branch
          %334 = sbr.rel (%p332) target = $region44
        $region43: #{tpu_custom_call.1} parent=11 // pred_region
          _
        $region44: #{tpu_custom_call.1} parent=11 // pred_fallthru
          _
      $region12: #{tpu_custom_call.1} parent=5 // pred_fallthru
        _
      %p335 = scmp.lt.s32.totalorder %s24, 2
      // Predicated region
      $region45: #{tpu_custom_call.1} parent=5 // pred_check
        %p336 = pneg %p335
      $region46: #{tpu_custom_call.1} parent=5 // pred_check_branch
        %338 = sbr.rel (%p336) target = $region48
      $region47: #{tpu_custom_call.1} parent=5 // pred_region
        // Predicated region
        $region49: #{tpu_custom_call.1} parent=47 // pred_check
          %p339 = pneg %p44
        $region50: #{tpu_custom_call.1} parent=47 // pred_check_branch
          %341 = sbr.rel (%p339) target = $region52
        $region51: #{tpu_custom_call.1} parent=47 // pred_region
          %s342 = smul.u32 2, %s24
          %p343 = scmp.lt.s32.totalorder %s342, 3
          %s344 = scalar_select %p343, %s342, 3
          %s345 = smul.addr %s344, 7
          %s346 = smul.addr %s345, 4
          %s347 = scalar_lea.vmem %s0, %s346
          %s348 = smul.u32 2, %s24
        $region52: #{tpu_custom_call.1} parent=47 // pred_fallthru
          _
        // Predicated region
        $region53: #{tpu_custom_call.1} parent=47 // pred_check
          %p349 = pneg %p70
        $region54: #{tpu_custom_call.1} parent=47 // pred_check_branch
          %351 = sbr.rel (%p349) target = $region56
        $region55: #{tpu_custom_call.1} parent=47 // pred_region
          %s352 = smul.u32 2, %s24
          %p353 = scmp.lt.s32.totalorder %s352, 3
          %s354 = scalar_select %p353, %s352, 3
          %s355 = smul.addr %s354, 8
          %s356 = scalar_lea.vmem %s1, %s355
          %s357 = smul.u32 2, %s24
        $region56: #{tpu_custom_call.1} parent=47 // pred_fallthru
          _
      $region48: #{tpu_custom_call.1} parent=5 // pred_fallthru
        _
      %p358 = scmp.le.s32.totalorder 1, %s24
      %p359 = scmp.lt.s32.totalorder %s24, 3
      %p360 = pnand %p358, %p359
      %p361 = pneg %p360
      // Predicated region
      $region57: #{tpu_custom_call.1} parent=5 // pred_check
        _
      $region58: #{tpu_custom_call.1} parent=5 // pred_check_branch
        %363 = sbr.rel (%p360) target = $region60
      $region59: #{tpu_custom_call.1} parent=5 // pred_region
        %s364 = ssub.s32 %s24, 1
        %s365 = smul.u32 2, %s29
        %p366 = scmp.lt.s32.totalorder %s365, 3
        %s367 = scalar_select %p366, %s365, 3
        %s368 = smul.addr %s367, 7
        %s369 = smul.addr %s368, 4
        %s370 = scalar_lea.vmem %s0, %s369
        %p371 = pneg %p50
        %p372 = pneg %p47
        %s373 = smul.u32 2, %s29
        %p374 = scmp.lt.s32.totalorder %s373, 3
        %s375 = scalar_select %p374, %s373, 3
        %s376 = smul.addr %s375, 8
        %s377 = scalar_lea.vmem %s1, %s376
        %p378 = pneg %p76
        %p379 = pneg %p73
        %p380 = pneg %p97
        %p381 = pneg %p94
        %p382 = pneg %p118
        %p383 = pneg %p115
        %p384 = pneg %p139
        %p385 = pneg %p136
        %p386 = pneg %p160
        %p387 = pneg %p157
        %p388 = pneg %p181
        %p389 = pneg %p178
        %p390 = pneg %p202
        %p391 = pneg %p199
        %p392 = pneg %p223
        %p393 = pneg %p220
        %p394 = pneg %p244
        %p395 = pneg %p241
        %p396 = pneg %p270
        %p397 = pneg %p267
        %s398 = sand.u32 %s257, 1
        %s399 = scalar_lea.sflag [#allocation3], %s398
        %s400 = sand.u32 %s257, 1
        %s401 = smul.addr %s400, 56
        %s402 = scalar_lea.vmem [#allocation2], %s401
        %p403 = pneg %p296
        %p404 = pneg %p293
        %s405 = sand.u32 %s283, 1
        %s406 = scalar_lea.sflag [#allocation5], %s405
        %s407 = sand.u32 %s283, 1
        %s408 = smul.addr %s407, 16
        %s409 = scalar_lea.vmem [#allocation4], %s408
        %s410 = smul.u32 2, %s29
        %p411 = scmp.lt.s32.totalorder %s410, 3
        %s412 = scalar_select %p411, %s410, 3
        %s413 = smul.addr %s412, 7
        %s414 = smul.addr %s413, 4
        %s415 = scalar_lea.vmem %s0, %s414
        %s416 = smul.u32 2, %s29
        %s417 = smul.u32 2, %s29
        %p418 = scmp.lt.s32.totalorder %s417, 3
        %s419 = scalar_select %p418, %s417, 3
        %s420 = smul.addr %s419, 8
        %s421 = scalar_lea.vmem %s1, %s420
        %s422 = smul.u32 2, %s29
        %s423 = smul.u32 2, %s29
        %s424 = smul.u32 2, %s29
        %v426 = vld [vmem:[%s415] sm:$0xff]
        %v427 = vld [vmem:[%s415 + $0x8] sm:$0xff]
        %v428 = vld [vmem:[%s415 + $0x10] sm:$0xff]
        %v429 = vld [vmem:[%s415 + $0x18] sm:$0xf]
        %v430 = vld [vmem:[%s415 + $0x1c] sm:$0xff]
        %v431 = vld [vmem:[%s415 + $0x24] sm:$0xff]
        %v432 = vld [vmem:[%s415 + $0x2c] sm:$0xff]
        %v433 = vld [vmem:[%s415 + $0x34] sm:$0xf]
        %v434 = vld [vmem:[%s421] sm:$0xff]
        %v435 = vld [vmem:[%s421 + $0x8] sm:$0xff]
        %v436 = vld [vmem:[%s2] sm:$0xff]
        %v437 = vld [vmem:[%s2 + $0x8] sm:$0xff]
        %v438 = vld [vmem:[%s2 + $0x10] sm:$0xff]
        %v439 = vld [vmem:[%s2 + $0x18] sm:$0xff]
        %v440 = vld [vmem:[%s2 + $0x20] sm:$0xff]
        %v441 = vld [vmem:[%s2 + $0x28] sm:$0xff]
        %v442 = vld [vmem:[%s2 + $0x30] sm:$0xff]
        %v443 = vld [vmem:[%s2 + $0x38] sm:$0xff]
        %v444 = vld [vmem:[%s2 + $0x40] sm:$0xff]
        %v445 = vld [vmem:[%s2 + $0x48] sm:$0xff]
        %v446 = vld [vmem:[%s2 + $0x50] sm:$0xff]
        %v447 = vld [vmem:[%s2 + $0x58] sm:$0xff]
        %v448 = vld [vmem:[%s2 + $0x60] sm:$0xff]
        %v449 = vld [vmem:[%s2 + $0x68] sm:$0xff]
        %v450 = vld [vmem:[%s2 + $0x70] sm:$0xff]
        %v451 = vld [vmem:[%s2 + $0x78] sm:$0xff]
        %v452 = vld [vmem:[%s2 + $0x80] sm:$0xff]
        %v453 = vld [vmem:[%s2 + $0x88] sm:$0xff]
        %v454 = vld [vmem:[%s2 + $0x90] sm:$0xff]
        %v455 = vld [vmem:[%s2 + $0x98] sm:$0xff]
        %v456 = vld [vmem:[%s2 + $0xa0] sm:$0xff]
        %v457 = vld [vmem:[%s2 + $0xa8] sm:$0xff]
        %v458 = vld [vmem:[%s2 + $0xb0] sm:$0xff]
        %v459 = vld [vmem:[%s2 + $0xb8] sm:$0xff]
        %v460 = vld [vmem:[%s2 + $0xc0] sm:$0xff]
        %v461 = vld [vmem:[%s2 + $0xc8] sm:$0xff]
        %v462 = vld [vmem:[%s2 + $0xd0] sm:$0xff]
        %v463 = vld [vmem:[%s2 + $0xd8] sm:$0xff]
        %v464 = vld [vmem:[%s2 + $0xe0] sm:$0xff]
        %v465 = vld [vmem:[%s2 + $0xe8] sm:$0xff]
        %v466 = vld [vmem:[%s2 + $0xf0] sm:$0xff]
        %v467 = vld [vmem:[%s2 + $0xf8] sm:$0xff]
        %v468 = vld [vmem:[%s2 + $0x100] sm:$0xff]
        %v469 = vld [vmem:[%s2 + $0x108] sm:$0xff]
        %v470 = vld [vmem:[%s2 + $0x110] sm:$0xff]
        %v471 = vld [vmem:[%s2 + $0x118] sm:$0xff]
        %v472 = vld [vmem:[%s2 + $0x120] sm:$0xff]
        %v473 = vld [vmem:[%s2 + $0x128] sm:$0xff]
        %v474 = vld [vmem:[%s2 + $0x130] sm:$0xff]
        %v475 = vld [vmem:[%s2 + $0x138] sm:$0xff]
        %v476 = vld [vmem:[%s2 + $0x140] sm:$0xff]
        %v477 = vld [vmem:[%s2 + $0x148] sm:$0xff]
        %v478 = vld [vmem:[%s2 + $0x150] sm:$0xff]
        %v479 = vld [vmem:[%s2 + $0x158] sm:$0xff]
        %v480 = vld [vmem:[%s2 + $0x160] sm:$0xff]
        %v481 = vld [vmem:[%s2 + $0x168] sm:$0xff]
        %v482 = vld [vmem:[%s2 + $0x170] sm:$0xff]
        %v483 = vld [vmem:[%s2 + $0x178] sm:$0xff]
        %v484 = vld [vmem:[%s2 + $0x180] sm:$0xff]
        %v485 = vld [vmem:[%s2 + $0x188] sm:$0xff]
        %v486 = vld [vmem:[%s2 + $0x190] sm:$0xff]
        %v487 = vld [vmem:[%s2 + $0x198] sm:$0xff]
        %v488 = vld [vmem:[%s2 + $0x1a0] sm:$0xff]
        %v489 = vld [vmem:[%s2 + $0x1a8] sm:$0xff]
        %v490 = vld [vmem:[%s2 + $0x1b0] sm:$0xff]
        %v491 = vld [vmem:[%s2 + $0x1b8] sm:$0xff]
        %v492 = vld [vmem:[%s2 + $0x1c0] sm:$0xff]
        %v493 = vld [vmem:[%s2 + $0x1c8] sm:$0xff]
        %v494 = vld [vmem:[%s2 + $0x1d0] sm:$0xff]
        %v495 = vld [vmem:[%s2 + $0x1d8] sm:$0xff]
        %v496 = vld [vmem:[%s2 + $0x1e0] sm:$0xff]
        %v497 = vld [vmem:[%s2 + $0x1e8] sm:$0xff]
        %v498 = vld [vmem:[%s2 + $0x1f0] sm:$0xff]
        %v499 = vld [vmem:[%s2 + $0x1f8] sm:$0xff]
        %v500 = vld [vmem:[%s2 + $0x200] sm:$0xff]
        %v501 = vld [vmem:[%s2 + $0x208] sm:$0xff]
        %v502 = vld [vmem:[%s2 + $0x210] sm:$0xff]
        %v503 = vld [vmem:[%s2 + $0x218] sm:$0xff]
        %v504 = vld [vmem:[%s2 + $0x220] sm:$0xff]
        %v505 = vld [vmem:[%s2 + $0x228] sm:$0xff]
        %v506 = vld [vmem:[%s2 + $0x230] sm:$0xff]
        %v507 = vld [vmem:[%s2 + $0x238] sm:$0xff]
        %v508 = vld [vmem:[%s2 + $0x240] sm:$0xff]
        %v509 = vld [vmem:[%s2 + $0x248] sm:$0xff]
        %v510 = vld [vmem:[%s2 + $0x250] sm:$0xff]
        %v511 = vld [vmem:[%s2 + $0x258] sm:$0xff]
        %v512 = vld [vmem:[%s2 + $0x260] sm:$0xff]
        %v513 = vld [vmem:[%s2 + $0x268] sm:$0xff]
        %v514 = vld [vmem:[%s2 + $0x270] sm:$0xff]
        %v515 = vld [vmem:[%s2 + $0x278] sm:$0xff]
        %v516 = vld [vmem:[%s2 + $0x280] sm:$0xff]
        %v517 = vld [vmem:[%s2 + $0x288] sm:$0xff]
        %v518 = vld [vmem:[%s2 + $0x290] sm:$0xff]
        %v519 = vld [vmem:[%s2 + $0x298] sm:$0xff]
        %v520 = vld [vmem:[%s2 + $0x2a0] sm:$0xff]
        %v521 = vld [vmem:[%s2 + $0x2a8] sm:$0xff]
        %v522 = vld [vmem:[%s2 + $0x2b0] sm:$0xff]
        %v523 = vld [vmem:[%s2 + $0x2b8] sm:$0xff]
        %v524 = vld [vmem:[%s2 + $0x2c0] sm:$0xff]
        %v525 = vld [vmem:[%s2 + $0x2c8] sm:$0xff]
        %v526 = vld [vmem:[%s2 + $0x2d0] sm:$0xff]
        %v527 = vld [vmem:[%s2 + $0x2d8] sm:$0xff]
        %v528 = vld [vmem:[%s2 + $0x2e0] sm:$0xff]
        %v529 = vld [vmem:[%s2 + $0x2e8] sm:$0xff]
        %v530 = vld [vmem:[%s2 + $0x2f0] sm:$0xff]
        %v531 = vld [vmem:[%s2 + $0x2f8] sm:$0xff]
        %v532 = vld [vmem:[%s2 + $0x300] sm:$0xff]
        %v533 = vld [vmem:[%s2 + $0x308] sm:$0xff]
        %v534 = vld [vmem:[%s2 + $0x310] sm:$0xff]
        %v535 = vld [vmem:[%s2 + $0x318] sm:$0xff]
        %v536 = vld [vmem:[%s2 + $0x320] sm:$0xff]
        %v537 = vld [vmem:[%s2 + $0x328] sm:$0xff]
        %v538 = vld [vmem:[%s2 + $0x330] sm:$0xff]
        %v539 = vld [vmem:[%s2 + $0x338] sm:$0xff]
        %v540 = vld [vmem:[%s2 + $0x340] sm:$0xff]
        %v541 = vld [vmem:[%s2 + $0x348] sm:$0xff]
        %v542 = vld [vmem:[%s2 + $0x350] sm:$0xff]
        %v543 = vld [vmem:[%s2 + $0x358] sm:$0xff]
        %v544 = vld [vmem:[%s2 + $0x360] sm:$0xff]
        %v545 = vld [vmem:[%s2 + $0x368] sm:$0xff]
        %v546 = vld [vmem:[%s2 + $0x370] sm:$0xff]
        %v547 = vld [vmem:[%s2 + $0x378] sm:$0xff]
        %v548 = vld [vmem:[%s2 + $0x380] sm:$0xff]
        %v549 = vld [vmem:[%s2 + $0x388] sm:$0xff]
        %v550 = vld [vmem:[%s2 + $0x390] sm:$0xff]
        %v551 = vld [vmem:[%s2 + $0x398] sm:$0xff]
        %v552 = vld [vmem:[%s2 + $0x3a0] sm:$0xff]
        %v553 = vld [vmem:[%s2 + $0x3a8] sm:$0xff]
        %v554 = vld [vmem:[%s2 + $0x3b0] sm:$0xff]
        %v555 = vld [vmem:[%s2 + $0x3b8] sm:$0xff]
        %v556 = vld [vmem:[%s2 + $0x3c0] sm:$0xff]
        %v557 = vld [vmem:[%s2 + $0x3c8] sm:$0xff]
        %v558 = vld [vmem:[%s2 + $0x3d0] sm:$0xff]
        %v559 = vld [vmem:[%s2 + $0x3d8] sm:$0xff]
        %v560 = vld [vmem:[%s2 + $0x3e0] sm:$0xff]
        %v561 = vld [vmem:[%s2 + $0x3e8] sm:$0xff]
        %v562 = vld [vmem:[%s2 + $0x3f0] sm:$0xff]
        %v563 = vld [vmem:[%s2 + $0x3f8] sm:$0xff]
        %v564 = vld [vmem:[%s2 + $0x400] sm:$0xff]
        %v565 = vld [vmem:[%s2 + $0x408] sm:$0xff]
        %v566 = vld [vmem:[%s2 + $0x410] sm:$0xff]
        %v567 = vld [vmem:[%s2 + $0x418] sm:$0xff]
        %v568 = vld [vmem:[%s2 + $0x420] sm:$0xff]
        %v569 = vld [vmem:[%s2 + $0x428] sm:$0xff]
        %v570 = vld [vmem:[%s2 + $0x430] sm:$0xff]
        %v571 = vld [vmem:[%s2 + $0x438] sm:$0xff]
        %v572 = vld [vmem:[%s2 + $0x440] sm:$0xff]
        %v573 = vld [vmem:[%s2 + $0x448] sm:$0xff]
        %v574 = vld [vmem:[%s2 + $0x450] sm:$0xff]
        %v575 = vld [vmem:[%s2 + $0x458] sm:$0xff]
        %v576 = vld [vmem:[%s2 + $0x460] sm:$0xff]
        %v577 = vld [vmem:[%s2 + $0x468] sm:$0xff]
        %v578 = vld [vmem:[%s2 + $0x470] sm:$0xff]
        %v579 = vld [vmem:[%s2 + $0x478] sm:$0xff]
        %v580 = vld [vmem:[%s2 + $0x480] sm:$0xff]
        %v581 = vld [vmem:[%s2 + $0x488] sm:$0xff]
        %v582 = vld [vmem:[%s2 + $0x490] sm:$0xff]
        %v583 = vld [vmem:[%s2 + $0x498] sm:$0xff]
        %v584 = vld [vmem:[%s2 + $0x4a0] sm:$0xff]
        %v585 = vld [vmem:[%s2 + $0x4a8] sm:$0xff]
        %v586 = vld [vmem:[%s2 + $0x4b0] sm:$0xff]
        %v587 = vld [vmem:[%s2 + $0x4b8] sm:$0xff]
        %v588 = vld [vmem:[%s2 + $0x4c0] sm:$0xff]
        %v589 = vld [vmem:[%s2 + $0x4c8] sm:$0xff]
        %v590 = vld [vmem:[%s2 + $0x4d0] sm:$0xff]
        %v591 = vld [vmem:[%s2 + $0x4d8] sm:$0xff]
        %v592 = vld [vmem:[%s2 + $0x4e0] sm:$0xff]
        %v593 = vld [vmem:[%s2 + $0x4e8] sm:$0xff]
        %v594 = vld [vmem:[%s2 + $0x4f0] sm:$0xff]
        %v595 = vld [vmem:[%s2 + $0x4f8] sm:$0xff]
        %v596 = vld [vmem:[%s2 + $0x500] sm:$0xff]
        %v597 = vld [vmem:[%s2 + $0x508] sm:$0xff]
        %v598 = vld [vmem:[%s2 + $0x510] sm:$0xff]
        %v599 = vld [vmem:[%s2 + $0x518] sm:$0xff]
        %v600 = vld [vmem:[%s2 + $0x520] sm:$0xff]
        %v601 = vld [vmem:[%s2 + $0x528] sm:$0xff]
        %v602 = vld [vmem:[%s2 + $0x530] sm:$0xff]
        %v603 = vld [vmem:[%s2 + $0x538] sm:$0xff]
        %v604 = vld [vmem:[%s2 + $0x540] sm:$0xff]
        %v605 = vld [vmem:[%s2 + $0x548] sm:$0xff]
        %v606 = vld [vmem:[%s2 + $0x550] sm:$0xff]
        %v607 = vld [vmem:[%s2 + $0x558] sm:$0xff]
        %v608 = vld [vmem:[%s2 + $0x560] sm:$0xff]
        %v609 = vld [vmem:[%s2 + $0x568] sm:$0xff]
        %v610 = vld [vmem:[%s2 + $0x570] sm:$0xff]
        %v611 = vld [vmem:[%s2 + $0x578] sm:$0xff]
        %v612 = vld [vmem:[%s2 + $0x580] sm:$0xff]
        %v613 = vld [vmem:[%s2 + $0x588] sm:$0xff]
        %v614 = vld [vmem:[%s2 + $0x590] sm:$0xff]
        %v615 = vld [vmem:[%s2 + $0x598] sm:$0xff]
        %v616 = vld [vmem:[%s2 + $0x5a0] sm:$0xff]
        %v617 = vld [vmem:[%s2 + $0x5a8] sm:$0xff]
        %v618 = vld [vmem:[%s2 + $0x5b0] sm:$0xff]
        %v619 = vld [vmem:[%s2 + $0x5b8] sm:$0xff]
        %v620 = vld [vmem:[%s2 + $0x5c0] sm:$0xff]
        %v621 = vld [vmem:[%s2 + $0x5c8] sm:$0xff]
        %v622 = vld [vmem:[%s2 + $0x5d0] sm:$0xff]
        %v623 = vld [vmem:[%s2 + $0x5d8] sm:$0xff]
        %v624 = vld [vmem:[%s2 + $0x5e0] sm:$0xff]
        %v625 = vld [vmem:[%s2 + $0x5e8] sm:$0xff]
        %v626 = vld [vmem:[%s2 + $0x5f0] sm:$0xff]
        %v627 = vld [vmem:[%s2 + $0x5f8] sm:$0xff]
        %v628 = vld [vmem:[%s2 + $0x600] sm:$0xff]
        %v629 = vld [vmem:[%s2 + $0x608] sm:$0xff]
        %v630 = vld [vmem:[%s2 + $0x610] sm:$0xff]
        %v631 = vld [vmem:[%s2 + $0x618] sm:$0xff]
        %v632 = vld [vmem:[%s2 + $0x620] sm:$0xff]
        %v633 = vld [vmem:[%s2 + $0x628] sm:$0xff]
        %v634 = vld [vmem:[%s2 + $0x630] sm:$0xff]
        %v635 = vld [vmem:[%s2 + $0x638] sm:$0xff]
        %v636 = vld [vmem:[%s2 + $0x640] sm:$0xff]
        %v637 = vld [vmem:[%s2 + $0x648] sm:$0xff]
        %v638 = vld [vmem:[%s2 + $0x650] sm:$0xff]
        %v639 = vld [vmem:[%s2 + $0x658] sm:$0xff]
        %v640 = vld [vmem:[%s2 + $0x660] sm:$0xff]
        %v641 = vld [vmem:[%s2 + $0x668] sm:$0xff]
        %v642 = vld [vmem:[%s2 + $0x670] sm:$0xff]
        %v643 = vld [vmem:[%s2 + $0x678] sm:$0xff]
        %v644 = vld [vmem:[%s2 + $0x680] sm:$0xff]
        %v645 = vld [vmem:[%s2 + $0x688] sm:$0xff]
        %v646 = vld [vmem:[%s2 + $0x690] sm:$0xff]
        %v647 = vld [vmem:[%s2 + $0x698] sm:$0xff]
        %v648 = vld [vmem:[%s2 + $0x6a0] sm:$0xff]
        %v649 = vld [vmem:[%s2 + $0x6a8] sm:$0xff]
        %v650 = vld [vmem:[%s2 + $0x6b0] sm:$0xff]
        %v651 = vld [vmem:[%s2 + $0x6b8] sm:$0xff]
        %v652 = vld [vmem:[%s2 + $0x6c0] sm:$0xff]
        %v653 = vld [vmem:[%s2 + $0x6c8] sm:$0xff]
        %v654 = vld [vmem:[%s2 + $0x6d0] sm:$0xff]
        %v655 = vld [vmem:[%s2 + $0x6d8] sm:$0xff]
        %v656 = vld [vmem:[%s2 + $0x6e0] sm:$0xff]
        %v657 = vld [vmem:[%s2 + $0x6e8] sm:$0xff]
        %v658 = vld [vmem:[%s2 + $0x6f0] sm:$0xff]
        %v659 = vld [vmem:[%s2 + $0x6f8] sm:$0xff]
        %v660 = vld [vmem:[%s3] sm:$0xf]
        %v662 = vlaneseq
        %v663 = vshrl.u32 %v662, 7
        %v664 = vsub.s32 0, %v663
        %v665 = vrot.slane %v660, %v664
        %v666 = vlaneseq
        %v667 = vshrl.u32 %v666, 7
        %v668 = vsub.s32 1, %v667
        %v669 = vrot.slane %v660, %v668
        %v670 = vlaneseq
        %v671 = vshrl.u32 %v670, 7
        %v672 = vsub.s32 2, %v671
        %v673 = vrot.slane %v660, %v672
        %v674 = vlaneseq
        %v675 = vshrl.u32 %v674, 7
        %v676 = vsub.s32 3, %v675
        %v677 = vrot.slane %v660, %v676
        %v690 = vunpack.c.l.b16 %v426
        %v691 = vunpack.c.h.b16 %v426
        %v692 = vunpack.c.l.b16 %v427
        %v693 = vunpack.c.h.b16 %v427
        %v694 = vunpack.c.l.b16 %v428
        %v695 = vunpack.c.h.b16 %v428
        %v696 = vunpack.c.l.b16 %v429
        %v697 = vunpack.c.l.b16 %v430
        %v698 = vunpack.c.h.b16 %v430
        %v699 = vunpack.c.l.b16 %v431
        %v700 = vunpack.c.h.b16 %v431
        %v701 = vunpack.c.l.b16 %v432
        %v702 = vunpack.c.h.b16 %v432
        %v703 = vunpack.c.l.b16 %v433
        %v704 = vpack.c.b16 %v697, %v690
        %v705 = vpack.c.b16 %v698, %v691
        %v706 = vpack.c.b16 %v699, %v692
        %v707 = vpack.c.b16 %v700, %v693
        %v708 = vpack.c.b16 %v701, %v694
        %v709 = vpack.c.b16 %v702, %v695
        %v710 = vpack.c.b16 %v703, %v696
        %v942 = vunpack.c.l.b16 %v436
        %v943 = vunpack.c.h.b16 %v436
        %v944 = vunpack.c.l.b16 %v437
        %v945 = vunpack.c.h.b16 %v437
        %v946 = vunpack.c.l.b16 %v438
        %v947 = vunpack.c.h.b16 %v438
        %v948 = vunpack.c.l.b16 %v439
        %v949 = vunpack.c.h.b16 %v439
        %v950 = vunpack.c.l.b16 %v440
        %v951 = vunpack.c.h.b16 %v440
        %v952 = vunpack.c.l.b16 %v441
        %v953 = vunpack.c.h.b16 %v441
        %v954 = vunpack.c.l.b16 %v442
        %v955 = vunpack.c.h.b16 %v442
        %v956 = vunpack.c.l.b16 %v443
        %v957 = vunpack.c.h.b16 %v443
        %v958 = vunpack.c.l.b16 %v444
        %v959 = vunpack.c.h.b16 %v444
        %v960 = vunpack.c.l.b16 %v445
        %v961 = vunpack.c.h.b16 %v445
        %v962 = vunpack.c.l.b16 %v446
        %v963 = vunpack.c.h.b16 %v446
        %v964 = vunpack.c.l.b16 %v447
        %v965 = vunpack.c.h.b16 %v447
        %v966 = vunpack.c.l.b16 %v448
        %v967 = vunpack.c.h.b16 %v448
        %v968 = vunpack.c.l.b16 %v449
        %v969 = vunpack.c.h.b16 %v449
        %v970 = vunpack.c.l.b16 %v450
        %v971 = vunpack.c.h.b16 %v450
        %v972 = vunpack.c.l.b16 %v451
        %v973 = vunpack.c.h.b16 %v451
        %v974 = vunpack.c.l.b16 %v452
        %v975 = vunpack.c.h.b16 %v452
        %v976 = vunpack.c.l.b16 %v453
        %v977 = vunpack.c.h.b16 %v453
        %v978 = vunpack.c.l.b16 %v454
        %v979 = vunpack.c.h.b16 %v454
        %v980 = vunpack.c.l.b16 %v455
        %v981 = vunpack.c.h.b16 %v455
        %v982 = vunpack.c.l.b16 %v456
        %v983 = vunpack.c.h.b16 %v456
        %v984 = vunpack.c.l.b16 %v457
        %v985 = vunpack.c.h.b16 %v457
        %v986 = vunpack.c.l.b16 %v458
        %v987 = vunpack.c.h.b16 %v458
        %v988 = vunpack.c.l.b16 %v459
        %v989 = vunpack.c.h.b16 %v459
        %v990 = vunpack.c.l.b16 %v460
        %v991 = vunpack.c.h.b16 %v460
        %v992 = vunpack.c.l.b16 %v461
        %v993 = vunpack.c.h.b16 %v461
        %v994 = vunpack.c.l.b16 %v462
        %v995 = vunpack.c.h.b16 %v462
        %v996 = vunpack.c.l.b16 %v463
        %v997 = vunpack.c.h.b16 %v463
        %v998 = vunpack.c.l.b16 %v464
        %v999 = vunpack.c.h.b16 %v464
        %v1000 = vunpack.c.l.b16 %v465
        %v1001 = vunpack.c.h.b16 %v465
        %v1002 = vunpack.c.l.b16 %v466
        %v1003 = vunpack.c.h.b16 %v466
        %v1004 = vunpack.c.l.b16 %v467
        %v1005 = vunpack.c.h.b16 %v467
        %v1006 = vunpack.c.l.b16 %v468
        %v1007 = vunpack.c.h.b16 %v468
        %v1008 = vunpack.c.l.b16 %v469
        %v1009 = vunpack.c.h.b16 %v469
        %v1010 = vunpack.c.l.b16 %v470
        %v1011 = vunpack.c.h.b16 %v470
        %v1012 = vunpack.c.l.b16 %v471
        %v1013 = vunpack.c.h.b16 %v471
        %v1014 = vunpack.c.l.b16 %v472
        %v1015 = vunpack.c.h.b16 %v472
        %v1016 = vunpack.c.l.b16 %v473
        %v1017 = vunpack.c.h.b16 %v473
        %v1018 = vunpack.c.l.b16 %v474
        %v1019 = vunpack.c.h.b16 %v474
        %v1020 = vunpack.c.l.b16 %v475
        %v1021 = vunpack.c.h.b16 %v475
        %v1022 = vunpack.c.l.b16 %v476
        %v1023 = vunpack.c.h.b16 %v476
        %v1024 = vunpack.c.l.b16 %v477
        %v1025 = vunpack.c.h.b16 %v477
        %v1026 = vunpack.c.l.b16 %v478
        %v1027 = vunpack.c.h.b16 %v478
        %v1028 = vunpack.c.l.b16 %v479
        %v1029 = vunpack.c.h.b16 %v479
        %v1030 = vunpack.c.l.b16 %v480
        %v1031 = vunpack.c.h.b16 %v480
        %v1032 = vunpack.c.l.b16 %v481
        %v1033 = vunpack.c.h.b16 %v481
        %v1034 = vunpack.c.l.b16 %v482
        %v1035 = vunpack.c.h.b16 %v482
        %v1036 = vunpack.c.l.b16 %v483
        %v1037 = vunpack.c.h.b16 %v483
        %v1038 = vunpack.c.l.b16 %v484
        %v1039 = vunpack.c.h.b16 %v484
        %v1040 = vunpack.c.l.b16 %v485
        %v1041 = vunpack.c.h.b16 %v485
        %v1042 = vunpack.c.l.b16 %v486
        %v1043 = vunpack.c.h.b16 %v486
        %v1044 = vunpack.c.l.b16 %v487
        %v1045 = vunpack.c.h.b16 %v487
        %v1046 = vunpack.c.l.b16 %v488
        %v1047 = vunpack.c.h.b16 %v488
        %v1048 = vunpack.c.l.b16 %v489
        %v1049 = vunpack.c.h.b16 %v489
        %v1050 = vunpack.c.l.b16 %v490
        %v1051 = vunpack.c.h.b16 %v490
        %v1052 = vunpack.c.l.b16 %v491
        %v1053 = vunpack.c.h.b16 %v491
        %v1054 = vunpack.c.l.b16 %v492
        %v1055 = vunpack.c.h.b16 %v492
        %v1056 = vunpack.c.l.b16 %v493
        %v1057 = vunpack.c.h.b16 %v493
        %v1058 = vunpack.c.l.b16 %v494
        %v1059 = vunpack.c.h.b16 %v494
        %v1060 = vunpack.c.l.b16 %v495
        %v1061 = vunpack.c.h.b16 %v495
        %v1062 = vunpack.c.l.b16 %v496
        %v1063 = vunpack.c.h.b16 %v496
        %v1064 = vunpack.c.l.b16 %v497
        %v1065 = vunpack.c.h.b16 %v497
        %v1066 = vunpack.c.l.b16 %v498
        %v1067 = vunpack.c.h.b16 %v498
        %v1068 = vunpack.c.l.b16 %v499
        %v1069 = vunpack.c.h.b16 %v499
        %v1070 = vunpack.c.l.b16 %v500
        %v1071 = vunpack.c.h.b16 %v500
        %v1072 = vunpack.c.l.b16 %v501
        %v1073 = vunpack.c.h.b16 %v501
        %v1074 = vunpack.c.l.b16 %v502
        %v1075 = vunpack.c.h.b16 %v502
        %v1076 = vunpack.c.l.b16 %v503
        %v1077 = vunpack.c.h.b16 %v503
        %v1078 = vunpack.c.l.b16 %v504
        %v1079 = vunpack.c.h.b16 %v504
        %v1080 = vunpack.c.l.b16 %v505
        %v1081 = vunpack.c.h.b16 %v505
        %v1082 = vunpack.c.l.b16 %v506
        %v1083 = vunpack.c.h.b16 %v506
        %v1084 = vunpack.c.l.b16 %v507
        %v1085 = vunpack.c.h.b16 %v507
        %v1086 = vunpack.c.l.b16 %v508
        %v1087 = vunpack.c.h.b16 %v508
        %v1088 = vunpack.c.l.b16 %v509
        %v1089 = vunpack.c.h.b16 %v509
        %v1090 = vunpack.c.l.b16 %v510
        %v1091 = vunpack.c.h.b16 %v510
        %v1092 = vunpack.c.l.b16 %v511
        %v1093 = vunpack.c.h.b16 %v511
        %v1094 = vunpack.c.l.b16 %v512
        %v1095 = vunpack.c.h.b16 %v512
        %v1096 = vunpack.c.l.b16 %v513
        %v1097 = vunpack.c.h.b16 %v513
        %v1098 = vunpack.c.l.b16 %v514
        %v1099 = vunpack.c.h.b16 %v514
        %v1100 = vunpack.c.l.b16 %v515
        %v1101 = vunpack.c.h.b16 %v515
        %v1102 = vunpack.c.l.b16 %v516
        %v1103 = vunpack.c.h.b16 %v516
        %v1104 = vunpack.c.l.b16 %v517
        %v1105 = vunpack.c.h.b16 %v517
        %v1106 = vunpack.c.l.b16 %v518
        %v1107 = vunpack.c.h.b16 %v518
        %v1108 = vunpack.c.l.b16 %v519
        %v1109 = vunpack.c.h.b16 %v519
        %v1110 = vunpack.c.l.b16 %v520
        %v1111 = vunpack.c.h.b16 %v520
        %v1112 = vunpack.c.l.b16 %v521
        %v1113 = vunpack.c.h.b16 %v521
        %v1114 = vunpack.c.l.b16 %v522
        %v1115 = vunpack.c.h.b16 %v522
        %v1116 = vunpack.c.l.b16 %v523
        %v1117 = vunpack.c.h.b16 %v523
        %v1118 = vunpack.c.l.b16 %v524
        %v1119 = vunpack.c.h.b16 %v524
        %v1120 = vunpack.c.l.b16 %v525
        %v1121 = vunpack.c.h.b16 %v525
        %v1122 = vunpack.c.l.b16 %v526
        %v1123 = vunpack.c.h.b16 %v526
        %v1124 = vunpack.c.l.b16 %v527
        %v1125 = vunpack.c.h.b16 %v527
        %v1126 = vunpack.c.l.b16 %v528
        %v1127 = vunpack.c.h.b16 %v528
        %v1128 = vunpack.c.l.b16 %v529
        %v1129 = vunpack.c.h.b16 %v529
        %v1130 = vunpack.c.l.b16 %v530
        %v1131 = vunpack.c.h.b16 %v530
        %v1132 = vunpack.c.l.b16 %v531
        %v1133 = vunpack.c.h.b16 %v531
        %v1134 = vunpack.c.l.b16 %v532
        %v1135 = vunpack.c.h.b16 %v532
        %v1136 = vunpack.c.l.b16 %v533
        %v1137 = vunpack.c.h.b16 %v533
        %v1138 = vunpack.c.l.b16 %v534
        %v1139 = vunpack.c.h.b16 %v534
        %v1140 = vunpack.c.l.b16 %v535
        %v1141 = vunpack.c.h.b16 %v535
        %v1142 = vunpack.c.l.b16 %v536
        %v1143 = vunpack.c.h.b16 %v536
        %v1144 = vunpack.c.l.b16 %v537
        %v1145 = vunpack.c.h.b16 %v537
        %v1146 = vunpack.c.l.b16 %v538
        %v1147 = vunpack.c.h.b16 %v538
        %v1148 = vunpack.c.l.b16 %v539
        %v1149 = vunpack.c.h.b16 %v539
        %v1150 = vunpack.c.l.b16 %v540
        %v1151 = vunpack.c.h.b16 %v540
        %v1152 = vunpack.c.l.b16 %v541
        %v1153 = vunpack.c.h.b16 %v541
        %v1154 = vunpack.c.l.b16 %v542
        %v1155 = vunpack.c.h.b16 %v542
        %v1156 = vunpack.c.l.b16 %v543
        %v1157 = vunpack.c.h.b16 %v543
        %v1158 = vunpack.c.l.b16 %v544
        %v1159 = vunpack.c.h.b16 %v544
        %v1160 = vunpack.c.l.b16 %v545
        %v1161 = vunpack.c.h.b16 %v545
        %v1162 = vunpack.c.l.b16 %v546
        %v1163 = vunpack.c.h.b16 %v546
        %v1164 = vunpack.c.l.b16 %v547
        %v1165 = vunpack.c.h.b16 %v547
        %v1166 = vunpack.c.l.b16 %v548
        %v1167 = vunpack.c.h.b16 %v548
        %v1168 = vunpack.c.l.b16 %v549
        %v1169 = vunpack.c.h.b16 %v549
        %v1170 = vunpack.c.l.b16 %v550
        %v1171 = vunpack.c.h.b16 %v550
        %v1172 = vunpack.c.l.b16 %v551
        %v1173 = vunpack.c.h.b16 %v551
        %v1174 = vunpack.c.l.b16 %v552
        %v1175 = vunpack.c.h.b16 %v552
        %v1176 = vunpack.c.l.b16 %v553
        %v1177 = vunpack.c.h.b16 %v553
        %v1178 = vunpack.c.l.b16 %v554
        %v1179 = vunpack.c.h.b16 %v554
        %v1180 = vunpack.c.l.b16 %v555
        %v1181 = vunpack.c.h.b16 %v555
        %v1182 = vunpack.c.l.b16 %v556
        %v1183 = vunpack.c.h.b16 %v556
        %v1184 = vunpack.c.l.b16 %v557
        %v1185 = vunpack.c.h.b16 %v557
        %v1186 = vunpack.c.l.b16 %v558
        %v1187 = vunpack.c.h.b16 %v558
        %v1188 = vunpack.c.l.b16 %v559
        %v1189 = vunpack.c.h.b16 %v559
        %v1190 = vunpack.c.l.b16 %v560
        %v1191 = vunpack.c.h.b16 %v560
        %v1192 = vunpack.c.l.b16 %v561
        %v1193 = vunpack.c.h.b16 %v561
        %v1194 = vunpack.c.l.b16 %v562
        %v1195 = vunpack.c.h.b16 %v562
        %v1196 = vunpack.c.l.b16 %v563
        %v1197 = vunpack.c.h.b16 %v563
        %v1198 = vunpack.c.l.b16 %v564
        %v1199 = vunpack.c.h.b16 %v564
        %v1200 = vunpack.c.l.b16 %v565
        %v1201 = vunpack.c.h.b16 %v565
        %v1202 = vunpack.c.l.b16 %v566
        %v1203 = vunpack.c.h.b16 %v566
        %v1204 = vunpack.c.l.b16 %v567
        %v1205 = vunpack.c.h.b16 %v567
        %v1206 = vunpack.c.l.b16 %v568
        %v1207 = vunpack.c.h.b16 %v568
        %v1208 = vunpack.c.l.b16 %v569
        %v1209 = vunpack.c.h.b16 %v569
        %v1210 = vunpack.c.l.b16 %v570
        %v1211 = vunpack.c.h.b16 %v570
        %v1212 = vunpack.c.l.b16 %v571
        %v1213 = vunpack.c.h.b16 %v571
        %v1214 = vunpack.c.l.b16 %v572
        %v1215 = vunpack.c.h.b16 %v572
        %v1216 = vunpack.c.l.b16 %v573
        %v1217 = vunpack.c.h.b16 %v573
        %v1218 = vunpack.c.l.b16 %v574
        %v1219 = vunpack.c.h.b16 %v574
        %v1220 = vunpack.c.l.b16 %v575
        %v1221 = vunpack.c.h.b16 %v575
        %v1222 = vunpack.c.l.b16 %v576
        %v1223 = vunpack.c.h.b16 %v576
        %v1224 = vunpack.c.l.b16 %v577
        %v1225 = vunpack.c.h.b16 %v577
        %v1226 = vunpack.c.l.b16 %v578
        %v1227 = vunpack.c.h.b16 %v578
        %v1228 = vunpack.c.l.b16 %v579
        %v1229 = vunpack.c.h.b16 %v579
        %v1230 = vunpack.c.l.b16 %v580
        %v1231 = vunpack.c.h.b16 %v580
        %v1232 = vunpack.c.l.b16 %v581
        %v1233 = vunpack.c.h.b16 %v581
        %v1234 = vunpack.c.l.b16 %v582
        %v1235 = vunpack.c.h.b16 %v582
        %v1236 = vunpack.c.l.b16 %v583
        %v1237 = vunpack.c.h.b16 %v583
        %v1238 = vunpack.c.l.b16 %v584
        %v1239 = vunpack.c.h.b16 %v584
        %v1240 = vunpack.c.l.b16 %v585
        %v1241 = vunpack.c.h.b16 %v585
        %v1242 = vunpack.c.l.b16 %v586
        %v1243 = vunpack.c.h.b16 %v586
        %v1244 = vunpack.c.l.b16 %v587
        %v1245 = vunpack.c.h.b16 %v587
        %v1246 = vunpack.c.l.b16 %v588
        %v1247 = vunpack.c.h.b16 %v588
        %v1248 = vunpack.c.l.b16 %v589
        %v1249 = vunpack.c.h.b16 %v589
        %v1250 = vunpack.c.l.b16 %v590
        %v1251 = vunpack.c.h.b16 %v590
        %v1252 = vunpack.c.l.b16 %v591
        %v1253 = vunpack.c.h.b16 %v591
        %v1254 = vunpack.c.l.b16 %v592
        %v1255 = vunpack.c.h.b16 %v592
        %v1256 = vunpack.c.l.b16 %v593
        %v1257 = vunpack.c.h.b16 %v593
        %v1258 = vunpack.c.l.b16 %v594
        %v1259 = vunpack.c.h.b16 %v594
        %v1260 = vunpack.c.l.b16 %v595
        %v1261 = vunpack.c.h.b16 %v595
        %v1262 = vunpack.c.l.b16 %v596
        %v1263 = vunpack.c.h.b16 %v596
        %v1264 = vunpack.c.l.b16 %v597
        %v1265 = vunpack.c.h.b16 %v597
        %v1266 = vunpack.c.l.b16 %v598
        %v1267 = vunpack.c.h.b16 %v598
        %v1268 = vunpack.c.l.b16 %v599
        %v1269 = vunpack.c.h.b16 %v599
        %v1270 = vunpack.c.l.b16 %v600
        %v1271 = vunpack.c.h.b16 %v600
        %v1272 = vunpack.c.l.b16 %v601
        %v1273 = vunpack.c.h.b16 %v601
        %v1274 = vunpack.c.l.b16 %v602
        %v1275 = vunpack.c.h.b16 %v602
        %v1276 = vunpack.c.l.b16 %v603
        %v1277 = vunpack.c.h.b16 %v603
        %v1278 = vunpack.c.l.b16 %v604
        %v1279 = vunpack.c.h.b16 %v604
        %v1280 = vunpack.c.l.b16 %v605
        %v1281 = vunpack.c.h.b16 %v605
        %v1282 = vunpack.c.l.b16 %v606
        %v1283 = vunpack.c.h.b16 %v606
        %v1284 = vunpack.c.l.b16 %v607
        %v1285 = vunpack.c.h.b16 %v607
        %v1286 = vunpack.c.l.b16 %v608
        %v1287 = vunpack.c.h.b16 %v608
        %v1288 = vunpack.c.l.b16 %v609
        %v1289 = vunpack.c.h.b16 %v609
        %v1290 = vunpack.c.l.b16 %v610
        %v1291 = vunpack.c.h.b16 %v610
        %v1292 = vunpack.c.l.b16 %v611
        %v1293 = vunpack.c.h.b16 %v611
        %v1294 = vunpack.c.l.b16 %v612
        %v1295 = vunpack.c.h.b16 %v612
        %v1296 = vunpack.c.l.b16 %v613
        %v1297 = vunpack.c.h.b16 %v613
        %v1298 = vunpack.c.l.b16 %v614
        %v1299 = vunpack.c.h.b16 %v614
        %v1300 = vunpack.c.l.b16 %v615
        %v1301 = vunpack.c.h.b16 %v615
        %v1302 = vunpack.c.l.b16 %v616
        %v1303 = vunpack.c.h.b16 %v616
        %v1304 = vunpack.c.l.b16 %v617
        %v1305 = vunpack.c.h.b16 %v617
        %v1306 = vunpack.c.l.b16 %v618
        %v1307 = vunpack.c.h.b16 %v618
        %v1308 = vunpack.c.l.b16 %v619
        %v1309 = vunpack.c.h.b16 %v619
        %v1310 = vunpack.c.l.b16 %v620
        %v1311 = vunpack.c.h.b16 %v620
        %v1312 = vunpack.c.l.b16 %v621
        %v1313 = vunpack.c.h.b16 %v621
        %v1314 = vunpack.c.l.b16 %v622
        %v1315 = vunpack.c.h.b16 %v622
        %v1316 = vunpack.c.l.b16 %v623
        %v1317 = vunpack.c.h.b16 %v623
        %v1318 = vunpack.c.l.b16 %v624
        %v1319 = vunpack.c.h.b16 %v624
        %v1320 = vunpack.c.l.b16 %v625
        %v1321 = vunpack.c.h.b16 %v625
        %v1322 = vunpack.c.l.b16 %v626
        %v1323 = vunpack.c.h.b16 %v626
        %v1324 = vunpack.c.l.b16 %v627
        %v1325 = vunpack.c.h.b16 %v627
        %v1326 = vunpack.c.l.b16 %v628
        %v1327 = vunpack.c.h.b16 %v628
        %v1328 = vunpack.c.l.b16 %v629
        %v1329 = vunpack.c.h.b16 %v629
        %v1330 = vunpack.c.l.b16 %v630
        %v1331 = vunpack.c.h.b16 %v630
        %v1332 = vunpack.c.l.b16 %v631
        %v1333 = vunpack.c.h.b16 %v631
        %v1334 = vunpack.c.l.b16 %v632
        %v1335 = vunpack.c.h.b16 %v632
        %v1336 = vunpack.c.l.b16 %v633
        %v1337 = vunpack.c.h.b16 %v633
        %v1338 = vunpack.c.l.b16 %v634
        %v1339 = vunpack.c.h.b16 %v634
        %v1340 = vunpack.c.l.b16 %v635
        %v1341 = vunpack.c.h.b16 %v635
        %v1342 = vunpack.c.l.b16 %v636
        %v1343 = vunpack.c.h.b16 %v636
        %v1344 = vunpack.c.l.b16 %v637
        %v1345 = vunpack.c.h.b16 %v637
        %v1346 = vunpack.c.l.b16 %v638
        %v1347 = vunpack.c.h.b16 %v638
        %v1348 = vunpack.c.l.b16 %v639
        %v1349 = vunpack.c.h.b16 %v639
        %v1350 = vunpack.c.l.b16 %v640
        %v1351 = vunpack.c.h.b16 %v640
        %v1352 = vunpack.c.l.b16 %v641
        %v1353 = vunpack.c.h.b16 %v641
        %v1354 = vunpack.c.l.b16 %v642
        %v1355 = vunpack.c.h.b16 %v642
        %v1356 = vunpack.c.l.b16 %v643
        %v1357 = vunpack.c.h.b16 %v643
        %v1358 = vunpack.c.l.b16 %v644
        %v1359 = vunpack.c.h.b16 %v644
        %v1360 = vunpack.c.l.b16 %v645
        %v1361 = vunpack.c.h.b16 %v645
        %v1362 = vunpack.c.l.b16 %v646
        %v1363 = vunpack.c.h.b16 %v646
        %v1364 = vunpack.c.l.b16 %v647
        %v1365 = vunpack.c.h.b16 %v647
        %v1366 = vunpack.c.l.b16 %v648
        %v1367 = vunpack.c.h.b16 %v648
        %v1368 = vunpack.c.l.b16 %v649
        %v1369 = vunpack.c.h.b16 %v649
        %v1370 = vunpack.c.l.b16 %v650
        %v1371 = vunpack.c.h.b16 %v650
        %v1372 = vunpack.c.l.b16 %v651
        %v1373 = vunpack.c.h.b16 %v651
        %v1374 = vunpack.c.l.b16 %v652
        %v1375 = vunpack.c.h.b16 %v652
        %v1376 = vunpack.c.l.b16 %v653
        %v1377 = vunpack.c.h.b16 %v653
        %v1378 = vunpack.c.l.b16 %v654
        %v1379 = vunpack.c.h.b16 %v654
        %v1380 = vunpack.c.l.b16 %v655
        %v1381 = vunpack.c.h.b16 %v655
        %v1382 = vunpack.c.l.b16 %v656
        %v1383 = vunpack.c.h.b16 %v656
        %v1384 = vunpack.c.l.b16 %v657
        %v1385 = vunpack.c.h.b16 %v657
        %v1386 = vunpack.c.l.b16 %v658
        %v1387 = vunpack.c.h.b16 %v658
        %v1388 = vunpack.c.l.b16 %v659
        %v1389 = vunpack.c.h.b16 %v659
        %v1390 = vpack.c.b16 %v946, %v942
        %v1391 = vpack.c.b16 %v947, %v943
        %v1392 = vpack.c.b16 %v948, %v944
        %v1393 = vpack.c.b16 %v949, %v945
        %v1394 = vpack.c.b16 %v954, %v950
        %v1395 = vpack.c.b16 %v955, %v951
        %v1396 = vpack.c.b16 %v956, %v952
        %v1397 = vpack.c.b16 %v957, %v953
        %v1398 = vpack.c.b16 %v962, %v958
        %v1399 = vpack.c.b16 %v963, %v959
        %v1400 = vpack.c.b16 %v964, %v960
        %v1401 = vpack.c.b16 %v965, %v961
        %v1402 = vpack.c.b16 %v970, %v966
        %v1403 = vpack.c.b16 %v971, %v967
        %v1404 = vpack.c.b16 %v972, %v968
        %v1405 = vpack.c.b16 %v973, %v969
        %v1406 = vpack.c.b16 %v978, %v974
        %v1407 = vpack.c.b16 %v979, %v975
        %v1408 = vpack.c.b16 %v980, %v976
        %v1409 = vpack.c.b16 %v981, %v977
        %v1410 = vpack.c.b16 %v986, %v982
        %v1411 = vpack.c.b16 %v987, %v983
        %v1412 = vpack.c.b16 %v988, %v984
        %v1413 = vpack.c.b16 %v989, %v985
        %v1414 = vpack.c.b16 %v994, %v990
        %v1415 = vpack.c.b16 %v995, %v991
        %v1416 = vpack.c.b16 %v996, %v992
        %v1417 = vpack.c.b16 %v997, %v993
        %v1418 = vpack.c.b16 %v1002, %v998
        %v1419 = vpack.c.b16 %v1003, %v999
        %v1420 = vpack.c.b16 %v1004, %v1000
        %v1421 = vpack.c.b16 %v1005, %v1001
        %v1422 = vpack.c.b16 %v1010, %v1006
        %v1423 = vpack.c.b16 %v1011, %v1007
        %v1424 = vpack.c.b16 %v1012, %v1008
        %v1425 = vpack.c.b16 %v1013, %v1009
        %v1426 = vpack.c.b16 %v1018, %v1014
        %v1427 = vpack.c.b16 %v1019, %v1015
        %v1428 = vpack.c.b16 %v1020, %v1016
        %v1429 = vpack.c.b16 %v1021, %v1017
        %v1430 = vpack.c.b16 %v1026, %v1022
        %v1431 = vpack.c.b16 %v1027, %v1023
        %v1432 = vpack.c.b16 %v1028, %v1024
        %v1433 = vpack.c.b16 %v1029, %v1025
        %v1434 = vpack.c.b16 %v1034, %v1030
        %v1435 = vpack.c.b16 %v1035, %v1031
        %v1436 = vpack.c.b16 %v1036, %v1032
        %v1437 = vpack.c.b16 %v1037, %v1033
        %v1438 = vpack.c.b16 %v1042, %v1038
        %v1439 = vpack.c.b16 %v1043, %v1039
        %v1440 = vpack.c.b16 %v1044, %v1040
        %v1441 = vpack.c.b16 %v1045, %v1041
        %v1442 = vpack.c.b16 %v1050, %v1046
        %v1443 = vpack.c.b16 %v1051, %v1047
        %v1444 = vpack.c.b16 %v1052, %v1048
        %v1445 = vpack.c.b16 %v1053, %v1049
        %v1446 = vpack.c.b16 %v1058, %v1054
        %v1447 = vpack.c.b16 %v1059, %v1055
        %v1448 = vpack.c.b16 %v1060, %v1056
        %v1449 = vpack.c.b16 %v1061, %v1057
        %v1450 = vpack.c.b16 %v1066, %v1062
        %v1451 = vpack.c.b16 %v1067, %v1063
        %v1452 = vpack.c.b16 %v1068, %v1064
        %v1453 = vpack.c.b16 %v1069, %v1065
        %v1454 = vpack.c.b16 %v1074, %v1070
        %v1455 = vpack.c.b16 %v1075, %v1071
        %v1456 = vpack.c.b16 %v1076, %v1072
        %v1457 = vpack.c.b16 %v1077, %v1073
        %v1458 = vpack.c.b16 %v1082, %v1078
        %v1459 = vpack.c.b16 %v1083, %v1079
        %v1460 = vpack.c.b16 %v1084, %v1080
        %v1461 = vpack.c.b16 %v1085, %v1081
        %v1462 = vpack.c.b16 %v1090, %v1086
        %v1463 = vpack.c.b16 %v1091, %v1087
        %v1464 = vpack.c.b16 %v1092, %v1088
        %v1465 = vpack.c.b16 %v1093, %v1089
        %v1466 = vpack.c.b16 %v1098, %v1094
        %v1467 = vpack.c.b16 %v1099, %v1095
        %v1468 = vpack.c.b16 %v1100, %v1096
        %v1469 = vpack.c.b16 %v1101, %v1097
        %v1470 = vpack.c.b16 %v1106, %v1102
        %v1471 = vpack.c.b16 %v1107, %v1103
        %v1472 = vpack.c.b16 %v1108, %v1104
        %v1473 = vpack.c.b16 %v1109, %v1105
        %v1474 = vpack.c.b16 %v1114, %v1110
        %v1475 = vpack.c.b16 %v1115, %v1111
        %v1476 = vpack.c.b16 %v1116, %v1112
        %v1477 = vpack.c.b16 %v1117, %v1113
        %v1478 = vpack.c.b16 %v1122, %v1118
        %v1479 = vpack.c.b16 %v1123, %v1119
        %v1480 = vpack.c.b16 %v1124, %v1120
        %v1481 = vpack.c.b16 %v1125, %v1121
        %v1482 = vpack.c.b16 %v1130, %v1126
        %v1483 = vpack.c.b16 %v1131, %v1127
        %v1484 = vpack.c.b16 %v1132, %v1128
        %v1485 = vpack.c.b16 %v1133, %v1129
        %v1486 = vpack.c.b16 %v1138, %v1134
        %v1487 = vpack.c.b16 %v1139, %v1135
        %v1488 = vpack.c.b16 %v1140, %v1136
        %v1489 = vpack.c.b16 %v1141, %v1137
        %v1490 = vpack.c.b16 %v1146, %v1142
        %v1491 = vpack.c.b16 %v1147, %v1143
        %v1492 = vpack.c.b16 %v1148, %v1144
        %v1493 = vpack.c.b16 %v1149, %v1145
        %v1494 = vpack.c.b16 %v1154, %v1150
        %v1495 = vpack.c.b16 %v1155, %v1151
        %v1496 = vpack.c.b16 %v1156, %v1152
        %v1497 = vpack.c.b16 %v1157, %v1153
        %v1498 = vpack.c.b16 %v1162, %v1158
        %v1499 = vpack.c.b16 %v1163, %v1159
        %v1500 = vpack.c.b16 %v1164, %v1160
        %v1501 = vpack.c.b16 %v1165, %v1161
        %v1502 = vpack.c.b16 %v1170, %v1166
        %v1503 = vpack.c.b16 %v1171, %v1167
        %v1504 = vpack.c.b16 %v1172, %v1168
        %v1505 = vpack.c.b16 %v1173, %v1169
        %v1506 = vpack.c.b16 %v1178, %v1174
        %v1507 = vpack.c.b16 %v1179, %v1175
        %v1508 = vpack.c.b16 %v1180, %v1176
        %v1509 = vpack.c.b16 %v1181, %v1177
        %v1510 = vpack.c.b16 %v1186, %v1182
        %v1511 = vpack.c.b16 %v1187, %v1183
        %v1512 = vpack.c.b16 %v1188, %v1184
        %v1513 = vpack.c.b16 %v1189, %v1185
        %v1514 = vpack.c.b16 %v1194, %v1190
        %v1515 = vpack.c.b16 %v1195, %v1191
        %v1516 = vpack.c.b16 %v1196, %v1192
        %v1517 = vpack.c.b16 %v1197, %v1193
        %v1518 = vpack.c.b16 %v1202, %v1198
        %v1519 = vpack.c.b16 %v1203, %v1199
        %v1520 = vpack.c.b16 %v1204, %v1200
        %v1521 = vpack.c.b16 %v1205, %v1201
        %v1522 = vpack.c.b16 %v1210, %v1206
        %v1523 = vpack.c.b16 %v1211, %v1207
        %v1524 = vpack.c.b16 %v1212, %v1208
        %v1525 = vpack.c.b16 %v1213, %v1209
        %v1526 = vpack.c.b16 %v1218, %v1214
        %v1527 = vpack.c.b16 %v1219, %v1215
        %v1528 = vpack.c.b16 %v1220, %v1216
        %v1529 = vpack.c.b16 %v1221, %v1217
        %v1530 = vpack.c.b16 %v1226, %v1222
        %v1531 = vpack.c.b16 %v1227, %v1223
        %v1532 = vpack.c.b16 %v1228, %v1224
        %v1533 = vpack.c.b16 %v1229, %v1225
        %v1534 = vpack.c.b16 %v1234, %v1230
        %v1535 = vpack.c.b16 %v1235, %v1231
        %v1536 = vpack.c.b16 %v1236, %v1232
        %v1537 = vpack.c.b16 %v1237, %v1233
        %v1538 = vpack.c.b16 %v1242, %v1238
        %v1539 = vpack.c.b16 %v1243, %v1239
        %v1540 = vpack.c.b16 %v1244, %v1240
        %v1541 = vpack.c.b16 %v1245, %v1241
        %v1542 = vpack.c.b16 %v1250, %v1246
        %v1543 = vpack.c.b16 %v1251, %v1247
        %v1544 = vpack.c.b16 %v1252, %v1248
        %v1545 = vpack.c.b16 %v1253, %v1249
        %v1546 = vpack.c.b16 %v1258, %v1254
        %v1547 = vpack.c.b16 %v1259, %v1255
        %v1548 = vpack.c.b16 %v1260, %v1256
        %v1549 = vpack.c.b16 %v1261, %v1257
        %v1550 = vpack.c.b16 %v1266, %v1262
        %v1551 = vpack.c.b16 %v1267, %v1263
        %v1552 = vpack.c.b16 %v1268, %v1264
        %v1553 = vpack.c.b16 %v1269, %v1265
        %v1554 = vpack.c.b16 %v1274, %v1270
        %v1555 = vpack.c.b16 %v1275, %v1271
        %v1556 = vpack.c.b16 %v1276, %v1272
        %v1557 = vpack.c.b16 %v1277, %v1273
        %v1558 = vpack.c.b16 %v1282, %v1278
        %v1559 = vpack.c.b16 %v1283, %v1279
        %v1560 = vpack.c.b16 %v1284, %v1280
        %v1561 = vpack.c.b16 %v1285, %v1281
        %v1562 = vpack.c.b16 %v1290, %v1286
        %v1563 = vpack.c.b16 %v1291, %v1287
        %v1564 = vpack.c.b16 %v1292, %v1288
        %v1565 = vpack.c.b16 %v1293, %v1289
        %v1566 = vpack.c.b16 %v1298, %v1294
        %v1567 = vpack.c.b16 %v1299, %v1295
        %v1568 = vpack.c.b16 %v1300, %v1296
        %v1569 = vpack.c.b16 %v1301, %v1297
        %v1570 = vpack.c.b16 %v1306, %v1302
        %v1571 = vpack.c.b16 %v1307, %v1303
        %v1572 = vpack.c.b16 %v1308, %v1304
        %v1573 = vpack.c.b16 %v1309, %v1305
        %v1574 = vpack.c.b16 %v1314, %v1310
        %v1575 = vpack.c.b16 %v1315, %v1311
        %v1576 = vpack.c.b16 %v1316, %v1312
        %v1577 = vpack.c.b16 %v1317, %v1313
        %v1578 = vpack.c.b16 %v1322, %v1318
        %v1579 = vpack.c.b16 %v1323, %v1319
        %v1580 = vpack.c.b16 %v1324, %v1320
        %v1581 = vpack.c.b16 %v1325, %v1321
        %v1582 = vpack.c.b16 %v1330, %v1326
        %v1583 = vpack.c.b16 %v1331, %v1327
        %v1584 = vpack.c.b16 %v1332, %v1328
        %v1585 = vpack.c.b16 %v1333, %v1329
        %v1586 = vpack.c.b16 %v1338, %v1334
        %v1587 = vpack.c.b16 %v1339, %v1335
        %v1588 = vpack.c.b16 %v1340, %v1336
        %v1589 = vpack.c.b16 %v1341, %v1337
        %v1590 = vpack.c.b16 %v1346, %v1342
        %v1591 = vpack.c.b16 %v1347, %v1343
        %v1592 = vpack.c.b16 %v1348, %v1344
        %v1593 = vpack.c.b16 %v1349, %v1345
        %v1594 = vpack.c.b16 %v1354, %v1350
        %v1595 = vpack.c.b16 %v1355, %v1351
        %v1596 = vpack.c.b16 %v1356, %v1352
        %v1597 = vpack.c.b16 %v1357, %v1353
        %v1598 = vpack.c.b16 %v1362, %v1358
        %v1599 = vpack.c.b16 %v1363, %v1359
        %v1600 = vpack.c.b16 %v1364, %v1360
        %v1601 = vpack.c.b16 %v1365, %v1361
        %v1602 = vpack.c.b16 %v1370, %v1366
        %v1603 = vpack.c.b16 %v1371, %v1367
        %v1604 = vpack.c.b16 %v1372, %v1368
        %v1605 = vpack.c.b16 %v1373, %v1369
        %v1606 = vpack.c.b16 %v1378, %v1374
        %v1607 = vpack.c.b16 %v1379, %v1375
        %v1608 = vpack.c.b16 %v1380, %v1376
        %v1609 = vpack.c.b16 %v1381, %v1377
        %v1610 = vpack.c.b16 %v1386, %v1382
        %v1611 = vpack.c.b16 %v1387, %v1383
        %v1612 = vpack.c.b16 %v1388, %v1384
        %v1613 = vpack.c.b16 %v1389, %v1385
        %1838 = vmatprep.subr.bf16.mxu0 %v1391
        %1839 = vmatpush1.bf16.msra.mxu0 %v1390
        %1840 = vmatprep.subr.bf16.mxu0 %v1395
        %1841 = vmatpush1.bf16.msra.mxu0 %v1394
        %1842 = vmatprep.subr.bf16.mxu0 %v1399
        %1843 = vmatpush1.bf16.msra.mxu0 %v1398
        %1844 = vmatprep.subr.bf16.mxu0 %v1403
        %1845 = vmatpush1.bf16.msra.mxu0 %v1402
        %1846 = vmatprep.subr.bf16.mxu0 %v1407
        %1847 = vmatpush1.bf16.msra.mxu0 %v1406
        %1848 = vmatprep.subr.bf16.mxu0 %v1411
        %1849 = vmatpush1.bf16.msra.mxu0 %v1410
        %1850 = vmatprep.subr.bf16.mxu0 %v1415
        %1851 = vmatpush1.bf16.msra.mxu0 %v1414
        %1852 = vmatprep.subr.bf16.mxu0 %v1419
        %1853 = vmatpush1.bf16.msra.mxu0 %v1418
        %1854 = vmatprep.subr.bf16.mxu0 %v1423
        %1855 = vmatpush1.bf16.msra.mxu0 %v1422
        %1856 = vmatprep.subr.bf16.mxu0 %v1427
        %1857 = vmatpush1.bf16.msra.mxu0 %v1426
        %1858 = vmatprep.subr.bf16.mxu0 %v1431
        %1859 = vmatpush1.bf16.msra.mxu0 %v1430
        %1860 = vmatprep.subr.bf16.mxu0 %v1435
        %1861 = vmatpush1.bf16.msra.mxu0 %v1434
        %1862 = vmatprep.subr.bf16.mxu0 %v1439
        %1863 = vmatpush1.bf16.msra.mxu0 %v1438
        %1864 = vmatprep.subr.bf16.mxu0 %v1443
        %1865 = vmatpush1.bf16.msra.mxu0 %v1442
        %1866 = vmatprep.subr.bf16.mxu0 %v1447
        %1867 = vmatpush1.bf16.msra.mxu0 %v1446
        %1868 = vmatprep.subr.bf16.mxu0 %v1451
        %1869 = vmatpush1.bf16.msra.mxu0 %v1450
        %1870 = vmatprep.mubr.bf16.mxu0 %v705
        %1871 = vmatmul.mubr.bf16.gmra.mrb[0].mxu0 %v704
        %v1872 = vpop.f32.mrb[0].mxu0
        %v1873 = vadd.f32 %v665, %v1872
        %v1874 = vpop.f32.mrb[0].mxu0
        %v1875 = vadd.f32 %v669, %v1874
        %v1876 = vpop.f32.mrb[0].mxu0
        %v1877 = vadd.f32 %v665, %v1876
        %v1878 = vpop.f32.mrb[0].mxu0
        %v1879 = vadd.f32 %v669, %v1878
        %1880 = vdwg.mxu0
        %1881 = vmatprep.subr.bf16.mxu0 %v1455
        %1882 = vmatpush1.bf16.msra.mxu0 %v1454
        %1883 = vmatprep.subr.bf16.mxu0 %v1459
        %1884 = vmatpush1.bf16.msra.mxu0 %v1458
        %1885 = vmatprep.subr.bf16.mxu0 %v1463
        %1886 = vmatpush1.bf16.msra.mxu0 %v1462
        %1887 = vmatprep.subr.bf16.mxu0 %v1467
        %1888 = vmatpush1.bf16.msra.mxu0 %v1466
        %1889 = vmatprep.subr.bf16.mxu0 %v1471
        %1890 = vmatpush1.bf16.msra.mxu0 %v1470
        %1891 = vmatprep.subr.bf16.mxu0 %v1475
        %1892 = vmatpush1.bf16.msra.mxu0 %v1474
        %1893 = vmatprep.subr.bf16.mxu0 %v1479
        %1894 = vmatpush1.bf16.msra.mxu0 %v1478
        %1895 = vmatprep.subr.bf16.mxu0 %v1483
        %1896 = vmatpush1.bf16.msra.mxu0 %v1482
        %1897 = vmatprep.subr.bf16.mxu0 %v1487
        %1898 = vmatpush1.bf16.msra.mxu0 %v1486
        %1899 = vmatprep.subr.bf16.mxu0 %v1491
        %1900 = vmatpush1.bf16.msra.mxu0 %v1490
        %1901 = vmatprep.subr.bf16.mxu0 %v1495
        %1902 = vmatpush1.bf16.msra.mxu0 %v1494
        %1903 = vmatprep.subr.bf16.mxu0 %v1499
        %1904 = vmatpush1.bf16.msra.mxu0 %v1498
        %1905 = vmatprep.subr.bf16.mxu0 %v1503
        %1906 = vmatpush1.bf16.msra.mxu0 %v1502
        %1907 = vmatprep.subr.bf16.mxu0 %v1507
        %1908 = vmatpush1.bf16.msra.mxu0 %v1506
        %1909 = vmatprep.subr.bf16.mxu0 %v1511
        %1910 = vmatpush1.bf16.msra.mxu0 %v1510
        %1911 = vmatprep.subr.bf16.mxu0 %v1515
        %1912 = vmatpush1.bf16.msra.mxu0 %v1514
        %1913 = vmatprep.mubr.bf16.mxu0 %v707
        %1914 = vmatmul.mubr.bf16.gmra.mrb[0].mxu0 %v706
        %v1915 = vpop.f32.mrb[0].mxu0
        %v1916 = vadd.f32 %v1873, %v1915
        %v1917 = vpop.f32.mrb[0].mxu0
        %v1918 = vadd.f32 %v1875, %v1917
        %v1919 = vpop.f32.mrb[0].mxu0
        %v1920 = vadd.f32 %v1877, %v1919
        %v1921 = vpop.f32.mrb[0].mxu0
        %v1922 = vadd.f32 %v1879, %v1921
        %1923 = vdwg.mxu0
        %1924 = vmatprep.subr.bf16.mxu0 %v1519
        %1925 = vmatpush1.bf16.msra.mxu0 %v1518
        %1926 = vmatprep.subr.bf16.mxu0 %v1523
        %1927 = vmatpush1.bf16.msra.mxu0 %v1522
        %1928 = vmatprep.subr.bf16.mxu0 %v1527
        %1929 = vmatpush1.bf16.msra.mxu0 %v1526
        %1930 = vmatprep.subr.bf16.mxu0 %v1531
        %1931 = vmatpush1.bf16.msra.mxu0 %v1530
        %1932 = vmatprep.subr.bf16.mxu0 %v1535
        %1933 = vmatpush1.bf16.msra.mxu0 %v1534
        %1934 = vmatprep.subr.bf16.mxu0 %v1539
        %1935 = vmatpush1.bf16.msra.mxu0 %v1538
        %1936 = vmatprep.subr.bf16.mxu0 %v1543
        %1937 = vmatpush1.bf16.msra.mxu0 %v1542
        %1938 = vmatprep.subr.bf16.mxu0 %v1547
        %1939 = vmatpush1.bf16.msra.mxu0 %v1546
        %1940 = vmatprep.subr.bf16.mxu0 %v1551
        %1941 = vmatpush1.bf16.msra.mxu0 %v1550
        %1942 = vmatprep.subr.bf16.mxu0 %v1555
        %1943 = vmatpush1.bf16.msra.mxu0 %v1554
        %1944 = vmatprep.subr.bf16.mxu0 %v1559
        %1945 = vmatpush1.bf16.msra.mxu0 %v1558
        %1946 = vmatprep.subr.bf16.mxu0 %v1563
        %1947 = vmatpush1.bf16.msra.mxu0 %v1562
        %1948 = vmatprep.subr.bf16.mxu0 %v1567
        %1949 = vmatpush1.bf16.msra.mxu0 %v1566
        %1950 = vmatprep.subr.bf16.mxu0 %v1571
        %1951 = vmatpush1.bf16.msra.mxu0 %v1570
        %1952 = vmatprep.subr.bf16.mxu0 %v1575
        %1953 = vmatpush1.bf16.msra.mxu0 %v1574
        %1954 = vmatprep.subr.bf16.mxu0 %v1579
        %1955 = vmatpush1.bf16.msra.mxu0 %v1578
        %1956 = vmatprep.mubr.bf16.mxu0 %v709
        %1957 = vmatmul.mubr.bf16.gmra.mrb[0].mxu0 %v708
        %v1958 = vpop.f32.mrb[0].mxu0
        %v1959 = vadd.f32 %v1916, %v1958
        %v1960 = vpop.f32.mrb[0].mxu0
        %v1961 = vadd.f32 %v1918, %v1960
        %v1962 = vpop.f32.mrb[0].mxu0
        %v1963 = vadd.f32 %v1920, %v1962
        %v1964 = vpop.f32.mrb[0].mxu0
        %v1965 = vadd.f32 %v1922, %v1964
        %1966 = vdwg.mxu0
        %1967 = vmatprep.subr.bf16.mxu0 %v1583
        %1968 = vmatpush1.bf16.msra.mxu0 %v1582
        %1969 = vmatprep.subr.bf16.mxu0 %v1587
        %1970 = vmatpush1.bf16.msra.mxu0 %v1586
        %1971 = vmatprep.subr.bf16.mxu0 %v1591
        %1972 = vmatpush1.bf16.msra.mxu0 %v1590
        %1973 = vmatprep.subr.bf16.mxu0 %v1595
        %1974 = vmatpush1.bf16.msra.mxu0 %v1594
        %1975 = vmatprep.subr.bf16.mxu0 %v1599
        %1976 = vmatpush1.bf16.msra.mxu0 %v1598
        %1977 = vmatprep.subr.bf16.mxu0 %v1603
        %1978 = vmatpush1.bf16.msra.mxu0 %v1602
        %1979 = vmatprep.subr.bf16.mxu0 %v1607
        %1980 = vmatpush1.bf16.msra.mxu0 %v1606
        %1981 = vmatprep.subr.bf16.mxu0 %v1611
        %1982 = vmatpush1.bf16.msra.mxu0 %v1610
        %1983 = vmatprep.subr.bf16.mxu0 0
        %1984 = vmatpush1.bf16.msra.mxu0 0
        %1985 = vmatprep.subr.bf16.mxu0 0
        %1986 = vmatpush1.bf16.msra.mxu0 0
        %1987 = vmatprep.subr.bf16.mxu0 0
        %1988 = vmatpush1.bf16.msra.mxu0 0
        %1989 = vmatprep.subr.bf16.mxu0 0
        %1990 = vmatpush1.bf16.msra.mxu0 0
        %1991 = vmatprep.subr.bf16.mxu0 0
        %1992 = vmatpush1.bf16.msra.mxu0 0
        %1993 = vmatprep.subr.bf16.mxu0 0
        %1994 = vmatpush1.bf16.msra.mxu0 0
        %1995 = vmatprep.subr.bf16.mxu0 0
        %1996 = vmatpush1.bf16.msra.mxu0 0
        %1997 = vmatprep.subr.bf16.mxu0 0
        %1998 = vmatpush1.bf16.msra.mxu0 0
        %1999 = vmatprep.mubr.bf16.mxu0 0
        %2000 = vmatmul.mubr.bf16.gmra.mrb[0].mxu0 %v710
        %v2001 = vpop.f32.mrb[0].mxu0
        %v2002 = vadd.f32 %v1959, %v2001
        %v2003 = vpop.f32.mrb[0].mxu0
        %v2004 = vadd.f32 %v1961, %v2003
        %v2005 = vpop.f32.mrb[0].mxu0
        %v2006 = vadd.f32 %v1963, %v2005
        %v2007 = vpop.f32.mrb[0].mxu0
        %v2008 = vadd.f32 %v1965, %v2007
        %2009 = vdwg.mxu0
        %2010 = vmatprep.subr.bf16.mxu0 %v1393
        %2011 = vmatpush1.bf16.msra.mxu0 %v1392
        %2012 = vmatprep.subr.bf16.mxu0 %v1397
        %2013 = vmatpush1.bf16.msra.mxu0 %v1396
        %2014 = vmatprep.subr.bf16.mxu0 %v1401
        %2015 = vmatpush1.bf16.msra.mxu0 %v1400
        %2016 = vmatprep.subr.bf16.mxu0 %v1405
        %2017 = vmatpush1.bf16.msra.mxu0 %v1404
        %2018 = vmatprep.subr.bf16.mxu0 %v1409
        %2019 = vmatpush1.bf16.msra.mxu0 %v1408
        %2020 = vmatprep.subr.bf16.mxu0 %v1413
        %2021 = vmatpush1.bf16.msra.mxu0 %v1412
        %2022 = vmatprep.subr.bf16.mxu0 %v1417
        %2023 = vmatpush1.bf16.msra.mxu0 %v1416
        %2024 = vmatprep.subr.bf16.mxu0 %v1421
        %2025 = vmatpush1.bf16.msra.mxu0 %v1420
        %2026 = vmatprep.subr.bf16.mxu0 %v1425
        %2027 = vmatpush1.bf16.msra.mxu0 %v1424
        %2028 = vmatprep.subr.bf16.mxu0 %v1429
        %2029 = vmatpush1.bf16.msra.mxu0 %v1428
        %2030 = vmatprep.subr.bf16.mxu0 %v1433
        %2031 = vmatpush1.bf16.msra.mxu0 %v1432
        %2032 = vmatprep.subr.bf16.mxu0 %v1437
        %2033 = vmatpush1.bf16.msra.mxu0 %v1436
        %2034 = vmatprep.subr.bf16.mxu0 %v1441
        %2035 = vmatpush1.bf16.msra.mxu0 %v1440
        %2036 = vmatprep.subr.bf16.mxu0 %v1445
        %2037 = vmatpush1.bf16.msra.mxu0 %v1444
        %2038 = vmatprep.subr.bf16.mxu0 %v1449
        %2039 = vmatpush1.bf16.msra.mxu0 %v1448
        %2040 = vmatprep.subr.bf16.mxu0 %v1453
        %2041 = vmatpush1.bf16.msra.mxu0 %v1452
        %2042 = vmatprep.mubr.bf16.mxu0 %v705
        %2043 = vmatmul.mubr.bf16.gmra.mrb[0].mxu0 %v704
        %v2044 = vpop.f32.mrb[0].mxu0
        %v2045 = vadd.f32 %v673, %v2044
        %v2046 = vpop.f32.mrb[0].mxu0
        %v2047 = vadd.f32 %v677, %v2046
        %v2048 = vpop.f32.mrb[0].mxu0
        %v2049 = vadd.f32 %v673, %v2048
        %v2050 = vpop.f32.mrb[0].mxu0
        %v2051 = vadd.f32 %v677, %v2050
        %2052 = vdwg.mxu0
        %2053 = vmatprep.subr.bf16.mxu0 %v1457
        %2054 = vmatpush1.bf16.msra.mxu0 %v1456
        %2055 = vmatprep.subr.bf16.mxu0 %v1461
        %2056 = vmatpush1.bf16.msra.mxu0 %v1460
        %2057 = vmatprep.subr.bf16.mxu0 %v1465
        %2058 = vmatpush1.bf16.msra.mxu0 %v1464
        %2059 = vmatprep.subr.bf16.mxu0 %v1469
        %2060 = vmatpush1.bf16.msra.mxu0 %v1468
        %2061 = vmatprep.subr.bf16.mxu0 %v1473
        %2062 = vmatpush1.bf16.msra.mxu0 %v1472
        %2063 = vmatprep.subr.bf16.mxu0 %v1477
        %2064 = vmatpush1.bf16.msra.mxu0 %v1476
        %2065 = vmatprep.subr.bf16.mxu0 %v1481
        %2066 = vmatpush1.bf16.msra.mxu0 %v1480
        %2067 = vmatprep.subr.bf16.mxu0 %v1485
        %2068 = vmatpush1.bf16.msra.mxu0 %v1484
        %2069 = vmatprep.subr.bf16.mxu0 %v1489
        %2070 = vmatpush1.bf16.msra.mxu0 %v1488
        %2071 = vmatprep.subr.bf16.mxu0 %v1493
        %2072 = vmatpush1.bf16.msra.mxu0 %v1492
        %2073 = vmatprep.subr.bf16.mxu0 %v1497
        %2074 = vmatpush1.bf16.msra.mxu0 %v1496
        %2075 = vmatprep.subr.bf16.mxu0 %v1501
        %2076 = vmatpush1.bf16.msra.mxu0 %v1500
        %2077 = vmatprep.subr.bf16.mxu0 %v1505
        %2078 = vmatpush1.bf16.msra.mxu0 %v1504
        %2079 = vmatprep.subr.bf16.mxu0 %v1509
        %2080 = vmatpush1.bf16.msra.mxu0 %v1508
        %2081 = vmatprep.subr.bf16.mxu0 %v1513
        %2082 = vmatpush1.bf16.msra.mxu0 %v1512
        %2083 = vmatprep.subr.bf16.mxu0 %v1517
        %2084 = vmatpush1.bf16.msra.mxu0 %v1516
        %2085 = vmatprep.mubr.bf16.mxu0 %v707
        %2086 = vmatmul.mubr.bf16.gmra.mrb[0].mxu0 %v706
        %v2087 = vpop.f32.mrb[0].mxu0
        %v2088 = vadd.f32 %v2045, %v2087
        %v2089 = vpop.f32.mrb[0].mxu0
        %v2090 = vadd.f32 %v2047, %v2089
        %v2091 = vpop.f32.mrb[0].mxu0
        %v2092 = vadd.f32 %v2049, %v2091
        %v2093 = vpop.f32.mrb[0].mxu0
        %v2094 = vadd.f32 %v2051, %v2093
        %2095 = vdwg.mxu0
        %2096 = vmatprep.subr.bf16.mxu0 %v1521
        %2097 = vmatpush1.bf16.msra.mxu0 %v1520
        %2098 = vmatprep.subr.bf16.mxu0 %v1525
        %2099 = vmatpush1.bf16.msra.mxu0 %v1524
        %2100 = vmatprep.subr.bf16.mxu0 %v1529
        %2101 = vmatpush1.bf16.msra.mxu0 %v1528
        %2102 = vmatprep.subr.bf16.mxu0 %v1533
        %2103 = vmatpush1.bf16.msra.mxu0 %v1532
        %2104 = vmatprep.subr.bf16.mxu0 %v1537
        %2105 = vmatpush1.bf16.msra.mxu0 %v1536
        %2106 = vmatprep.subr.bf16.mxu0 %v1541
        %2107 = vmatpush1.bf16.msra.mxu0 %v1540
        %2108 = vmatprep.subr.bf16.mxu0 %v1545
        %2109 = vmatpush1.bf16.msra.mxu0 %v1544
        %2110 = vmatprep.subr.bf16.mxu0 %v1549
        %2111 = vmatpush1.bf16.msra.mxu0 %v1548
        %2112 = vmatprep.subr.bf16.mxu0 %v1553
        %2113 = vmatpush1.bf16.msra.mxu0 %v1552
        %2114 = vmatprep.subr.bf16.mxu0 %v1557
        %2115 = vmatpush1.bf16.msra.mxu0 %v1556
        %2116 = vmatprep.subr.bf16.mxu0 %v1561
        %2117 = vmatpush1.bf16.msra.mxu0 %v1560
        %2118 = vmatprep.subr.bf16.mxu0 %v1565
        %2119 = vmatpush1.bf16.msra.mxu0 %v1564
        %2120 = vmatprep.subr.bf16.mxu0 %v1569
        %2121 = vmatpush1.bf16.msra.mxu0 %v1568
        %2122 = vmatprep.subr.bf16.mxu0 %v1573
        %2123 = vmatpush1.bf16.msra.mxu0 %v1572
        %2124 = vmatprep.subr.bf16.mxu0 %v1577
        %2125 = vmatpush1.bf16.msra.mxu0 %v1576
        %2126 = vmatprep.subr.bf16.mxu0 %v1581
        %2127 = vmatpush1.bf16.msra.mxu0 %v1580
        %2128 = vmatprep.mubr.bf16.mxu0 %v709
        %2129 = vmatmul.mubr.bf16.gmra.mrb[0].mxu0 %v708
        %v2130 = vpop.f32.mrb[0].mxu0
        %v2131 = vadd.f32 %v2088, %v2130
        %v2132 = vpop.f32.mrb[0].mxu0
        %v2133 = vadd.f32 %v2090, %v2132
        %v2134 = vpop.f32.mrb[0].mxu0
        %v2135 = vadd.f32 %v2092, %v2134
        %v2136 = vpop.f32.mrb[0].mxu0
        %v2137 = vadd.f32 %v2094, %v2136
        %2138 = vdwg.mxu0
        %2139 = vmatprep.subr.bf16.mxu0 %v1585
        %2140 = vmatpush1.bf16.msra.mxu0 %v1584
        %2141 = vmatprep.subr.bf16.mxu0 %v1589
        %2142 = vmatpush1.bf16.msra.mxu0 %v1588
        %2143 = vmatprep.subr.bf16.mxu0 %v1593
        %2144 = vmatpush1.bf16.msra.mxu0 %v1592
        %2145 = vmatprep.subr.bf16.mxu0 %v1597
        %2146 = vmatpush1.bf16.msra.mxu0 %v1596
        %2147 = vmatprep.subr.bf16.mxu0 %v1601
        %2148 = vmatpush1.bf16.msra.mxu0 %v1600
        %2149 = vmatprep.subr.bf16.mxu0 %v1605
        %2150 = vmatpush1.bf16.msra.mxu0 %v1604
        %2151 = vmatprep.subr.bf16.mxu0 %v1609
        %2152 = vmatpush1.bf16.msra.mxu0 %v1608
        %2153 = vmatprep.subr.bf16.mxu0 %v1613
        %2154 = vmatpush1.bf16.msra.mxu0 %v1612
        %2155 = vmatprep.subr.bf16.mxu0 0
        %2156 = vmatpush1.bf16.msra.mxu0 0
        %2157 = vmatprep.subr.bf16.mxu0 0
        %2158 = vmatpush1.bf16.msra.mxu0 0
        %2159 = vmatprep.subr.bf16.mxu0 0
        %2160 = vmatpush1.bf16.msra.mxu0 0
        %2161 = vmatprep.subr.bf16.mxu0 0
        %2162 = vmatpush1.bf16.msra.mxu0 0
        %2163 = vmatprep.subr.bf16.mxu0 0
        %2164 = vmatpush1.bf16.msra.mxu0 0
        %2165 = vmatprep.subr.bf16.mxu0 0
        %2166 = vmatpush1.bf16.msra.mxu0 0
        %2167 = vmatprep.subr.bf16.mxu0 0
        %2168 = vmatpush1.bf16.msra.mxu0 0
        %2169 = vmatprep.subr.bf16.mxu0 0
        %2170 = vmatpush1.bf16.msra.mxu0 0
        %2171 = vmatprep.mubr.bf16.mxu0 0
        %2172 = vmatmul.mubr.bf16.gmra.mrb[0].mxu0 %v710
        %v2173 = vpop.f32.mrb[0].mxu0
        %v2174 = vadd.f32 %v2131, %v2173
        %v2175 = vpop.f32.mrb[0].mxu0
        %v2176 = vadd.f32 %v2133, %v2175
        %v2177 = vpop.f32.mrb[0].mxu0
        %v2178 = vadd.f32 %v2135, %v2177
        %v2179 = vpop.f32.mrb[0].mxu0
        %v2180 = vadd.f32 %v2137, %v2179
        %2181 = vdwg.mxu0
        %v2182 = vmax.f32 %v2002, 0.0
        %v2183 = vmax.f32 %v2004, 0.0
        %v2184 = vmax.f32 %v2174, 0.0
        %v2185 = vmax.f32 %v2176, 0.0
        %v2186 = vmax.f32 %v2006, 0.0
        %v2187 = vmax.f32 %v2008, 0.0
        %v2188 = vmax.f32 %v2178, 0.0
        %v2189 = vmax.f32 %v2180, 0.0
        %v2190 = vpack.c.bf16 %v2186, %v2182
        %v2191 = vpack.c.bf16 %v2187, %v2183
        %v2192 = vpack.c.bf16 %v2188, %v2184
        %v2193 = vpack.c.bf16 %v2189, %v2185
        %v2194 = vld [vmem:[%s4] sm:$0xf]
        %v2195 = vld [vmem:[%s4 + $0x4] sm:$0xf]
        %v2196 = vld [vmem:[%s4 + $0x8] sm:$0xf]
        %v2197 = vld [vmem:[%s4 + $0xc] sm:$0xf]
        %v2198 = vld [vmem:[%s4 + $0x10] sm:$0xf]
        %v2199 = vld [vmem:[%s4 + $0x14] sm:$0xf]
        %v2200 = vld [vmem:[%s4 + $0x18] sm:$0xf]
        %v2201 = vld [vmem:[%s4 + $0x1c] sm:$0xf]
        %v2202 = vld [vmem:[%s4 + $0x20] sm:$0xf]
        %v2203 = vld [vmem:[%s4 + $0x24] sm:$0xf]
        %v2204 = vld [vmem:[%s4 + $0x28] sm:$0xf]
        %v2205 = vld [vmem:[%s4 + $0x2c] sm:$0xf]
        %v2206 = vld [vmem:[%s4 + $0x30] sm:$0xf]
        %v2207 = vld [vmem:[%s4 + $0x34] sm:$0xf]
        %v2208 = vld [vmem:[%s4 + $0x38] sm:$0xf]
        %v2209 = vld [vmem:[%s4 + $0x3c] sm:$0xf]
        %v2210 = vld [vmem:[%s4 + $0x40] sm:$0xf]
        %v2211 = vld [vmem:[%s4 + $0x44] sm:$0xf]
        %v2212 = vld [vmem:[%s4 + $0x48] sm:$0xf]
        %v2213 = vld [vmem:[%s4 + $0x4c] sm:$0xf]
        %v2214 = vld [vmem:[%s4 + $0x50] sm:$0xf]
        %v2215 = vld [vmem:[%s4 + $0x54] sm:$0xf]
        %v2216 = vld [vmem:[%s4 + $0x58] sm:$0xf]
        %v2217 = vld [vmem:[%s4 + $0x5c] sm:$0xf]
        %v2218 = vld [vmem:[%s4 + $0x60] sm:$0xf]
        %v2219 = vld [vmem:[%s4 + $0x64] sm:$0xf]
        %v2220 = vld [vmem:[%s4 + $0x68] sm:$0xf]
        %v2221 = vld [vmem:[%s4 + $0x6c] sm:$0xf]
        %v2222 = vld [vmem:[%s4 + $0x70] sm:$0xf]
        %v2223 = vld [vmem:[%s4 + $0x74] sm:$0xf]
        %v2224 = vld [vmem:[%s4 + $0x78] sm:$0xf]
        %v2225 = vld [vmem:[%s4 + $0x7c] sm:$0xf]
        %v2226 = vld [vmem:[%s4 + $0x80] sm:$0xf]
        %v2227 = vld [vmem:[%s4 + $0x84] sm:$0xf]
        %v2228 = vld [vmem:[%s4 + $0x88] sm:$0xf]
        %v2229 = vld [vmem:[%s4 + $0x8c] sm:$0xf]
        %v2230 = vld [vmem:[%s4 + $0x90] sm:$0xf]
        %v2231 = vld [vmem:[%s4 + $0x94] sm:$0xf]
        %v2232 = vld [vmem:[%s4 + $0x98] sm:$0xf]
        %v2233 = vld [vmem:[%s4 + $0x9c] sm:$0xf]
        %v2234 = vld [vmem:[%s4 + $0xa0] sm:$0xf]
        %v2235 = vld [vmem:[%s4 + $0xa4] sm:$0xf]
        %v2236 = vld [vmem:[%s4 + $0xa8] sm:$0xf]
        %v2237 = vld [vmem:[%s4 + $0xac] sm:$0xf]
        %v2238 = vld [vmem:[%s4 + $0xb0] sm:$0xf]
        %v2239 = vld [vmem:[%s4 + $0xb4] sm:$0xf]
        %v2240 = vld [vmem:[%s4 + $0xb8] sm:$0xf]
        %v2241 = vld [vmem:[%s4 + $0xbc] sm:$0xf]
        %v2242 = vld [vmem:[%s4 + $0xc0] sm:$0xf]
        %v2243 = vld [vmem:[%s4 + $0xc4] sm:$0xf]
        %v2244 = vld [vmem:[%s5] sm:$0x1]
        %v2246 = vlaneseq
        %v2247 = vshrl.u32 %v2246, 7
        %v2248 = vsub.s32 0, %v2247
        %v2249 = vrot.slane %v2244, %v2248
        %v2301 = vunpack.c.l.b16 %v2194
        %v2302 = vunpack.c.l.b16 %v2195
        %v2303 = vunpack.c.l.b16 %v2196
        %v2304 = vunpack.c.l.b16 %v2197
        %v2305 = vunpack.c.l.b16 %v2198
        %v2306 = vunpack.c.l.b16 %v2199
        %v2307 = vunpack.c.l.b16 %v2200
        %v2308 = vunpack.c.l.b16 %v2201
        %v2309 = vunpack.c.l.b16 %v2202
        %v2310 = vunpack.c.l.b16 %v2203
        %v2311 = vunpack.c.l.b16 %v2204
        %v2312 = vunpack.c.l.b16 %v2205
        %v2313 = vunpack.c.l.b16 %v2206
        %v2314 = vunpack.c.l.b16 %v2207
        %v2315 = vunpack.c.l.b16 %v2208
        %v2316 = vunpack.c.l.b16 %v2209
        %v2317 = vunpack.c.l.b16 %v2210
        %v2318 = vunpack.c.l.b16 %v2211
        %v2319 = vunpack.c.l.b16 %v2212
        %v2320 = vunpack.c.l.b16 %v2213
        %v2321 = vunpack.c.l.b16 %v2214
        %v2322 = vunpack.c.l.b16 %v2215
        %v2323 = vunpack.c.l.b16 %v2216
        %v2324 = vunpack.c.l.b16 %v2217
        %v2325 = vunpack.c.l.b16 %v2218
        %v2326 = vunpack.c.l.b16 %v2219
        %v2327 = vunpack.c.l.b16 %v2220
        %v2328 = vunpack.c.l.b16 %v2221
        %v2329 = vunpack.c.l.b16 %v2222
        %v2330 = vunpack.c.l.b16 %v2223
        %v2331 = vunpack.c.l.b16 %v2224
        %v2332 = vunpack.c.l.b16 %v2225
        %v2333 = vunpack.c.l.b16 %v2226
        %v2334 = vunpack.c.l.b16 %v2227
        %v2335 = vunpack.c.l.b16 %v2228
        %v2336 = vunpack.c.l.b16 %v2229
        %v2337 = vunpack.c.l.b16 %v2230
        %v2338 = vunpack.c.l.b16 %v2231
        %v2339 = vunpack.c.l.b16 %v2232
        %v2340 = vunpack.c.l.b16 %v2233
        %v2341 = vunpack.c.l.b16 %v2234
        %v2342 = vunpack.c.l.b16 %v2235
        %v2343 = vunpack.c.l.b16 %v2236
        %v2344 = vunpack.c.l.b16 %v2237
        %v2345 = vunpack.c.l.b16 %v2238
        %v2346 = vunpack.c.l.b16 %v2239
        %v2347 = vunpack.c.l.b16 %v2240
        %v2348 = vunpack.c.l.b16 %v2241
        %v2349 = vunpack.c.l.b16 %v2242
        %v2350 = vunpack.c.l.b16 %v2243
        %v2351 = vpack.c.b16 %v2302, %v2301
        %v2352 = vpack.c.b16 %v2304, %v2303
        %v2353 = vpack.c.b16 %v2306, %v2305
        %v2354 = vpack.c.b16 %v2308, %v2307
        %v2355 = vpack.c.b16 %v2310, %v2309
        %v2356 = vpack.c.b16 %v2312, %v2311
        %v2357 = vpack.c.b16 %v2314, %v2313
        %v2358 = vpack.c.b16 %v2316, %v2315
        %v2359 = vpack.c.b16 %v2318, %v2317
        %v2360 = vpack.c.b16 %v2320, %v2319
        %v2361 = vpack.c.b16 %v2322, %v2321
        %v2362 = vpack.c.b16 %v2324, %v2323
        %v2363 = vpack.c.b16 %v2326, %v2325
        %v2364 = vpack.c.b16 %v2328, %v2327
        %v2365 = vpack.c.b16 %v2330, %v2329
        %v2366 = vpack.c.b16 %v2332, %v2331
        %v2367 = vpack.c.b16 %v2334, %v2333
        %v2368 = vpack.c.b16 %v2336, %v2335
        %v2369 = vpack.c.b16 %v2338, %v2337
        %v2370 = vpack.c.b16 %v2340, %v2339
        %v2371 = vpack.c.b16 %v2342, %v2341
        %v2372 = vpack.c.b16 %v2344, %v2343
        %v2373 = vpack.c.b16 %v2346, %v2345
        %v2374 = vpack.c.b16 %v2348, %v2347
        %v2375 = vpack.c.b16 %v2350, %v2349
        %vm2401 = vcmask 130048
        %v2403 = vsel %vm2401, %v2193, 0
        %2405 = vmatprep.subr.bf16.mxu0 0
        %2406 = vmatpush1.bf16.msra.mxu0 %v2351
        %2407 = vmatprep.subr.bf16.mxu0 0
        %2408 = vmatpush1.bf16.msra.mxu0 %v2352
        %2409 = vmatprep.subr.bf16.mxu0 0
        %2410 = vmatpush1.bf16.msra.mxu0 %v2353
        %2411 = vmatprep.subr.bf16.mxu0 0
        %2412 = vmatpush1.bf16.msra.mxu0 %v2354
        %2413 = vmatprep.subr.bf16.mxu0 0
        %2414 = vmatpush1.bf16.msra.mxu0 %v2355
        %2415 = vmatprep.subr.bf16.mxu0 0
        %2416 = vmatpush1.bf16.msra.mxu0 %v2356
        %2417 = vmatprep.subr.bf16.mxu0 0
        %2418 = vmatpush1.bf16.msra.mxu0 %v2357
        %2419 = vmatprep.subr.bf16.mxu0 0
        %2420 = vmatpush1.bf16.msra.mxu0 %v2358
        %2421 = vmatprep.subr.bf16.mxu0 0
        %2422 = vmatpush1.bf16.msra.mxu0 %v2359
        %2423 = vmatprep.subr.bf16.mxu0 0
        %2424 = vmatpush1.bf16.msra.mxu0 %v2360
        %2425 = vmatprep.subr.bf16.mxu0 0
        %2426 = vmatpush1.bf16.msra.mxu0 %v2361
        %2427 = vmatprep.subr.bf16.mxu0 0
        %2428 = vmatpush1.bf16.msra.mxu0 %v2362
        %2429 = vmatprep.subr.bf16.mxu0 0
        %2430 = vmatpush1.bf16.msra.mxu0 %v2363
        %2431 = vmatprep.subr.bf16.mxu0 0
        %2432 = vmatpush1.bf16.msra.mxu0 %v2364
        %2433 = vmatprep.subr.bf16.mxu0 0
        %2434 = vmatpush1.bf16.msra.mxu0 %v2365
        %2435 = vmatprep.subr.bf16.mxu0 0
        %2436 = vmatpush1.bf16.msra.mxu0 %v2366
        %2437 = vmatprep.mubr.bf16.mxu0 %v2191
        %2438 = vmatmul.mubr.bf16.gmra.mrb[0].mxu0 %v2190
        %v2439 = vpop.f32.mrb[0].mxu0
        %v2440 = vadd.f32 %v2249, %v2439
        %v2441 = vpop.f32.mrb[0].mxu0
        %v2442 = vpop.f32.mrb[0].mxu0
        %v2443 = vadd.f32 %v2249, %v2442
        %v2444 = vpop.f32.mrb[0].mxu0
        %2445 = vdwg.mxu0
        %2446 = vmatprep.subr.bf16.mxu0 0
        %2447 = vmatpush1.bf16.msra.mxu0 %v2367
        %2448 = vmatprep.subr.bf16.mxu0 0
        %2449 = vmatpush1.bf16.msra.mxu0 %v2368
        %2450 = vmatprep.subr.bf16.mxu0 0
        %2451 = vmatpush1.bf16.msra.mxu0 %v2369
        %2452 = vmatprep.subr.bf16.mxu0 0
        %2453 = vmatpush1.bf16.msra.mxu0 %v2370
        %2454 = vmatprep.subr.bf16.mxu0 0
        %2455 = vmatpush1.bf16.msra.mxu0 %v2371
        %2456 = vmatprep.subr.bf16.mxu0 0
        %2457 = vmatpush1.bf16.msra.mxu0 %v2372
        %2458 = vmatprep.subr.bf16.mxu0 0
        %2459 = vmatpush1.bf16.msra.mxu0 %v2373
        %2460 = vmatprep.subr.bf16.mxu0 0
        %2461 = vmatpush1.bf16.msra.mxu0 %v2374
        %2462 = vmatprep.subr.bf16.mxu0 0
        %2463 = vmatpush1.bf16.msra.mxu0 %v2375
        %2464 = vmatprep.subr.bf16.mxu0 0
        %2465 = vmatpush1.bf16.msra.mxu0 0
        %2466 = vmatprep.subr.bf16.mxu0 0
        %2467 = vmatpush1.bf16.msra.mxu0 0
        %2468 = vmatprep.subr.bf16.mxu0 0
        %2469 = vmatpush1.bf16.msra.mxu0 0
        %2470 = vmatprep.subr.bf16.mxu0 0
        %2471 = vmatpush1.bf16.msra.mxu0 0
        %2472 = vmatprep.subr.bf16.mxu0 0
        %2473 = vmatpush1.bf16.msra.mxu0 0
        %2474 = vmatprep.subr.bf16.mxu0 0
        %2475 = vmatpush1.bf16.msra.mxu0 0
        %2476 = vmatprep.subr.bf16.mxu0 0
        %2477 = vmatpush1.bf16.msra.mxu0 0
        %2478 = vmatprep.mubr.bf16.mxu0 %v2403
        %2479 = vmatmul.mubr.bf16.gmra.mrb[0].mxu0 %v2192
        %v2480 = vpop.f32.mrb[0].mxu0
        %v2481 = vadd.f32 %v2440, %v2480
        %v2482 = vpop.f32.mrb[0].mxu0
        %v2483 = vpop.f32.mrb[0].mxu0
        %v2484 = vadd.f32 %v2443, %v2483
        %v2485 = vpop.f32.mrb[0].mxu0
        %2486 = vdwg.mxu0
        %2489 = vrot.lane.b32.xlu0 %v2481, 64
        %v2490 = vpop.permute.xlu0 %2489
        %2491 = vrot.lane.b32.xlu0 %v2484, 64
        %v2492 = vpop.permute.xlu0 %2491
        %v2495 = vmul.f32 %v2490, 0.5
        %v2496 = vmul.f32 %v2492, 0.5
        %v2497 = vmul.f32 %v2495, 1.442695
        %v2498 = vpow.pop %v2497
        %v2499 = vmul.f32 %v2496, 1.442695
        %v2500 = vpow.pop %v2499
        %v2501 = vmul.f32 %v434, %v2498
        %v2502 = vmul.f32 %v435, %v2500
        %v2503 = vadd.f32 %v2481, %v2501
        %v2504 = vadd.f32 %v2484, %v2502
        %v2505 = vpack.c.bf16 %v2504, %v2503
        %v2506 = vld [vmem:[%s6] sm:$0xff]
        %v2507 = vld [vmem:[%s6 + $0x8] sm:$0xff]
        %v2508 = vld [vmem:[%s6 + $0x10] sm:$0xff]
        %v2509 = vld [vmem:[%s6 + $0x18] sm:$0xff]
        %v2510 = vld [vmem:[%s6 + $0x20] sm:$0xff]
        %v2511 = vld [vmem:[%s6 + $0x28] sm:$0xff]
        %v2512 = vld [vmem:[%s6 + $0x30] sm:$0xff]
        %v2513 = vld [vmem:[%s6 + $0x38] sm:$0xff]
        %v2514 = vld [vmem:[%s6 + $0x40] sm:$0xff]
        %v2515 = vld [vmem:[%s6 + $0x48] sm:$0xff]
        %v2516 = vld [vmem:[%s6 + $0x50] sm:$0xff]
        %v2517 = vld [vmem:[%s6 + $0x58] sm:$0xff]
        %v2518 = vld [vmem:[%s6 + $0x60] sm:$0xff]
        %v2519 = vld [vmem:[%s6 + $0x68] sm:$0xff]
        %v2520 = vld [vmem:[%s6 + $0x70] sm:$0xff]
        %v2521 = vld [vmem:[%s6 + $0x78] sm:$0xff]
        %v2522 = vld [vmem:[%s6 + $0x80] sm:$0xff]
        %v2523 = vld [vmem:[%s6 + $0x88] sm:$0xff]
        %v2524 = vld [vmem:[%s6 + $0x90] sm:$0xff]
        %v2525 = vld [vmem:[%s6 + $0x98] sm:$0xff]
        %v2526 = vld [vmem:[%s6 + $0xa0] sm:$0xff]
        %v2527 = vld [vmem:[%s6 + $0xa8] sm:$0xff]
        %v2528 = vld [vmem:[%s6 + $0xb0] sm:$0xff]
        %v2529 = vld [vmem:[%s6 + $0xb8] sm:$0xff]
        %v2530 = vld [vmem:[%s6 + $0xc0] sm:$0xff]
        %v2531 = vld [vmem:[%s6 + $0xc8] sm:$0xff]
        %v2532 = vld [vmem:[%s6 + $0xd0] sm:$0xff]
        %v2533 = vld [vmem:[%s6 + $0xd8] sm:$0xff]
        %v2534 = vld [vmem:[%s6 + $0xe0] sm:$0xff]
        %v2535 = vld [vmem:[%s6 + $0xe8] sm:$0xff]
        %v2536 = vld [vmem:[%s6 + $0xf0] sm:$0xff]
        %v2537 = vld [vmem:[%s6 + $0xf8] sm:$0xff]
        %v2538 = vld [vmem:[%s7] sm:$0xf]
        %v2540 = vlaneseq
        %v2541 = vshrl.u32 %v2540, 7
        %v2542 = vsub.s32 0, %v2541
        %v2543 = vrot.slane %v2538, %v2542
        %v2544 = vlaneseq
        %v2545 = vshrl.u32 %v2544, 7
        %v2546 = vsub.s32 1, %v2545
        %v2547 = vrot.slane %v2538, %v2546
        %v2548 = vlaneseq
        %v2549 = vshrl.u32 %v2548, 7
        %v2550 = vsub.s32 2, %v2549
        %v2551 = vrot.slane %v2538, %v2550
        %v2552 = vlaneseq
        %v2553 = vshrl.u32 %v2552, 7
        %v2554 = vsub.s32 3, %v2553
        %v2555 = vrot.slane %v2538, %v2554
        %v2592 = vunpack.c.l.b16 %v2506
        %v2593 = vunpack.c.h.b16 %v2506
        %v2594 = vunpack.c.l.b16 %v2507
        %v2595 = vunpack.c.h.b16 %v2507
        %v2596 = vunpack.c.l.b16 %v2508
        %v2597 = vunpack.c.h.b16 %v2508
        %v2598 = vunpack.c.l.b16 %v2509
        %v2599 = vunpack.c.h.b16 %v2509
        %v2600 = vunpack.c.l.b16 %v2510
        %v2601 = vunpack.c.h.b16 %v2510
        %v2602 = vunpack.c.l.b16 %v2511
        %v2603 = vunpack.c.h.b16 %v2511
        %v2604 = vunpack.c.l.b16 %v2512
        %v2605 = vunpack.c.h.b16 %v2512
        %v2606 = vunpack.c.l.b16 %v2513
        %v2607 = vunpack.c.h.b16 %v2513
        %v2608 = vunpack.c.l.b16 %v2514
        %v2609 = vunpack.c.h.b16 %v2514
        %v2610 = vunpack.c.l.b16 %v2515
        %v2611 = vunpack.c.h.b16 %v2515
        %v2612 = vunpack.c.l.b16 %v2516
        %v2613 = vunpack.c.h.b16 %v2516
        %v2614 = vunpack.c.l.b16 %v2517
        %v2615 = vunpack.c.h.b16 %v2517
        %v2616 = vunpack.c.l.b16 %v2518
        %v2617 = vunpack.c.h.b16 %v2518
        %v2618 = vunpack.c.l.b16 %v2519
        %v2619 = vunpack.c.h.b16 %v2519
        %v2620 = vunpack.c.l.b16 %v2520
        %v2621 = vunpack.c.h.b16 %v2520
        %v2622 = vunpack.c.l.b16 %v2521
        %v2623 = vunpack.c.h.b16 %v2521
        %v2624 = vunpack.c.l.b16 %v2522
        %v2625 = vunpack.c.h.b16 %v2522
        %v2626 = vunpack.c.l.b16 %v2523
        %v2627 = vunpack.c.h.b16 %v2523
        %v2628 = vunpack.c.l.b16 %v2524
        %v2629 = vunpack.c.h.b16 %v2524
        %v2630 = vunpack.c.l.b16 %v2525
        %v2631 = vunpack.c.h.b16 %v2525
        %v2632 = vunpack.c.l.b16 %v2526
        %v2633 = vunpack.c.h.b16 %v2526
        %v2634 = vunpack.c.l.b16 %v2527
        %v2635 = vunpack.c.h.b16 %v2527
        %v2636 = vunpack.c.l.b16 %v2528
        %v2637 = vunpack.c.h.b16 %v2528
        %v2638 = vunpack.c.l.b16 %v2529
        %v2639 = vunpack.c.h.b16 %v2529
        %v2640 = vunpack.c.l.b16 %v2530
        %v2641 = vunpack.c.h.b16 %v2530
        %v2642 = vunpack.c.l.b16 %v2531
        %v2643 = vunpack.c.h.b16 %v2531
        %v2644 = vunpack.c.l.b16 %v2532
        %v2645 = vunpack.c.h.b16 %v2532
        %v2646 = vunpack.c.l.b16 %v2533
        %v2647 = vunpack.c.h.b16 %v2533
        %v2648 = vunpack.c.l.b16 %v2534
        %v2649 = vunpack.c.h.b16 %v2534
        %v2650 = vunpack.c.l.b16 %v2535
        %v2651 = vunpack.c.h.b16 %v2535
        %v2652 = vunpack.c.l.b16 %v2536
        %v2653 = vunpack.c.h.b16 %v2536
        %v2654 = vunpack.c.l.b16 %v2537
        %v2655 = vunpack.c.h.b16 %v2537
        %v2656 = vpack.c.b16 %v2596, %v2592
        %v2657 = vpack.c.b16 %v2597, %v2593
        %v2658 = vpack.c.b16 %v2598, %v2594
        %v2659 = vpack.c.b16 %v2599, %v2595
        %v2660 = vpack.c.b16 %v2604, %v2600
        %v2661 = vpack.c.b16 %v2605, %v2601
        %v2662 = vpack.c.b16 %v2606, %v2602
        %v2663 = vpack.c.b16 %v2607, %v2603
        %v2664 = vpack.c.b16 %v2612, %v2608
        %v2665 = vpack.c.b16 %v2613, %v2609
        %v2666 = vpack.c.b16 %v2614, %v2610
        %v2667 = vpack.c.b16 %v2615, %v2611
        %v2668 = vpack.c.b16 %v2620, %v2616
        %v2669 = vpack.c.b16 %v2621, %v2617
        %v2670 = vpack.c.b16 %v2622, %v2618
        %v2671 = vpack.c.b16 %v2623, %v2619
        %v2672 = vpack.c.b16 %v2628, %v2624
        %v2673 = vpack.c.b16 %v2629, %v2625
        %v2674 = vpack.c.b16 %v2630, %v2626
        %v2675 = vpack.c.b16 %v2631, %v2627
        %v2676 = vpack.c.b16 %v2636, %v2632
        %v2677 = vpack.c.b16 %v2637, %v2633
        %v2678 = vpack.c.b16 %v2638, %v2634
        %v2679 = vpack.c.b16 %v2639, %v2635
        %v2680 = vpack.c.b16 %v2644, %v2640
        %v2681 = vpack.c.b16 %v2645, %v2641
        %v2682 = vpack.c.b16 %v2646, %v2642
        %v2683 = vpack.c.b16 %v2647, %v2643
        %v2684 = vpack.c.b16 %v2652, %v2648
        %v2685 = vpack.c.b16 %v2653, %v2649
        %v2686 = vpack.c.b16 %v2654, %v2650
        %v2687 = vpack.c.b16 %v2655, %v2651
        %2720 = vmatprep.subr.bf16.mxu0 %v2657
        %2721 = vmatpush1.bf16.msra.mxu0 %v2656
        %2722 = vmatprep.subr.bf16.mxu0 %v2661
        %2723 = vmatpush1.bf16.msra.mxu0 %v2660
        %2724 = vmatprep.subr.bf16.mxu0 %v2665
        %2725 = vmatpush1.bf16.msra.mxu0 %v2664
        %2726 = vmatprep.subr.bf16.mxu0 %v2669
        %2727 = vmatpush1.bf16.msra.mxu0 %v2668
        %2728 = vmatprep.subr.bf16.mxu0 %v2673
        %2729 = vmatpush1.bf16.msra.mxu0 %v2672
        %2730 = vmatprep.subr.bf16.mxu0 %v2677
        %2731 = vmatpush1.bf16.msra.mxu0 %v2676
        %2732 = vmatprep.subr.bf16.mxu0 %v2681
        %2733 = vmatpush1.bf16.msra.mxu0 %v2680
        %2734 = vmatprep.subr.bf16.mxu0 %v2685
        %2735 = vmatpush1.bf16.msra.mxu0 %v2684
        %2736 = vmatprep.subr.bf16.mxu0 0
        %2737 = vmatpush1.bf16.msra.mxu0 0
        %2738 = vmatprep.subr.bf16.mxu0 0
        %2739 = vmatpush1.bf16.msra.mxu0 0
        %2740 = vmatprep.subr.bf16.mxu0 0
        %2741 = vmatpush1.bf16.msra.mxu0 0
        %2742 = vmatprep.subr.bf16.mxu0 0
        %2743 = vmatpush1.bf16.msra.mxu0 0
        %2744 = vmatprep.subr.bf16.mxu0 0
        %2745 = vmatpush1.bf16.msra.mxu0 0
        %2746 = vmatprep.subr.bf16.mxu0 0
        %2747 = vmatpush1.bf16.msra.mxu0 0
        %2748 = vmatprep.subr.bf16.mxu0 0
        %2749 = vmatpush1.bf16.msra.mxu0 0
        %2750 = vmatprep.subr.bf16.mxu0 0
        %2751 = vmatpush1.bf16.msra.mxu0 0
        %2752 = vmatprep.mubr.bf16.mxu0 0
        %2753 = vmatmul.mubr.bf16.gmra.mrb[0].mxu0 %v2505
        %v2754 = vpop.f32.mrb[0].mxu0
        %v2755 = vadd.f32 %v2543, %v2754
        %v2756 = vpop.f32.mrb[0].mxu0
        %v2757 = vadd.f32 %v2547, %v2756
        %v2758 = vpop.f32.mrb[0].mxu0
        %v2759 = vadd.f32 %v2543, %v2758
        %v2760 = vpop.f32.mrb[0].mxu0
        %v2761 = vadd.f32 %v2547, %v2760
        %2762 = vdwg.mxu0
        %2763 = vmatprep.subr.bf16.mxu0 %v2659
        %2764 = vmatpush1.bf16.msra.mxu0 %v2658
        %2765 = vmatprep.subr.bf16.mxu0 %v2663
        %2766 = vmatpush1.bf16.msra.mxu0 %v2662
        %2767 = vmatprep.subr.bf16.mxu0 %v2667
        %2768 = vmatpush1.bf16.msra.mxu0 %v2666
        %2769 = vmatprep.subr.bf16.mxu0 %v2671
        %2770 = vmatpush1.bf16.msra.mxu0 %v2670
        %2771 = vmatprep.subr.bf16.mxu0 %v2675
        %2772 = vmatpush1.bf16.msra.mxu0 %v2674
        %2773 = vmatprep.subr.bf16.mxu0 %v2679
        %2774 = vmatpush1.bf16.msra.mxu0 %v2678
        %2775 = vmatprep.subr.bf16.mxu0 %v2683
        %2776 = vmatpush1.bf16.msra.mxu0 %v2682
        %2777 = vmatprep.subr.bf16.mxu0 %v2687
        %2778 = vmatpush1.bf16.msra.mxu0 %v2686
        %2779 = vmatprep.subr.bf16.mxu0 0
        %2780 = vmatpush1.bf16.msra.mxu0 0
        %2781 = vmatprep.subr.bf16.mxu0 0
        %2782 = vmatpush1.bf16.msra.mxu0 0
        %2783 = vmatprep.subr.bf16.mxu0 0
        %2784 = vmatpush1.bf16.msra.mxu0 0
        %2785 = vmatprep.subr.bf16.mxu0 0
        %2786 = vmatpush1.bf16.msra.mxu0 0
        %2787 = vmatprep.subr.bf16.mxu0 0
        %2788 = vmatpush1.bf16.msra.mxu0 0
        %2789 = vmatprep.subr.bf16.mxu0 0
        %2790 = vmatpush1.bf16.msra.mxu0 0
        %2791 = vmatprep.subr.bf16.mxu0 0
        %2792 = vmatpush1.bf16.msra.mxu0 0
        %2793 = vmatprep.subr.bf16.mxu0 0
        %2794 = vmatpush1.bf16.msra.mxu0 0
        %2795 = vmatprep.mubr.bf16.mxu0 0
        %2796 = vmatmul.mubr.bf16.gmra.mrb[0].mxu0 %v2505
        %v2797 = vpop.f32.mrb[0].mxu0
        %v2798 = vadd.f32 %v2551, %v2797
        %v2799 = vpop.f32.mrb[0].mxu0
        %v2800 = vadd.f32 %v2555, %v2799
        %v2801 = vpop.f32.mrb[0].mxu0
        %v2802 = vadd.f32 %v2551, %v2801
        %v2803 = vpop.f32.mrb[0].mxu0
        %v2804 = vadd.f32 %v2555, %v2803
        %2805 = vdwg.mxu0
        %v2806 = vmax.f32 %v2755, 0.0
        %v2807 = vmax.f32 %v2757, 0.0
        %v2808 = vmax.f32 %v2798, 0.0
        %v2809 = vmax.f32 %v2800, 0.0
        %v2810 = vmax.f32 %v2759, 0.0
        %v2811 = vmax.f32 %v2761, 0.0
        %v2812 = vmax.f32 %v2802, 0.0
        %v2813 = vmax.f32 %v2804, 0.0
        %v2814 = vpack.c.bf16 %v2810, %v2806
        %v2815 = vpack.c.bf16 %v2811, %v2807
        %v2816 = vpack.c.bf16 %v2812, %v2808
        %v2817 = vpack.c.bf16 %v2813, %v2809
        %v2818 = vld [vmem:[%s8] sm:$0xff]
        %v2819 = vld [vmem:[%s8 + $0x8] sm:$0xff]
        %v2820 = vld [vmem:[%s8 + $0x10] sm:$0xff]
        %v2821 = vld [vmem:[%s8 + $0x18] sm:$0xf]
        %v2822 = vld [vmem:[%s8 + $0x1c] sm:$0xff]
        %v2823 = vld [vmem:[%s8 + $0x24] sm:$0xff]
        %v2824 = vld [vmem:[%s8 + $0x2c] sm:$0xff]
        %v2825 = vld [vmem:[%s8 + $0x34] sm:$0xf]
        %v2826 = vld [vmem:[%s8 + $0x38] sm:$0xff]
        %v2827 = vld [vmem:[%s8 + $0x40] sm:$0xff]
        %v2828 = vld [vmem:[%s8 + $0x48] sm:$0xff]
        %v2829 = vld [vmem:[%s8 + $0x50] sm:$0xf]
        %v2830 = vld [vmem:[%s8 + $0x54] sm:$0xff]
        %v2831 = vld [vmem:[%s8 + $0x5c] sm:$0xff]
        %v2832 = vld [vmem:[%s8 + $0x64] sm:$0xff]
        %v2833 = vld [vmem:[%s8 + $0x6c] sm:$0xf]
        %v2834 = vld [vmem:[%s8 + $0x70] sm:$0xff]
        %v2835 = vld [vmem:[%s8 + $0x78] sm:$0xff]
        %v2836 = vld [vmem:[%s8 + $0x80] sm:$0xff]
        %v2837 = vld [vmem:[%s8 + $0x88] sm:$0xf]
        %v2838 = vld [vmem:[%s8 + $0x8c] sm:$0xff]
        %v2839 = vld [vmem:[%s8 + $0x94] sm:$0xff]
        %v2840 = vld [vmem:[%s8 + $0x9c] sm:$0xff]
        %v2841 = vld [vmem:[%s8 + $0xa4] sm:$0xf]
        %v2842 = vld [vmem:[%s8 + $0xa8] sm:$0xff]
        %v2843 = vld [vmem:[%s8 + $0xb0] sm:$0xff]
        %v2844 = vld [vmem:[%s8 + $0xb8] sm:$0xff]
        %v2845 = vld [vmem:[%s8 + $0xc0] sm:$0xf]
        %v2846 = vld [vmem:[%s8 + $0xc4] sm:$0xff]
        %v2847 = vld [vmem:[%s8 + $0xcc] sm:$0xff]
        %v2848 = vld [vmem:[%s8 + $0xd4] sm:$0xff]
        %v2849 = vld [vmem:[%s8 + $0xdc] sm:$0xf]
        %v2850 = vld [vmem:[%s8 + $0xe0] sm:$0xff]
        %v2851 = vld [vmem:[%s8 + $0xe8] sm:$0xff]
        %v2852 = vld [vmem:[%s8 + $0xf0] sm:$0xff]
        %v2853 = vld [vmem:[%s8 + $0xf8] sm:$0xf]
        %v2854 = vld [vmem:[%s8 + $0xfc] sm:$0xff]
        %v2855 = vld [vmem:[%s8 + $0x104] sm:$0xff]
        %v2856 = vld [vmem:[%s8 + $0x10c] sm:$0xff]
        %v2857 = vld [vmem:[%s8 + $0x114] sm:$0xf]
        %v2858 = vld [vmem:[%s8 + $0x118] sm:$0xff]
        %v2859 = vld [vmem:[%s8 + $0x120] sm:$0xff]
        %v2860 = vld [vmem:[%s8 + $0x128] sm:$0xff]
        %v2861 = vld [vmem:[%s8 + $0x130] sm:$0xf]
        %v2862 = vld [vmem:[%s8 + $0x134] sm:$0xff]
        %v2863 = vld [vmem:[%s8 + $0x13c] sm:$0xff]
        %v2864 = vld [vmem:[%s8 + $0x144] sm:$0xff]
        %v2865 = vld [vmem:[%s8 + $0x14c] sm:$0xf]
        %v2866 = vld [vmem:[%s8 + $0x150] sm:$0xff]
        %v2867 = vld [vmem:[%s8 + $0x158] sm:$0xff]
        %v2868 = vld [vmem:[%s8 + $0x160] sm:$0xff]
        %v2869 = vld [vmem:[%s8 + $0x168] sm:$0xf]
        %v2870 = vld [vmem:[%s8 + $0x16c] sm:$0xff]
        %v2871 = vld [vmem:[%s8 + $0x174] sm:$0xff]
        %v2872 = vld [vmem:[%s8 + $0x17c] sm:$0xff]
        %v2873 = vld [vmem:[%s8 + $0x184] sm:$0xf]
        %v2874 = vld [vmem:[%s8 + $0x188] sm:$0xff]
        %v2875 = vld [vmem:[%s8 + $0x190] sm:$0xff]
        %v2876 = vld [vmem:[%s8 + $0x198] sm:$0xff]
        %v2877 = vld [vmem:[%s8 + $0x1a0] sm:$0xf]
        %v2878 = vld [vmem:[%s8 + $0x1a4] sm:$0xff]
        %v2879 = vld [vmem:[%s8 + $0x1ac] sm:$0xff]
        %v2880 = vld [vmem:[%s8 + $0x1b4] sm:$0xff]
        %v2881 = vld [vmem:[%s8 + $0x1bc] sm:$0xf]
        %v2882 = vld [vmem:[%s8 + $0x1c0] sm:$0xff]
        %v2883 = vld [vmem:[%s8 + $0x1c8] sm:$0xff]
        %v2884 = vld [vmem:[%s8 + $0x1d0] sm:$0xff]
        %v2885 = vld [vmem:[%s8 + $0x1d8] sm:$0xf]
        %v2886 = vld [vmem:[%s8 + $0x1dc] sm:$0xff]
        %v2887 = vld [vmem:[%s8 + $0x1e4] sm:$0xff]
        %v2888 = vld [vmem:[%s8 + $0x1ec] sm:$0xff]
        %v2889 = vld [vmem:[%s8 + $0x1f4] sm:$0xf]
        %v2890 = vld [vmem:[%s8 + $0x1f8] sm:$0xff]
        %v2891 = vld [vmem:[%s8 + $0x200] sm:$0xff]
        %v2892 = vld [vmem:[%s8 + $0x208] sm:$0xff]
        %v2893 = vld [vmem:[%s8 + $0x210] sm:$0xf]
        %v2894 = vld [vmem:[%s8 + $0x214] sm:$0xff]
        %v2895 = vld [vmem:[%s8 + $0x21c] sm:$0xff]
        %v2896 = vld [vmem:[%s8 + $0x224] sm:$0xff]
        %v2897 = vld [vmem:[%s8 + $0x22c] sm:$0xf]
        %v2898 = vld [vmem:[%s8 + $0x230] sm:$0xff]
        %v2899 = vld [vmem:[%s8 + $0x238] sm:$0xff]
        %v2900 = vld [vmem:[%s8 + $0x240] sm:$0xff]
        %v2901 = vld [vmem:[%s8 + $0x248] sm:$0xf]
        %v2902 = vld [vmem:[%s8 + $0x24c] sm:$0xff]
        %v2903 = vld [vmem:[%s8 + $0x254] sm:$0xff]
        %v2904 = vld [vmem:[%s8 + $0x25c] sm:$0xff]
        %v2905 = vld [vmem:[%s8 + $0x264] sm:$0xf]
        %v2906 = vld [vmem:[%s8 + $0x268] sm:$0xff]
        %v2907 = vld [vmem:[%s8 + $0x270] sm:$0xff]
        %v2908 = vld [vmem:[%s8 + $0x278] sm:$0xff]
        %v2909 = vld [vmem:[%s8 + $0x280] sm:$0xf]
        %v2910 = vld [vmem:[%s8 + $0x284] sm:$0xff]
        %v2911 = vld [vmem:[%s8 + $0x28c] sm:$0xff]
        %v2912 = vld [vmem:[%s8 + $0x294] sm:$0xff]
        %v2913 = vld [vmem:[%s8 + $0x29c] sm:$0xf]
        %v2914 = vld [vmem:[%s8 + $0x2a0] sm:$0xff]
        %v2915 = vld [vmem:[%s8 + $0x2a8] sm:$0xff]
        %v2916 = vld [vmem:[%s8 + $0x2b0] sm:$0xff]
        %v2917 = vld [vmem:[%s8 + $0x2b8] sm:$0xf]
        %v2918 = vld [vmem:[%s8 + $0x2bc] sm:$0xff]
        %v2919 = vld [vmem:[%s8 + $0x2c4] sm:$0xff]
        %v2920 = vld [vmem:[%s8 + $0x2cc] sm:$0xff]
        %v2921 = vld [vmem:[%s8 + $0x2d4] sm:$0xf]
        %v2922 = vld [vmem:[%s8 + $0x2d8] sm:$0xff]
        %v2923 = vld [vmem:[%s8 + $0x2e0] sm:$0xff]
        %v2924 = vld [vmem:[%s8 + $0x2e8] sm:$0xff]
        %v2925 = vld [vmem:[%s8 + $0x2f0] sm:$0xf]
        %v2926 = vld [vmem:[%s8 + $0x2f4] sm:$0xff]
        %v2927 = vld [vmem:[%s8 + $0x2fc] sm:$0xff]
        %v2928 = vld [vmem:[%s8 + $0x304] sm:$0xff]
        %v2929 = vld [vmem:[%s8 + $0x30c] sm:$0xf]
        %v2930 = vld [vmem:[%s8 + $0x310] sm:$0xff]
        %v2931 = vld [vmem:[%s8 + $0x318] sm:$0xff]
        %v2932 = vld [vmem:[%s8 + $0x320] sm:$0xff]
        %v2933 = vld [vmem:[%s8 + $0x328] sm:$0xf]
        %v2934 = vld [vmem:[%s8 + $0x32c] sm:$0xff]
        %v2935 = vld [vmem:[%s8 + $0x334] sm:$0xff]
        %v2936 = vld [vmem:[%s8 + $0x33c] sm:$0xff]
        %v2937 = vld [vmem:[%s8 + $0x344] sm:$0xf]
        %v2938 = vld [vmem:[%s8 + $0x348] sm:$0xff]
        %v2939 = vld [vmem:[%s8 + $0x350] sm:$0xff]
        %v2940 = vld [vmem:[%s8 + $0x358] sm:$0xff]
        %v2941 = vld [vmem:[%s8 + $0x360] sm:$0xf]
        %v2942 = vld [vmem:[%s8 + $0x364] sm:$0xff]
        %v2943 = vld [vmem:[%s8 + $0x36c] sm:$0xff]
        %v2944 = vld [vmem:[%s8 + $0x374] sm:$0xff]
        %v2945 = vld [vmem:[%s8 + $0x37c] sm:$0xf]
        %v2946 = vld [vmem:[%s8 + $0x380] sm:$0xff]
        %v2947 = vld [vmem:[%s8 + $0x388] sm:$0xff]
        %v2948 = vld [vmem:[%s8 + $0x390] sm:$0xff]
        %v2949 = vld [vmem:[%s8 + $0x398] sm:$0xf]
        %v2950 = vld [vmem:[%s8 + $0x39c] sm:$0xff]
        %v2951 = vld [vmem:[%s8 + $0x3a4] sm:$0xff]
        %v2952 = vld [vmem:[%s8 + $0x3ac] sm:$0xff]
        %v2953 = vld [vmem:[%s8 + $0x3b4] sm:$0xf]
        %v2954 = vld [vmem:[%s8 + $0x3b8] sm:$0xff]
        %v2955 = vld [vmem:[%s8 + $0x3c0] sm:$0xff]
        %v2956 = vld [vmem:[%s8 + $0x3c8] sm:$0xff]
        %v2957 = vld [vmem:[%s8 + $0x3d0] sm:$0xf]
        %v2958 = vld [vmem:[%s8 + $0x3d4] sm:$0xff]
        %v2959 = vld [vmem:[%s8 + $0x3dc] sm:$0xff]
        %v2960 = vld [vmem:[%s8 + $0x3e4] sm:$0xff]
        %v2961 = vld [vmem:[%s8 + $0x3ec] sm:$0xf]
        %v2962 = vld [vmem:[%s8 + $0x3f0] sm:$0xff]
        %v2963 = vld [vmem:[%s8 + $0x3f8] sm:$0xff]
        %v2964 = vld [vmem:[%s8 + $0x400] sm:$0xff]
        %v2965 = vld [vmem:[%s8 + $0x408] sm:$0xf]
        %v2966 = vld [vmem:[%s8 + $0x40c] sm:$0xff]
        %v2967 = vld [vmem:[%s8 + $0x414] sm:$0xff]
        %v2968 = vld [vmem:[%s8 + $0x41c] sm:$0xff]
        %v2969 = vld [vmem:[%s8 + $0x424] sm:$0xf]
        %v2970 = vld [vmem:[%s8 + $0x428] sm:$0xff]
        %v2971 = vld [vmem:[%s8 + $0x430] sm:$0xff]
        %v2972 = vld [vmem:[%s8 + $0x438] sm:$0xff]
        %v2973 = vld [vmem:[%s8 + $0x440] sm:$0xf]
        %v2974 = vld [vmem:[%s8 + $0x444] sm:$0xff]
        %v2975 = vld [vmem:[%s8 + $0x44c] sm:$0xff]
        %v2976 = vld [vmem:[%s8 + $0x454] sm:$0xff]
        %v2977 = vld [vmem:[%s8 + $0x45c] sm:$0xf]
        %v2978 = vld [vmem:[%s8 + $0x460] sm:$0xff]
        %v2979 = vld [vmem:[%s8 + $0x468] sm:$0xff]
        %v2980 = vld [vmem:[%s8 + $0x470] sm:$0xff]
        %v2981 = vld [vmem:[%s8 + $0x478] sm:$0xf]
        %v2982 = vld [vmem:[%s8 + $0x47c] sm:$0xff]
        %v2983 = vld [vmem:[%s8 + $0x484] sm:$0xff]
        %v2984 = vld [vmem:[%s8 + $0x48c] sm:$0xff]
        %v2985 = vld [vmem:[%s8 + $0x494] sm:$0xf]
        %v2986 = vld [vmem:[%s8 + $0x498] sm:$0xff]
        %v2987 = vld [vmem:[%s8 + $0x4a0] sm:$0xff]
        %v2988 = vld [vmem:[%s8 + $0x4a8] sm:$0xff]
        %v2989 = vld [vmem:[%s8 + $0x4b0] sm:$0xf]
        %v2990 = vld [vmem:[%s8 + $0x4b4] sm:$0xff]
        %v2991 = vld [vmem:[%s8 + $0x4bc] sm:$0xff]
        %v2992 = vld [vmem:[%s8 + $0x4c4] sm:$0xff]
        %v2993 = vld [vmem:[%s8 + $0x4cc] sm:$0xf]
        %v2994 = vld [vmem:[%s8 + $0x4d0] sm:$0xff]
        %v2995 = vld [vmem:[%s8 + $0x4d8] sm:$0xff]
        %v2996 = vld [vmem:[%s8 + $0x4e0] sm:$0xff]
        %v2997 = vld [vmem:[%s8 + $0x4e8] sm:$0xf]
        %v2998 = vld [vmem:[%s8 + $0x4ec] sm:$0xff]
        %v2999 = vld [vmem:[%s8 + $0x4f4] sm:$0xff]
        %v3000 = vld [vmem:[%s8 + $0x4fc] sm:$0xff]
        %v3001 = vld [vmem:[%s8 + $0x504] sm:$0xf]
        %v3002 = vld [vmem:[%s8 + $0x508] sm:$0xff]
        %v3003 = vld [vmem:[%s8 + $0x510] sm:$0xff]
        %v3004 = vld [vmem:[%s8 + $0x518] sm:$0xff]
        %v3005 = vld [vmem:[%s8 + $0x520] sm:$0xf]
        %v3006 = vld [vmem:[%s8 + $0x524] sm:$0xff]
        %v3007 = vld [vmem:[%s8 + $0x52c] sm:$0xff]
        %v3008 = vld [vmem:[%s8 + $0x534] sm:$0xff]
        %v3009 = vld [vmem:[%s8 + $0x53c] sm:$0xf]
        %v3010 = vld [vmem:[%s8 + $0x540] sm:$0xff]
        %v3011 = vld [vmem:[%s8 + $0x548] sm:$0xff]
        %v3012 = vld [vmem:[%s8 + $0x550] sm:$0xff]
        %v3013 = vld [vmem:[%s8 + $0x558] sm:$0xf]
        %v3014 = vld [vmem:[%s8 + $0x55c] sm:$0xff]
        %v3015 = vld [vmem:[%s8 + $0x564] sm:$0xff]
        %v3016 = vld [vmem:[%s8 + $0x56c] sm:$0xff]
        %v3017 = vld [vmem:[%s8 + $0x574] sm:$0xf]
        %v3018 = vld [vmem:[%s9] sm:$0xff]
        %v3020 = vlaneseq
        %v3021 = vshrl.u32 %v3020, 7
        %v3022 = vsub.s32 0, %v3021
        %v3023 = vrot.slane %v3018, %v3022
        %v3024 = vlaneseq
        %v3025 = vshrl.u32 %v3024, 7
        %v3026 = vsub.s32 1, %v3025
        %v3027 = vrot.slane %v3018, %v3026
        %v3028 = vlaneseq
        %v3029 = vshrl.u32 %v3028, 7
        %v3030 = vsub.s32 2, %v3029
        %v3031 = vrot.slane %v3018, %v3030
        %v3032 = vlaneseq
        %v3033 = vshrl.u32 %v3032, 7
        %v3034 = vsub.s32 3, %v3033
        %v3035 = vrot.slane %v3018, %v3034
        %v3036 = vlaneseq
        %v3037 = vshrl.u32 %v3036, 7
        %v3038 = vsub.s32 4, %v3037
        %v3039 = vrot.slane %v3018, %v3038
        %v3040 = vlaneseq
        %v3041 = vshrl.u32 %v3040, 7
        %v3042 = vsub.s32 5, %v3041
        %v3043 = vrot.slane %v3018, %v3042
        %v3044 = vlaneseq
        %v3045 = vshrl.u32 %v3044, 7
        %v3046 = vsub.s32 6, %v3045
        %v3047 = vrot.slane %v3018, %v3046
        %v3255 = vunpack.c.l.b16 %v2818
        %v3256 = vunpack.c.h.b16 %v2818
        %v3257 = vunpack.c.l.b16 %v2819
        %v3258 = vunpack.c.h.b16 %v2819
        %v3259 = vunpack.c.l.b16 %v2820
        %v3260 = vunpack.c.h.b16 %v2820
        %v3261 = vunpack.c.l.b16 %v2821
        %v3262 = vunpack.c.l.b16 %v2822
        %v3263 = vunpack.c.h.b16 %v2822
        %v3264 = vunpack.c.l.b16 %v2823
        %v3265 = vunpack.c.h.b16 %v2823
        %v3266 = vunpack.c.l.b16 %v2824
        %v3267 = vunpack.c.h.b16 %v2824
        %v3268 = vunpack.c.l.b16 %v2825
        %v3269 = vunpack.c.l.b16 %v2826
        %v3270 = vunpack.c.h.b16 %v2826
        %v3271 = vunpack.c.l.b16 %v2827
        %v3272 = vunpack.c.h.b16 %v2827
        %v3273 = vunpack.c.l.b16 %v2828
        %v3274 = vunpack.c.h.b16 %v2828
        %v3275 = vunpack.c.l.b16 %v2829
        %v3276 = vunpack.c.l.b16 %v2830
        %v3277 = vunpack.c.h.b16 %v2830
        %v3278 = vunpack.c.l.b16 %v2831
        %v3279 = vunpack.c.h.b16 %v2831
        %v3280 = vunpack.c.l.b16 %v2832
        %v3281 = vunpack.c.h.b16 %v2832
        %v3282 = vunpack.c.l.b16 %v2833
        %v3283 = vunpack.c.l.b16 %v2834
        %v3284 = vunpack.c.h.b16 %v2834
        %v3285 = vunpack.c.l.b16 %v2835
        %v3286 = vunpack.c.h.b16 %v2835
        %v3287 = vunpack.c.l.b16 %v2836
        %v3288 = vunpack.c.h.b16 %v2836
        %v3289 = vunpack.c.l.b16 %v2837
        %v3290 = vunpack.c.l.b16 %v2838
        %v3291 = vunpack.c.h.b16 %v2838
        %v3292 = vunpack.c.l.b16 %v2839
        %v3293 = vunpack.c.h.b16 %v2839
        %v3294 = vunpack.c.l.b16 %v2840
        %v3295 = vunpack.c.h.b16 %v2840
        %v3296 = vunpack.c.l.b16 %v2841
        %v3297 = vunpack.c.l.b16 %v2842
        %v3298 = vunpack.c.h.b16 %v2842
        %v3299 = vunpack.c.l.b16 %v2843
        %v3300 = vunpack.c.h.b16 %v2843
        %v3301 = vunpack.c.l.b16 %v2844
        %v3302 = vunpack.c.h.b16 %v2844
        %v3303 = vunpack.c.l.b16 %v2845
        %v3304 = vunpack.c.l.b16 %v2846
        %v3305 = vunpack.c.h.b16 %v2846
        %v3306 = vunpack.c.l.b16 %v2847
        %v3307 = vunpack.c.h.b16 %v2847
        %v3308 = vunpack.c.l.b16 %v2848
        %v3309 = vunpack.c.h.b16 %v2848
        %v3310 = vunpack.c.l.b16 %v2849
        %v3311 = vunpack.c.l.b16 %v2850
        %v3312 = vunpack.c.h.b16 %v2850
        %v3313 = vunpack.c.l.b16 %v2851
        %v3314 = vunpack.c.h.b16 %v2851
        %v3315 = vunpack.c.l.b16 %v2852
        %v3316 = vunpack.c.h.b16 %v2852
        %v3317 = vunpack.c.l.b16 %v2853
        %v3318 = vunpack.c.l.b16 %v2854
        %v3319 = vunpack.c.h.b16 %v2854
        %v3320 = vunpack.c.l.b16 %v2855
        %v3321 = vunpack.c.h.b16 %v2855
        %v3322 = vunpack.c.l.b16 %v2856
        %v3323 = vunpack.c.h.b16 %v2856
        %v3324 = vunpack.c.l.b16 %v2857
        %v3325 = vunpack.c.l.b16 %v2858
        %v3326 = vunpack.c.h.b16 %v2858
        %v3327 = vunpack.c.l.b16 %v2859
        %v3328 = vunpack.c.h.b16 %v2859
        %v3329 = vunpack.c.l.b16 %v2860
        %v3330 = vunpack.c.h.b16 %v2860
        %v3331 = vunpack.c.l.b16 %v2861
        %v3332 = vunpack.c.l.b16 %v2862
        %v3333 = vunpack.c.h.b16 %v2862
        %v3334 = vunpack.c.l.b16 %v2863
        %v3335 = vunpack.c.h.b16 %v2863
        %v3336 = vunpack.c.l.b16 %v2864
        %v3337 = vunpack.c.h.b16 %v2864
        %v3338 = vunpack.c.l.b16 %v2865
        %v3339 = vunpack.c.l.b16 %v2866
        %v3340 = vunpack.c.h.b16 %v2866
        %v3341 = vunpack.c.l.b16 %v2867
        %v3342 = vunpack.c.h.b16 %v2867
        %v3343 = vunpack.c.l.b16 %v2868
        %v3344 = vunpack.c.h.b16 %v2868
        %v3345 = vunpack.c.l.b16 %v2869
        %v3346 = vunpack.c.l.b16 %v2870
        %v3347 = vunpack.c.h.b16 %v2870
        %v3348 = vunpack.c.l.b16 %v2871
        %v3349 = vunpack.c.h.b16 %v2871
        %v3350 = vunpack.c.l.b16 %v2872
        %v3351 = vunpack.c.h.b16 %v2872
        %v3352 = vunpack.c.l.b16 %v2873
        %v3353 = vunpack.c.l.b16 %v2874
        %v3354 = vunpack.c.h.b16 %v2874
        %v3355 = vunpack.c.l.b16 %v2875
        %v3356 = vunpack.c.h.b16 %v2875
        %v3357 = vunpack.c.l.b16 %v2876
        %v3358 = vunpack.c.h.b16 %v2876
        %v3359 = vunpack.c.l.b16 %v2877
        %v3360 = vunpack.c.l.b16 %v2878
        %v3361 = vunpack.c.h.b16 %v2878
        %v3362 = vunpack.c.l.b16 %v2879
        %v3363 = vunpack.c.h.b16 %v2879
        %v3364 = vunpack.c.l.b16 %v2880
        %v3365 = vunpack.c.h.b16 %v2880
        %v3366 = vunpack.c.l.b16 %v2881
        %v3367 = vunpack.c.l.b16 %v2882
        %v3368 = vunpack.c.h.b16 %v2882
        %v3369 = vunpack.c.l.b16 %v2883
        %v3370 = vunpack.c.h.b16 %v2883
        %v3371 = vunpack.c.l.b16 %v2884
        %v3372 = vunpack.c.h.b16 %v2884
        %v3373 = vunpack.c.l.b16 %v2885
        %v3374 = vunpack.c.l.b16 %v2886
        %v3375 = vunpack.c.h.b16 %v2886
        %v3376 = vunpack.c.l.b16 %v2887
        %v3377 = vunpack.c.h.b16 %v2887
        %v3378 = vunpack.c.l.b16 %v2888
        %v3379 = vunpack.c.h.b16 %v2888
        %v3380 = vunpack.c.l.b16 %v2889
        %v3381 = vunpack.c.l.b16 %v2890
        %v3382 = vunpack.c.h.b16 %v2890
        %v3383 = vunpack.c.l.b16 %v2891
        %v3384 = vunpack.c.h.b16 %v2891
        %v3385 = vunpack.c.l.b16 %v2892
        %v3386 = vunpack.c.h.b16 %v2892
        %v3387 = vunpack.c.l.b16 %v2893
        %v3388 = vunpack.c.l.b16 %v2894
        %v3389 = vunpack.c.h.b16 %v2894
        %v3390 = vunpack.c.l.b16 %v2895
        %v3391 = vunpack.c.h.b16 %v2895
        %v3392 = vunpack.c.l.b16 %v2896
        %v3393 = vunpack.c.h.b16 %v2896
        %v3394 = vunpack.c.l.b16 %v2897
        %v3395 = vunpack.c.l.b16 %v2898
        %v3396 = vunpack.c.h.b16 %v2898
        %v3397 = vunpack.c.l.b16 %v2899
        %v3398 = vunpack.c.h.b16 %v2899
        %v3399 = vunpack.c.l.b16 %v2900
        %v3400 = vunpack.c.h.b16 %v2900
        %v3401 = vunpack.c.l.b16 %v2901
        %v3402 = vunpack.c.l.b16 %v2902
        %v3403 = vunpack.c.h.b16 %v2902
        %v3404 = vunpack.c.l.b16 %v2903
        %v3405 = vunpack.c.h.b16 %v2903
        %v3406 = vunpack.c.l.b16 %v2904
        %v3407 = vunpack.c.h.b16 %v2904
        %v3408 = vunpack.c.l.b16 %v2905
        %v3409 = vunpack.c.l.b16 %v2906
        %v3410 = vunpack.c.h.b16 %v2906
        %v3411 = vunpack.c.l.b16 %v2907
        %v3412 = vunpack.c.h.b16 %v2907
        %v3413 = vunpack.c.l.b16 %v2908
        %v3414 = vunpack.c.h.b16 %v2908
        %v3415 = vunpack.c.l.b16 %v2909
        %v3416 = vunpack.c.l.b16 %v2910
        %v3417 = vunpack.c.h.b16 %v2910
        %v3418 = vunpack.c.l.b16 %v2911
        %v3419 = vunpack.c.h.b16 %v2911
        %v3420 = vunpack.c.l.b16 %v2912
        %v3421 = vunpack.c.h.b16 %v2912
        %v3422 = vunpack.c.l.b16 %v2913
        %v3423 = vunpack.c.l.b16 %v2914
        %v3424 = vunpack.c.h.b16 %v2914
        %v3425 = vunpack.c.l.b16 %v2915
        %v3426 = vunpack.c.h.b16 %v2915
        %v3427 = vunpack.c.l.b16 %v2916
        %v3428 = vunpack.c.h.b16 %v2916
        %v3429 = vunpack.c.l.b16 %v2917
        %v3430 = vunpack.c.l.b16 %v2918
        %v3431 = vunpack.c.h.b16 %v2918
        %v3432 = vunpack.c.l.b16 %v2919
        %v3433 = vunpack.c.h.b16 %v2919
        %v3434 = vunpack.c.l.b16 %v2920
        %v3435 = vunpack.c.h.b16 %v2920
        %v3436 = vunpack.c.l.b16 %v2921
        %v3437 = vunpack.c.l.b16 %v2922
        %v3438 = vunpack.c.h.b16 %v2922
        %v3439 = vunpack.c.l.b16 %v2923
        %v3440 = vunpack.c.h.b16 %v2923
        %v3441 = vunpack.c.l.b16 %v2924
        %v3442 = vunpack.c.h.b16 %v2924
        %v3443 = vunpack.c.l.b16 %v2925
        %v3444 = vunpack.c.l.b16 %v2926
        %v3445 = vunpack.c.h.b16 %v2926
        %v3446 = vunpack.c.l.b16 %v2927
        %v3447 = vunpack.c.h.b16 %v2927
        %v3448 = vunpack.c.l.b16 %v2928
        %v3449 = vunpack.c.h.b16 %v2928
        %v3450 = vunpack.c.l.b16 %v2929
        %v3451 = vunpack.c.l.b16 %v2930
        %v3452 = vunpack.c.h.b16 %v2930
        %v3453 = vunpack.c.l.b16 %v2931
        %v3454 = vunpack.c.h.b16 %v2931
        %v3455 = vunpack.c.l.b16 %v2932
        %v3456 = vunpack.c.h.b16 %v2932
        %v3457 = vunpack.c.l.b16 %v2933
        %v3458 = vunpack.c.l.b16 %v2934
        %v3459 = vunpack.c.h.b16 %v2934
        %v3460 = vunpack.c.l.b16 %v2935
        %v3461 = vunpack.c.h.b16 %v2935
        %v3462 = vunpack.c.l.b16 %v2936
        %v3463 = vunpack.c.h.b16 %v2936
        %v3464 = vunpack.c.l.b16 %v2937
        %v3465 = vunpack.c.l.b16 %v2938
        %v3466 = vunpack.c.h.b16 %v2938
        %v3467 = vunpack.c.l.b16 %v2939
        %v3468 = vunpack.c.h.b16 %v2939
        %v3469 = vunpack.c.l.b16 %v2940
        %v3470 = vunpack.c.h.b16 %v2940
        %v3471 = vunpack.c.l.b16 %v2941
        %v3472 = vunpack.c.l.b16 %v2942
        %v3473 = vunpack.c.h.b16 %v2942
        %v3474 = vunpack.c.l.b16 %v2943
        %v3475 = vunpack.c.h.b16 %v2943
        %v3476 = vunpack.c.l.b16 %v2944
        %v3477 = vunpack.c.h.b16 %v2944
        %v3478 = vunpack.c.l.b16 %v2945
        %v3479 = vunpack.c.l.b16 %v2946
        %v3480 = vunpack.c.h.b16 %v2946
        %v3481 = vunpack.c.l.b16 %v2947
        %v3482 = vunpack.c.h.b16 %v2947
        %v3483 = vunpack.c.l.b16 %v2948
        %v3484 = vunpack.c.h.b16 %v2948
        %v3485 = vunpack.c.l.b16 %v2949
        %v3486 = vunpack.c.l.b16 %v2950
        %v3487 = vunpack.c.h.b16 %v2950
        %v3488 = vunpack.c.l.b16 %v2951
        %v3489 = vunpack.c.h.b16 %v2951
        %v3490 = vunpack.c.l.b16 %v2952
        %v3491 = vunpack.c.h.b16 %v2952
        %v3492 = vunpack.c.l.b16 %v2953
        %v3493 = vunpack.c.l.b16 %v2954
        %v3494 = vunpack.c.h.b16 %v2954
        %v3495 = vunpack.c.l.b16 %v2955
        %v3496 = vunpack.c.h.b16 %v2955
        %v3497 = vunpack.c.l.b16 %v2956
        %v3498 = vunpack.c.h.b16 %v2956
        %v3499 = vunpack.c.l.b16 %v2957
        %v3500 = vunpack.c.l.b16 %v2958
        %v3501 = vunpack.c.h.b16 %v2958
        %v3502 = vunpack.c.l.b16 %v2959
        %v3503 = vunpack.c.h.b16 %v2959
        %v3504 = vunpack.c.l.b16 %v2960
        %v3505 = vunpack.c.h.b16 %v2960
        %v3506 = vunpack.c.l.b16 %v2961
        %v3507 = vunpack.c.l.b16 %v2962
        %v3508 = vunpack.c.h.b16 %v2962
        %v3509 = vunpack.c.l.b16 %v2963
        %v3510 = vunpack.c.h.b16 %v2963
        %v3511 = vunpack.c.l.b16 %v2964
        %v3512 = vunpack.c.h.b16 %v2964
        %v3513 = vunpack.c.l.b16 %v2965
        %v3514 = vunpack.c.l.b16 %v2966
        %v3515 = vunpack.c.h.b16 %v2966
        %v3516 = vunpack.c.l.b16 %v2967
        %v3517 = vunpack.c.h.b16 %v2967
        %v3518 = vunpack.c.l.b16 %v2968
        %v3519 = vunpack.c.h.b16 %v2968
        %v3520 = vunpack.c.l.b16 %v2969
        %v3521 = vunpack.c.l.b16 %v2970
        %v3522 = vunpack.c.h.b16 %v2970
        %v3523 = vunpack.c.l.b16 %v2971
        %v3524 = vunpack.c.h.b16 %v2971
        %v3525 = vunpack.c.l.b16 %v2972
        %v3526 = vunpack.c.h.b16 %v2972
        %v3527 = vunpack.c.l.b16 %v2973
        %v3528 = vunpack.c.l.b16 %v2974
        %v3529 = vunpack.c.h.b16 %v2974
        %v3530 = vunpack.c.l.b16 %v2975
        %v3531 = vunpack.c.h.b16 %v2975
        %v3532 = vunpack.c.l.b16 %v2976
        %v3533 = vunpack.c.h.b16 %v2976
        %v3534 = vunpack.c.l.b16 %v2977
        %v3535 = vunpack.c.l.b16 %v2978
        %v3536 = vunpack.c.h.b16 %v2978
        %v3537 = vunpack.c.l.b16 %v2979
        %v3538 = vunpack.c.h.b16 %v2979
        %v3539 = vunpack.c.l.b16 %v2980
        %v3540 = vunpack.c.h.b16 %v2980
        %v3541 = vunpack.c.l.b16 %v2981
        %v3542 = vunpack.c.l.b16 %v2982
        %v3543 = vunpack.c.h.b16 %v2982
        %v3544 = vunpack.c.l.b16 %v2983
        %v3545 = vunpack.c.h.b16 %v2983
        %v3546 = vunpack.c.l.b16 %v2984
        %v3547 = vunpack.c.h.b16 %v2984
        %v3548 = vunpack.c.l.b16 %v2985
        %v3549 = vunpack.c.l.b16 %v2986
        %v3550 = vunpack.c.h.b16 %v2986
        %v3551 = vunpack.c.l.b16 %v2987
        %v3552 = vunpack.c.h.b16 %v2987
        %v3553 = vunpack.c.l.b16 %v2988
        %v3554 = vunpack.c.h.b16 %v2988
        %v3555 = vunpack.c.l.b16 %v2989
        %v3556 = vunpack.c.l.b16 %v2990
        %v3557 = vunpack.c.h.b16 %v2990
        %v3558 = vunpack.c.l.b16 %v2991
        %v3559 = vunpack.c.h.b16 %v2991
        %v3560 = vunpack.c.l.b16 %v2992
        %v3561 = vunpack.c.h.b16 %v2992
        %v3562 = vunpack.c.l.b16 %v2993
        %v3563 = vunpack.c.l.b16 %v2994
        %v3564 = vunpack.c.h.b16 %v2994
        %v3565 = vunpack.c.l.b16 %v2995
        %v3566 = vunpack.c.h.b16 %v2995
        %v3567 = vunpack.c.l.b16 %v2996
        %v3568 = vunpack.c.h.b16 %v2996
        %v3569 = vunpack.c.l.b16 %v2997
        %v3570 = vunpack.c.l.b16 %v2998
        %v3571 = vunpack.c.h.b16 %v2998
        %v3572 = vunpack.c.l.b16 %v2999
        %v3573 = vunpack.c.h.b16 %v2999
        %v3574 = vunpack.c.l.b16 %v3000
        %v3575 = vunpack.c.h.b16 %v3000
        %v3576 = vunpack.c.l.b16 %v3001
        %v3577 = vunpack.c.l.b16 %v3002
        %v3578 = vunpack.c.h.b16 %v3002
        %v3579 = vunpack.c.l.b16 %v3003
        %v3580 = vunpack.c.h.b16 %v3003
        %v3581 = vunpack.c.l.b16 %v3004
        %v3582 = vunpack.c.h.b16 %v3004
        %v3583 = vunpack.c.l.b16 %v3005
        %v3584 = vunpack.c.l.b16 %v3006
        %v3585 = vunpack.c.h.b16 %v3006
        %v3586 = vunpack.c.l.b16 %v3007
        %v3587 = vunpack.c.h.b16 %v3007
        %v3588 = vunpack.c.l.b16 %v3008
        %v3589 = vunpack.c.h.b16 %v3008
        %v3590 = vunpack.c.l.b16 %v3009
        %v3591 = vunpack.c.l.b16 %v3010
        %v3592 = vunpack.c.h.b16 %v3010
        %v3593 = vunpack.c.l.b16 %v3011
        %v3594 = vunpack.c.h.b16 %v3011
        %v3595 = vunpack.c.l.b16 %v3012
        %v3596 = vunpack.c.h.b16 %v3012
        %v3597 = vunpack.c.l.b16 %v3013
        %v3598 = vunpack.c.l.b16 %v3014
        %v3599 = vunpack.c.h.b16 %v3014
        %v3600 = vunpack.c.l.b16 %v3015
        %v3601 = vunpack.c.h.b16 %v3015
        %v3602 = vunpack.c.l.b16 %v3016
        %v3603 = vunpack.c.h.b16 %v3016
        %v3604 = vunpack.c.l.b16 %v3017
        %v3605 = vpack.c.b16 %v3262, %v3255
        %v3606 = vpack.c.b16 %v3263, %v3256
        %v3607 = vpack.c.b16 %v3264, %v3257
        %v3608 = vpack.c.b16 %v3265, %v3258
        %v3609 = vpack.c.b16 %v3266, %v3259
        %v3610 = vpack.c.b16 %v3267, %v3260
        %v3611 = vpack.c.b16 %v3268, %v3261
        %v3612 = vpack.c.b16 %v3276, %v3269
        %v3613 = vpack.c.b16 %v3277, %v3270
        %v3614 = vpack.c.b16 %v3278, %v3271
        %v3615 = vpack.c.b16 %v3279, %v3272
        %v3616 = vpack.c.b16 %v3280, %v3273
        %v3617 = vpack.c.b16 %v3281, %v3274
        %v3618 = vpack.c.b16 %v3282, %v3275
        %v3619 = vpack.c.b16 %v3290, %v3283
        %v3620 = vpack.c.b16 %v3291, %v3284
        %v3621 = vpack.c.b16 %v3292, %v3285
        %v3622 = vpack.c.b16 %v3293, %v3286
        %v3623 = vpack.c.b16 %v3294, %v3287
        %v3624 = vpack.c.b16 %v3295, %v3288
        %v3625 = vpack.c.b16 %v3296, %v3289
        %v3626 = vpack.c.b16 %v3304, %v3297
        %v3627 = vpack.c.b16 %v3305, %v3298
        %v3628 = vpack.c.b16 %v3306, %v3299
        %v3629 = vpack.c.b16 %v3307, %v3300
        %v3630 = vpack.c.b16 %v3308, %v3301
        %v3631 = vpack.c.b16 %v3309, %v3302
        %v3632 = vpack.c.b16 %v3310, %v3303
        %v3633 = vpack.c.b16 %v3318, %v3311
        %v3634 = vpack.c.b16 %v3319, %v3312
        %v3635 = vpack.c.b16 %v3320, %v3313
        %v3636 = vpack.c.b16 %v3321, %v3314
        %v3637 = vpack.c.b16 %v3322, %v3315
        %v3638 = vpack.c.b16 %v3323, %v3316
        %v3639 = vpack.c.b16 %v3324, %v3317
        %v3640 = vpack.c.b16 %v3332, %v3325
        %v3641 = vpack.c.b16 %v3333, %v3326
        %v3642 = vpack.c.b16 %v3334, %v3327
        %v3643 = vpack.c.b16 %v3335, %v3328
        %v3644 = vpack.c.b16 %v3336, %v3329
        %v3645 = vpack.c.b16 %v3337, %v3330
        %v3646 = vpack.c.b16 %v3338, %v3331
        %v3647 = vpack.c.b16 %v3346, %v3339
        %v3648 = vpack.c.b16 %v3347, %v3340
        %v3649 = vpack.c.b16 %v3348, %v3341
        %v3650 = vpack.c.b16 %v3349, %v3342
        %v3651 = vpack.c.b16 %v3350, %v3343
        %v3652 = vpack.c.b16 %v3351, %v3344
        %v3653 = vpack.c.b16 %v3352, %v3345
        %v3654 = vpack.c.b16 %v3360, %v3353
        %v3655 = vpack.c.b16 %v3361, %v3354
        %v3656 = vpack.c.b16 %v3362, %v3355
        %v3657 = vpack.c.b16 %v3363, %v3356
        %v3658 = vpack.c.b16 %v3364, %v3357
        %v3659 = vpack.c.b16 %v3365, %v3358
        %v3660 = vpack.c.b16 %v3366, %v3359
        %v3661 = vpack.c.b16 %v3374, %v3367
        %v3662 = vpack.c.b16 %v3375, %v3368
        %v3663 = vpack.c.b16 %v3376, %v3369
        %v3664 = vpack.c.b16 %v3377, %v3370
        %v3665 = vpack.c.b16 %v3378, %v3371
        %v3666 = vpack.c.b16 %v3379, %v3372
        %v3667 = vpack.c.b16 %v3380, %v3373
        %v3668 = vpack.c.b16 %v3388, %v3381
        %v3669 = vpack.c.b16 %v3389, %v3382
        %v3670 = vpack.c.b16 %v3390, %v3383
        %v3671 = vpack.c.b16 %v3391, %v3384
        %v3672 = vpack.c.b16 %v3392, %v3385
        %v3673 = vpack.c.b16 %v3393, %v3386
        %v3674 = vpack.c.b16 %v3394, %v3387
        %v3675 = vpack.c.b16 %v3402, %v3395
        %v3676 = vpack.c.b16 %v3403, %v3396
        %v3677 = vpack.c.b16 %v3404, %v3397
        %v3678 = vpack.c.b16 %v3405, %v3398
        %v3679 = vpack.c.b16 %v3406, %v3399
        %v3680 = vpack.c.b16 %v3407, %v3400
        %v3681 = vpack.c.b16 %v3408, %v3401
        %v3682 = vpack.c.b16 %v3416, %v3409
        %v3683 = vpack.c.b16 %v3417, %v3410
        %v3684 = vpack.c.b16 %v3418, %v3411
        %v3685 = vpack.c.b16 %v3419, %v3412
        %v3686 = vpack.c.b16 %v3420, %v3413
        %v3687 = vpack.c.b16 %v3421, %v3414
        %v3688 = vpack.c.b16 %v3422, %v3415
        %v3689 = vpack.c.b16 %v3430, %v3423
        %v3690 = vpack.c.b16 %v3431, %v3424
        %v3691 = vpack.c.b16 %v3432, %v3425
        %v3692 = vpack.c.b16 %v3433, %v3426
        %v3693 = vpack.c.b16 %v3434, %v3427
        %v3694 = vpack.c.b16 %v3435, %v3428
        %v3695 = vpack.c.b16 %v3436, %v3429
        %v3696 = vpack.c.b16 %v3444, %v3437
        %v3697 = vpack.c.b16 %v3445, %v3438
        %v3698 = vpack.c.b16 %v3446, %v3439
        %v3699 = vpack.c.b16 %v3447, %v3440
        %v3700 = vpack.c.b16 %v3448, %v3441
        %v3701 = vpack.c.b16 %v3449, %v3442
        %v3702 = vpack.c.b16 %v3450, %v3443
        %v3703 = vpack.c.b16 %v3458, %v3451
        %v3704 = vpack.c.b16 %v3459, %v3452
        %v3705 = vpack.c.b16 %v3460, %v3453
        %v3706 = vpack.c.b16 %v3461, %v3454
        %v3707 = vpack.c.b16 %v3462, %v3455
        %v3708 = vpack.c.b16 %v3463, %v3456
        %v3709 = vpack.c.b16 %v3464, %v3457
        %v3710 = vpack.c.b16 %v3472, %v3465
        %v3711 = vpack.c.b16 %v3473, %v3466
        %v3712 = vpack.c.b16 %v3474, %v3467
        %v3713 = vpack.c.b16 %v3475, %v3468
        %v3714 = vpack.c.b16 %v3476, %v3469
        %v3715 = vpack.c.b16 %v3477, %v3470
        %v3716 = vpack.c.b16 %v3478, %v3471
        %v3717 = vpack.c.b16 %v3486, %v3479
        %v3718 = vpack.c.b16 %v3487, %v3480
        %v3719 = vpack.c.b16 %v3488, %v3481
        %v3720 = vpack.c.b16 %v3489, %v3482
        %v3721 = vpack.c.b16 %v3490, %v3483
        %v3722 = vpack.c.b16 %v3491, %v3484
        %v3723 = vpack.c.b16 %v3492, %v3485
        %v3724 = vpack.c.b16 %v3500, %v3493
        %v3725 = vpack.c.b16 %v3501, %v3494
        %v3726 = vpack.c.b16 %v3502, %v3495
        %v3727 = vpack.c.b16 %v3503, %v3496
        %v3728 = vpack.c.b16 %v3504, %v3497
        %v3729 = vpack.c.b16 %v3505, %v3498
        %v3730 = vpack.c.b16 %v3506, %v3499
        %v3731 = vpack.c.b16 %v3514, %v3507
        %v3732 = vpack.c.b16 %v3515, %v3508
        %v3733 = vpack.c.b16 %v3516, %v3509
        %v3734 = vpack.c.b16 %v3517, %v3510
        %v3735 = vpack.c.b16 %v3518, %v3511
        %v3736 = vpack.c.b16 %v3519, %v3512
        %v3737 = vpack.c.b16 %v3520, %v3513
        %v3738 = vpack.c.b16 %v3528, %v3521
        %v3739 = vpack.c.b16 %v3529, %v3522
        %v3740 = vpack.c.b16 %v3530, %v3523
        %v3741 = vpack.c.b16 %v3531, %v3524
        %v3742 = vpack.c.b16 %v3532, %v3525
        %v3743 = vpack.c.b16 %v3533, %v3526
        %v3744 = vpack.c.b16 %v3534, %v3527
        %v3745 = vpack.c.b16 %v3542, %v3535
        %v3746 = vpack.c.b16 %v3543, %v3536
        %v3747 = vpack.c.b16 %v3544, %v3537
        %v3748 = vpack.c.b16 %v3545, %v3538
        %v3749 = vpack.c.b16 %v3546, %v3539
        %v3750 = vpack.c.b16 %v3547, %v3540
        %v3751 = vpack.c.b16 %v3548, %v3541
        %v3752 = vpack.c.b16 %v3556, %v3549
        %v3753 = vpack.c.b16 %v3557, %v3550
        %v3754 = vpack.c.b16 %v3558, %v3551
        %v3755 = vpack.c.b16 %v3559, %v3552
        %v3756 = vpack.c.b16 %v3560, %v3553
        %v3757 = vpack.c.b16 %v3561, %v3554
        %v3758 = vpack.c.b16 %v3562, %v3555
        %v3759 = vpack.c.b16 %v3570, %v3563
        %v3760 = vpack.c.b16 %v3571, %v3564
        %v3761 = vpack.c.b16 %v3572, %v3565
        %v3762 = vpack.c.b16 %v3573, %v3566
        %v3763 = vpack.c.b16 %v3574, %v3567
        %v3764 = vpack.c.b16 %v3575, %v3568
        %v3765 = vpack.c.b16 %v3576, %v3569
        %v3766 = vpack.c.b16 %v3584, %v3577
        %v3767 = vpack.c.b16 %v3585, %v3578
        %v3768 = vpack.c.b16 %v3586, %v3579
        %v3769 = vpack.c.b16 %v3587, %v3580
        %v3770 = vpack.c.b16 %v3588, %v3581
        %v3771 = vpack.c.b16 %v3589, %v3582
        %v3772 = vpack.c.b16 %v3590, %v3583
        %v3773 = vpack.c.b16 %v3598, %v3591
        %v3774 = vpack.c.b16 %v3599, %v3592
        %v3775 = vpack.c.b16 %v3600, %v3593
        %v3776 = vpack.c.b16 %v3601, %v3594
        %v3777 = vpack.c.b16 %v3602, %v3595
        %v3778 = vpack.c.b16 %v3603, %v3596
        %v3779 = vpack.c.b16 %v3604, %v3597
        %v3956 = vsel %vm2401, %v2817, 0
        %3958 = vmatprep.subr.bf16.mxu0 %v3606
        %3959 = vmatpush1.bf16.msra.mxu0 %v3605
        %3960 = vmatprep.subr.bf16.mxu0 %v3613
        %3961 = vmatpush1.bf16.msra.mxu0 %v3612
        %3962 = vmatprep.subr.bf16.mxu0 %v3620
        %3963 = vmatpush1.bf16.msra.mxu0 %v3619
        %3964 = vmatprep.subr.bf16.mxu0 %v3627
        %3965 = vmatpush1.bf16.msra.mxu0 %v3626
        %3966 = vmatprep.subr.bf16.mxu0 %v3634
        %3967 = vmatpush1.bf16.msra.mxu0 %v3633
        %3968 = vmatprep.subr.bf16.mxu0 %v3641
        %3969 = vmatpush1.bf16.msra.mxu0 %v3640
        %3970 = vmatprep.subr.bf16.mxu0 %v3648
        %3971 = vmatpush1.bf16.msra.mxu0 %v3647
        %3972 = vmatprep.subr.bf16.mxu0 %v3655
        %3973 = vmatpush1.bf16.msra.mxu0 %v3654
        %3974 = vmatprep.subr.bf16.mxu0 %v3662
        %3975 = vmatpush1.bf16.msra.mxu0 %v3661
        %3976 = vmatprep.subr.bf16.mxu0 %v3669
        %3977 = vmatpush1.bf16.msra.mxu0 %v3668
        %3978 = vmatprep.subr.bf16.mxu0 %v3676
        %3979 = vmatpush1.bf16.msra.mxu0 %v3675
        %3980 = vmatprep.subr.bf16.mxu0 %v3683
        %3981 = vmatpush1.bf16.msra.mxu0 %v3682
        %3982 = vmatprep.subr.bf16.mxu0 %v3690
        %3983 = vmatpush1.bf16.msra.mxu0 %v3689
        %3984 = vmatprep.subr.bf16.mxu0 %v3697
        %3985 = vmatpush1.bf16.msra.mxu0 %v3696
        %3986 = vmatprep.subr.bf16.mxu0 %v3704
        %3987 = vmatpush1.bf16.msra.mxu0 %v3703
        %3988 = vmatprep.subr.bf16.mxu0 %v3711
        %3989 = vmatpush1.bf16.msra.mxu0 %v3710
        %3990 = vmatprep.mubr.bf16.mxu0 %v2815
        %3991 = vmatmul.mubr.bf16.gmra.mrb[0].mxu0 %v2814
        %v3992 = vpop.f32.mrb[0].mxu0
        %v3993 = vadd.f32 %v3023, %v3992
        %v3994 = vpop.f32.mrb[0].mxu0
        %v3995 = vadd.f32 %v3027, %v3994
        %v3996 = vpop.f32.mrb[0].mxu0
        %v3997 = vadd.f32 %v3023, %v3996
        %v3998 = vpop.f32.mrb[0].mxu0
        %v3999 = vadd.f32 %v3027, %v3998
        %4000 = vdwg.mxu0
        %4001 = vmatprep.subr.bf16.mxu0 %v3718
        %4002 = vmatpush1.bf16.msra.mxu0 %v3717
        %4003 = vmatprep.subr.bf16.mxu0 %v3725
        %4004 = vmatpush1.bf16.msra.mxu0 %v3724
        %4005 = vmatprep.subr.bf16.mxu0 %v3732
        %4006 = vmatpush1.bf16.msra.mxu0 %v3731
        %4007 = vmatprep.subr.bf16.mxu0 %v3739
        %4008 = vmatpush1.bf16.msra.mxu0 %v3738
        %4009 = vmatprep.subr.bf16.mxu0 %v3746
        %4010 = vmatpush1.bf16.msra.mxu0 %v3745
        %4011 = vmatprep.subr.bf16.mxu0 %v3753
        %4012 = vmatpush1.bf16.msra.mxu0 %v3752
        %4013 = vmatprep.subr.bf16.mxu0 %v3760
        %4014 = vmatpush1.bf16.msra.mxu0 %v3759
        %4015 = vmatprep.subr.bf16.mxu0 %v3767
        %4016 = vmatpush1.bf16.msra.mxu0 %v3766
        %4017 = vmatprep.subr.bf16.mxu0 %v3774
        %4018 = vmatpush1.bf16.msra.mxu0 %v3773
        %4019 = vmatprep.subr.bf16.mxu0 0
        %4020 = vmatpush1.bf16.msra.mxu0 0
        %4021 = vmatprep.subr.bf16.mxu0 0
        %4022 = vmatpush1.bf16.msra.mxu0 0
        %4023 = vmatprep.subr.bf16.mxu0 0
        %4024 = vmatpush1.bf16.msra.mxu0 0
        %4025 = vmatprep.subr.bf16.mxu0 0
        %4026 = vmatpush1.bf16.msra.mxu0 0
        %4027 = vmatprep.subr.bf16.mxu0 0
        %4028 = vmatpush1.bf16.msra.mxu0 0
        %4029 = vmatprep.subr.bf16.mxu0 0
        %4030 = vmatpush1.bf16.msra.mxu0 0
        %4031 = vmatprep.subr.bf16.mxu0 0
        %4032 = vmatpush1.bf16.msra.mxu0 0
        %4033 = vmatprep.mubr.bf16.mxu0 %v3956
        %4034 = vmatmul.mubr.bf16.gmra.mrb[0].mxu0 %v2816
        %v4035 = vpop.f32.mrb[0].mxu0
        %v4036 = vadd.f32 %v3993, %v4035
        %v4037 = vpop.f32.mrb[0].mxu0
        %v4038 = vadd.f32 %v3995, %v4037
        %v4039 = vpop.f32.mrb[0].mxu0
        %v4040 = vadd.f32 %v3997, %v4039
        %v4041 = vpop.f32.mrb[0].mxu0
        %v4042 = vadd.f32 %v3999, %v4041
        %4043 = vdwg.mxu0
        %4044 = vmatprep.subr.bf16.mxu0 %v3608
        %4045 = vmatpush1.bf16.msra.mxu0 %v3607
        %4046 = vmatprep.subr.bf16.mxu0 %v3615
        %4047 = vmatpush1.bf16.msra.mxu0 %v3614
        %4048 = vmatprep.subr.bf16.mxu0 %v3622
        %4049 = vmatpush1.bf16.msra.mxu0 %v3621
        %4050 = vmatprep.subr.bf16.mxu0 %v3629
        %4051 = vmatpush1.bf16.msra.mxu0 %v3628
        %4052 = vmatprep.subr.bf16.mxu0 %v3636
        %4053 = vmatpush1.bf16.msra.mxu0 %v3635
        %4054 = vmatprep.subr.bf16.mxu0 %v3643
        %4055 = vmatpush1.bf16.msra.mxu0 %v3642
        %4056 = vmatprep.subr.bf16.mxu0 %v3650
        %4057 = vmatpush1.bf16.msra.mxu0 %v3649
        %4058 = vmatprep.subr.bf16.mxu0 %v3657
        %4059 = vmatpush1.bf16.msra.mxu0 %v3656
        %4060 = vmatprep.subr.bf16.mxu0 %v3664
        %4061 = vmatpush1.bf16.msra.mxu0 %v3663
        %4062 = vmatprep.subr.bf16.mxu0 %v3671
        %4063 = vmatpush1.bf16.msra.mxu0 %v3670
        %4064 = vmatprep.subr.bf16.mxu0 %v3678
        %4065 = vmatpush1.bf16.msra.mxu0 %v3677
        %4066 = vmatprep.subr.bf16.mxu0 %v3685
        %4067 = vmatpush1.bf16.msra.mxu0 %v3684
        %4068 = vmatprep.subr.bf16.mxu0 %v3692
        %4069 = vmatpush1.bf16.msra.mxu0 %v3691
        %4070 = vmatprep.subr.bf16.mxu0 %v3699
        %4071 = vmatpush1.bf16.msra.mxu0 %v3698
        %4072 = vmatprep.subr.bf16.mxu0 %v3706
        %4073 = vmatpush1.bf16.msra.mxu0 %v3705
        %4074 = vmatprep.subr.bf16.mxu0 %v3713
        %4075 = vmatpush1.bf16.msra.mxu0 %v3712
        %4076 = vmatprep.mubr.bf16.mxu0 %v2815
        %4077 = vmatmul.mubr.bf16.gmra.mrb[0].mxu0 %v2814
        %v4078 = vpop.f32.mrb[0].mxu0
        %v4079 = vadd.f32 %v3031, %v4078
        %v4080 = vpop.f32.mrb[0].mxu0
        %v4081 = vadd.f32 %v3035, %v4080
        %v4082 = vpop.f32.mrb[0].mxu0
        %v4083 = vadd.f32 %v3031, %v4082
        %v4084 = vpop.f32.mrb[0].mxu0
        %v4085 = vadd.f32 %v3035, %v4084
        %4086 = vdwg.mxu0
        %4087 = vmatprep.subr.bf16.mxu0 %v3720
        %4088 = vmatpush1.bf16.msra.mxu0 %v3719
        %4089 = vmatprep.subr.bf16.mxu0 %v3727
        %4090 = vmatpush1.bf16.msra.mxu0 %v3726
        %4091 = vmatprep.subr.bf16.mxu0 %v3734
        %4092 = vmatpush1.bf16.msra.mxu0 %v3733
        %4093 = vmatprep.subr.bf16.mxu0 %v3741
        %4094 = vmatpush1.bf16.msra.mxu0 %v3740
        %4095 = vmatprep.subr.bf16.mxu0 %v3748
        %4096 = vmatpush1.bf16.msra.mxu0 %v3747
        %4097 = vmatprep.subr.bf16.mxu0 %v3755
        %4098 = vmatpush1.bf16.msra.mxu0 %v3754
        %4099 = vmatprep.subr.bf16.mxu0 %v3762
        %4100 = vmatpush1.bf16.msra.mxu0 %v3761
        %4101 = vmatprep.subr.bf16.mxu0 %v3769
        %4102 = vmatpush1.bf16.msra.mxu0 %v3768
        %4103 = vmatprep.subr.bf16.mxu0 %v3776
        %4104 = vmatpush1.bf16.msra.mxu0 %v3775
        %4105 = vmatprep.subr.bf16.mxu0 0
        %4106 = vmatpush1.bf16.msra.mxu0 0
        %4107 = vmatprep.subr.bf16.mxu0 0
        %4108 = vmatpush1.bf16.msra.mxu0 0
        %4109 = vmatprep.subr.bf16.mxu0 0
        %4110 = vmatpush1.bf16.msra.mxu0 0
        %4111 = vmatprep.subr.bf16.mxu0 0
        %4112 = vmatpush1.bf16.msra.mxu0 0
        %4113 = vmatprep.subr.bf16.mxu0 0
        %4114 = vmatpush1.bf16.msra.mxu0 0
        %4115 = vmatprep.subr.bf16.mxu0 0
        %4116 = vmatpush1.bf16.msra.mxu0 0
        %4117 = vmatprep.subr.bf16.mxu0 0
        %4118 = vmatpush1.bf16.msra.mxu0 0
        %4119 = vmatprep.mubr.bf16.mxu0 %v3956
        %4120 = vmatmul.mubr.bf16.gmra.mrb[0].mxu0 %v2816
        %v4121 = vpop.f32.mrb[0].mxu0
        %v4122 = vadd.f32 %v4079, %v4121
        %v4123 = vpop.f32.mrb[0].mxu0
        %v4124 = vadd.f32 %v4081, %v4123
        %v4125 = vpop.f32.mrb[0].mxu0
        %v4126 = vadd.f32 %v4083, %v4125
        %v4127 = vpop.f32.mrb[0].mxu0
        %v4128 = vadd.f32 %v4085, %v4127
        %4129 = vdwg.mxu0
        %4130 = vmatprep.subr.bf16.mxu0 %v3610
        %4131 = vmatpush1.bf16.msra.mxu0 %v3609
        %4132 = vmatprep.subr.bf16.mxu0 %v3617
        %4133 = vmatpush1.bf16.msra.mxu0 %v3616
        %4134 = vmatprep.subr.bf16.mxu0 %v3624
        %4135 = vmatpush1.bf16.msra.mxu0 %v3623
        %4136 = vmatprep.subr.bf16.mxu0 %v3631
        %4137 = vmatpush1.bf16.msra.mxu0 %v3630
        %4138 = vmatprep.subr.bf16.mxu0 %v3638
        %4139 = vmatpush1.bf16.msra.mxu0 %v3637
        %4140 = vmatprep.subr.bf16.mxu0 %v3645
        %4141 = vmatpush1.bf16.msra.mxu0 %v3644
        %4142 = vmatprep.subr.bf16.mxu0 %v3652
        %4143 = vmatpush1.bf16.msra.mxu0 %v3651
        %4144 = vmatprep.subr.bf16.mxu0 %v3659
        %4145 = vmatpush1.bf16.msra.mxu0 %v3658
        %4146 = vmatprep.subr.bf16.mxu0 %v3666
        %4147 = vmatpush1.bf16.msra.mxu0 %v3665
        %4148 = vmatprep.subr.bf16.mxu0 %v3673
        %4149 = vmatpush1.bf16.msra.mxu0 %v3672
        %4150 = vmatprep.subr.bf16.mxu0 %v3680
        %4151 = vmatpush1.bf16.msra.mxu0 %v3679
        %4152 = vmatprep.subr.bf16.mxu0 %v3687
        %4153 = vmatpush1.bf16.msra.mxu0 %v3686
        %4154 = vmatprep.subr.bf16.mxu0 %v3694
        %4155 = vmatpush1.bf16.msra.mxu0 %v3693
        %4156 = vmatprep.subr.bf16.mxu0 %v3701
        %4157 = vmatpush1.bf16.msra.mxu0 %v3700
        %4158 = vmatprep.subr.bf16.mxu0 %v3708
        %4159 = vmatpush1.bf16.msra.mxu0 %v3707
        %4160 = vmatprep.subr.bf16.mxu0 %v3715
        %4161 = vmatpush1.bf16.msra.mxu0 %v3714
        %4162 = vmatprep.mubr.bf16.mxu0 %v2815
        %4163 = vmatmul.mubr.bf16.gmra.mrb[0].mxu0 %v2814
        %v4164 = vpop.f32.mrb[0].mxu0
        %v4165 = vadd.f32 %v3039, %v4164
        %v4166 = vpop.f32.mrb[0].mxu0
        %v4167 = vadd.f32 %v3043, %v4166
        %v4168 = vpop.f32.mrb[0].mxu0
        %v4169 = vadd.f32 %v3039, %v4168
        %v4170 = vpop.f32.mrb[0].mxu0
        %v4171 = vadd.f32 %v3043, %v4170
        %4172 = vdwg.mxu0
        %4173 = vmatprep.subr.bf16.mxu0 %v3722
        %4174 = vmatpush1.bf16.msra.mxu0 %v3721
        %4175 = vmatprep.subr.bf16.mxu0 %v3729
        %4176 = vmatpush1.bf16.msra.mxu0 %v3728
        %4177 = vmatprep.subr.bf16.mxu0 %v3736
        %4178 = vmatpush1.bf16.msra.mxu0 %v3735
        %4179 = vmatprep.subr.bf16.mxu0 %v3743
        %4180 = vmatpush1.bf16.msra.mxu0 %v3742
        %4181 = vmatprep.subr.bf16.mxu0 %v3750
        %4182 = vmatpush1.bf16.msra.mxu0 %v3749
        %4183 = vmatprep.subr.bf16.mxu0 %v3757
        %4184 = vmatpush1.bf16.msra.mxu0 %v3756
        %4185 = vmatprep.subr.bf16.mxu0 %v3764
        %4186 = vmatpush1.bf16.msra.mxu0 %v3763
        %4187 = vmatprep.subr.bf16.mxu0 %v3771
        %4188 = vmatpush1.bf16.msra.mxu0 %v3770
        %4189 = vmatprep.subr.bf16.mxu0 %v3778
        %4190 = vmatpush1.bf16.msra.mxu0 %v3777
        %4191 = vmatprep.subr.bf16.mxu0 0
        %4192 = vmatpush1.bf16.msra.mxu0 0
        %4193 = vmatprep.subr.bf16.mxu0 0
        %4194 = vmatpush1.bf16.msra.mxu0 0
        %4195 = vmatprep.subr.bf16.mxu0 0
        %4196 = vmatpush1.bf16.msra.mxu0 0
        %4197 = vmatprep.subr.bf16.mxu0 0
        %4198 = vmatpush1.bf16.msra.mxu0 0
        %4199 = vmatprep.subr.bf16.mxu0 0
        %4200 = vmatpush1.bf16.msra.mxu0 0
        %4201 = vmatprep.subr.bf16.mxu0 0
        %4202 = vmatpush1.bf16.msra.mxu0 0
        %4203 = vmatprep.subr.bf16.mxu0 0
        %4204 = vmatpush1.bf16.msra.mxu0 0
        %4205 = vmatprep.mubr.bf16.mxu0 %v3956
        %4206 = vmatmul.mubr.bf16.gmra.mrb[0].mxu0 %v2816
        %v4207 = vpop.f32.mrb[0].mxu0
        %v4208 = vadd.f32 %v4165, %v4207
        %v4209 = vpop.f32.mrb[0].mxu0
        %v4210 = vadd.f32 %v4167, %v4209
        %v4211 = vpop.f32.mrb[0].mxu0
        %v4212 = vadd.f32 %v4169, %v4211
        %v4213 = vpop.f32.mrb[0].mxu0
        %v4214 = vadd.f32 %v4171, %v4213
        %4215 = vdwg.mxu0
        %4216 = vmatprep.subr.bf16.mxu0 0
        %4217 = vmatpush1.bf16.msra.mxu0 %v3611
        %4218 = vmatprep.subr.bf16.mxu0 0
        %4219 = vmatpush1.bf16.msra.mxu0 %v3618
        %4220 = vmatprep.subr.bf16.mxu0 0
        %4221 = vmatpush1.bf16.msra.mxu0 %v3625
        %4222 = vmatprep.subr.bf16.mxu0 0
        %4223 = vmatpush1.bf16.msra.mxu0 %v3632
        %4224 = vmatprep.subr.bf16.mxu0 0
        %4225 = vmatpush1.bf16.msra.mxu0 %v3639
        %4226 = vmatprep.subr.bf16.mxu0 0
        %4227 = vmatpush1.bf16.msra.mxu0 %v3646
        %4228 = vmatprep.subr.bf16.mxu0 0
        %4229 = vmatpush1.bf16.msra.mxu0 %v3653
        %4230 = vmatprep.subr.bf16.mxu0 0
        %4231 = vmatpush1.bf16.msra.mxu0 %v3660
        %4232 = vmatprep.subr.bf16.mxu0 0
        %4233 = vmatpush1.bf16.msra.mxu0 %v3667
        %4234 = vmatprep.subr.bf16.mxu0 0
        %4235 = vmatpush1.bf16.msra.mxu0 %v3674
        %4236 = vmatprep.subr.bf16.mxu0 0
        %4237 = vmatpush1.bf16.msra.mxu0 %v3681
        %4238 = vmatprep.subr.bf16.mxu0 0
        %4239 = vmatpush1.bf16.msra.mxu0 %v3688
        %4240 = vmatprep.subr.bf16.mxu0 0
        %4241 = vmatpush1.bf16.msra.mxu0 %v3695
        %4242 = vmatprep.subr.bf16.mxu0 0
        %4243 = vmatpush1.bf16.msra.mxu0 %v3702
        %4244 = vmatprep.subr.bf16.mxu0 0
        %4245 = vmatpush1.bf16.msra.mxu0 %v3709
        %4246 = vmatprep.subr.bf16.mxu0 0
        %4247 = vmatpush1.bf16.msra.mxu0 %v3716
        %4248 = vmatprep.mubr.bf16.mxu0 %v2815
        %4249 = vmatmul.mubr.bf16.gmra.mrb[0].mxu0 %v2814
        %v4250 = vpop.f32.mrb[0].mxu0
        %v4251 = vadd.f32 %v3047, %v4250
        %v4252 = vpop.f32.mrb[0].mxu0
        %v4253 = vpop.f32.mrb[0].mxu0
        %v4254 = vadd.f32 %v3047, %v4253
        %v4255 = vpop.f32.mrb[0].mxu0
        %4256 = vdwg.mxu0
        %4257 = vmatprep.subr.bf16.mxu0 0
        %4258 = vmatpush1.bf16.msra.mxu0 %v3723
        %4259 = vmatprep.subr.bf16.mxu0 0
        %4260 = vmatpush1.bf16.msra.mxu0 %v3730
        %4261 = vmatprep.subr.bf16.mxu0 0
        %4262 = vmatpush1.bf16.msra.mxu0 %v3737
        %4263 = vmatprep.subr.bf16.mxu0 0
        %4264 = vmatpush1.bf16.msra.mxu0 %v3744
        %4265 = vmatprep.subr.bf16.mxu0 0
        %4266 = vmatpush1.bf16.msra.mxu0 %v3751
        %4267 = vmatprep.subr.bf16.mxu0 0
        %4268 = vmatpush1.bf16.msra.mxu0 %v3758
        %4269 = vmatprep.subr.bf16.mxu0 0
        %4270 = vmatpush1.bf16.msra.mxu0 %v3765
        %4271 = vmatprep.subr.bf16.mxu0 0
        %4272 = vmatpush1.bf16.msra.mxu0 %v3772
        %4273 = vmatprep.subr.bf16.mxu0 0
        %4274 = vmatpush1.bf16.msra.mxu0 %v3779
        %4275 = vmatprep.subr.bf16.mxu0 0
        %4276 = vmatpush1.bf16.msra.mxu0 0
        %4277 = vmatprep.subr.bf16.mxu0 0
        %4278 = vmatpush1.bf16.msra.mxu0 0
        %4279 = vmatprep.subr.bf16.mxu0 0
        %4280 = vmatpush1.bf16.msra.mxu0 0
        %4281 = vmatprep.subr.bf16.mxu0 0
        %4282 = vmatpush1.bf16.msra.mxu0 0
        %4283 = vmatprep.subr.bf16.mxu0 0
        %4284 = vmatpush1.bf16.msra.mxu0 0
        %4285 = vmatprep.subr.bf16.mxu0 0
        %4286 = vmatpush1.bf16.msra.mxu0 0
        %4287 = vmatprep.subr.bf16.mxu0 0
        %4288 = vmatpush1.bf16.msra.mxu0 0
        %4289 = vmatprep.mubr.bf16.mxu0 %v3956
        %4290 = vmatmul.mubr.bf16.gmra.mrb[0].mxu0 %v2816
        %v4291 = vpop.f32.mrb[0].mxu0
        %v4292 = vadd.f32 %v4251, %v4291
        %v4293 = vpop.f32.mrb[0].mxu0
        %v4294 = vpop.f32.mrb[0].mxu0
        %v4295 = vadd.f32 %v4254, %v4294
        %v4296 = vpop.f32.mrb[0].mxu0
        %4297 = vdwg.mxu0
        %v4298 = vmul.f32 %v4036, 0.5
        %v4299 = vmul.f32 %v4038, 0.5
        %v4300 = vmul.f32 %v4122, 0.5
        %v4301 = vmul.f32 %v4124, 0.5
        %v4302 = vmul.f32 %v4208, 0.5
        %v4303 = vmul.f32 %v4210, 0.5
        %v4304 = vmul.f32 %v4292, 0.5
        %v4305 = vmul.f32 %v4040, 0.5
        %v4306 = vmul.f32 %v4042, 0.5
        %v4307 = vmul.f32 %v4126, 0.5
        %v4308 = vmul.f32 %v4128, 0.5
        %v4309 = vmul.f32 %v4212, 0.5
        %v4310 = vmul.f32 %v4214, 0.5
        %v4311 = vmul.f32 %v4295, 0.5
        %v4312 = vtanh.pop %v4298
        %v4313 = vtanh.pop %v4299
        %v4314 = vtanh.pop %v4300
        %v4315 = vtanh.pop %v4301
        %v4316 = vtanh.pop %v4302
        %v4317 = vtanh.pop %v4303
        %v4318 = vtanh.pop %v4304
        %v4319 = vtanh.pop %v4305
        %v4320 = vtanh.pop %v4306
        %v4321 = vtanh.pop %v4307
        %v4322 = vtanh.pop %v4308
        %v4323 = vtanh.pop %v4309
        %v4324 = vtanh.pop %v4310
        %v4325 = vtanh.pop %v4311
        %v4326 = vmul.f32 %v4312, 0.5
        %v4327 = vmul.f32 %v4313, 0.5
        %v4328 = vmul.f32 %v4314, 0.5
        %v4329 = vmul.f32 %v4315, 0.5
        %v4330 = vmul.f32 %v4316, 0.5
        %v4331 = vmul.f32 %v4317, 0.5
        %v4332 = vmul.f32 %v4318, 0.5
        %v4333 = vmul.f32 %v4319, 0.5
        %v4334 = vmul.f32 %v4320, 0.5
        %v4335 = vmul.f32 %v4321, 0.5
        %v4336 = vmul.f32 %v4322, 0.5
        %v4337 = vmul.f32 %v4323, 0.5
        %v4338 = vmul.f32 %v4324, 0.5
        %v4339 = vmul.f32 %v4325, 0.5
        %v4340 = vadd.f32 %v4326, 0.5
        %v4341 = vadd.f32 %v4327, 0.5
        %v4342 = vadd.f32 %v4328, 0.5
        %v4343 = vadd.f32 %v4329, 0.5
        %v4344 = vadd.f32 %v4330, 0.5
        %v4345 = vadd.f32 %v4331, 0.5
        %v4346 = vadd.f32 %v4332, 0.5
        %v4347 = vadd.f32 %v4333, 0.5
        %v4348 = vadd.f32 %v4334, 0.5
        %v4349 = vadd.f32 %v4335, 0.5
        %v4350 = vadd.f32 %v4336, 0.5
        %v4351 = vadd.f32 %v4337, 0.5
        %v4352 = vadd.f32 %v4338, 0.5
        %v4353 = vadd.f32 %v4339, 0.5
        %v4354 = vpack.c.bf16 %v4347, %v4340
        %v4355 = vpack.c.bf16 %v4348, %v4341
        %v4356 = vpack.c.bf16 %v4349, %v4342
        %v4357 = vpack.c.bf16 %v4350, %v4343
        %v4358 = vpack.c.bf16 %v4351, %v4344
        %v4359 = vpack.c.bf16 %v4352, %v4345
        %v4360 = vpack.c.bf16 %v4353, %v4346
        %v4368 = vunpack.c.l.b16 %v4354
        %v4369 = vunpack.c.l.b16 %v4355
        %v4370 = vunpack.c.l.b16 %v4356
        %v4371 = vunpack.c.l.b16 %v4357
        %v4372 = vunpack.c.l.b16 %v4358
        %v4373 = vunpack.c.l.b16 %v4359
        %v4374 = vunpack.c.l.b16 %v4360
        %v4375 = vunpack.c.h.b16 %v4354
        %v4376 = vunpack.c.h.b16 %v4355
        %v4377 = vunpack.c.h.b16 %v4356
        %v4378 = vunpack.c.h.b16 %v4357
        %v4379 = vunpack.c.h.b16 %v4358
        %v4380 = vunpack.c.h.b16 %v4359
        %v4381 = vunpack.c.h.b16 %v4360
        %v4382 = vpack.c.b16 %v4369, %v4368
        %v4383 = vpack.c.b16 %v4371, %v4370
        %v4384 = vpack.c.b16 %v4373, %v4372
        %v4385 = vpack.c.b16 %v4374, %v4374
        %v4386 = vpack.c.b16 %v4376, %v4375
        %v4387 = vpack.c.b16 %v4378, %v4377
        %v4388 = vpack.c.b16 %v4380, %v4379
        %v4389 = vpack.c.b16 %v4381, %v4381
        %4398 = vst [vmem:[%s402] sm:$0xff] %v4382
        %4399 = vst [vmem:[%s402 + $0x8] sm:$0xff] %v4383
        %4400 = vst [vmem:[%s402 + $0x10] sm:$0xff] %v4384
        %4401 = vst [vmem:[%s402 + $0x18] sm:$0xf] %v4385
        %4402 = vst [vmem:[%s402 + $0x1c] sm:$0xff] %v4386
        %4403 = vst [vmem:[%s402 + $0x24] sm:$0xff] %v4387
        %4404 = vst [vmem:[%s402 + $0x2c] sm:$0xff] %v4388
        %4405 = vst [vmem:[%s402 + $0x34] sm:$0xf] %v4389
        %4406 = vst [vmem:[%s409] sm:$0xff] %v2481
        %4407 = vst [vmem:[%s409 + $0x8] sm:$0xff] %v2484
        %s4408 = sand.u32 %s257, 1
        %s4409 = scalar_lea.sflag [#allocation3], %s4408
        %s4410 = sand.u32 %s257, 1
        %s4411 = smul.addr %s4410, 56
        %s4412 = scalar_lea.vmem [#allocation2], %s4411
        %s4413 = sand.u32 %s283, 1
        %s4414 = scalar_lea.sflag [#allocation5], %s4413
        %s4415 = sand.u32 %s283, 1
        %s4416 = smul.addr %s4415, 16
        %s4417 = scalar_lea.vmem [#allocation4], %s4416
        // Predicated region
        $region61: #{tpu_custom_call.1} parent=59 // pred_check
          %p4418 = pneg %p267
        $region62: #{tpu_custom_call.1} parent=59 // pred_check_branch
          %4420 = sbr.rel (%p4418) target = $region64
        $region63: #{tpu_custom_call.1} parent=59 // pred_region
          %s4421 = smul.u32 2, %s29
          %s4423 = ssub.s32 896, 896
          %4424 = vsyncadd %s4409, %s4423
          %s4425 = smul.addr %s4421, 7
          %s4426 = smul.addr %s4425, 64
          %s4427 = scalar_lea.hbm %s10, %s4426
          %s4428 = sshll.u32 %s4412, 4
          %s4429 = int_to_ptr.vmem [resolvable:$true] %s4428
          %4434 = dma.vmem_to_hbm [thread:$0]  %s4429, 896, %s4427, %s4409, 448, 448, 28
        $region64: #{tpu_custom_call.1} parent=59 // pred_fallthru
          _
        // Predicated region
        $region65: #{tpu_custom_call.1} parent=59 // pred_check
          %p4435 = pneg %p293
        $region66: #{tpu_custom_call.1} parent=59 // pred_check_branch
          %4437 = sbr.rel (%p4435) target = $region68
        $region67: #{tpu_custom_call.1} parent=59 // pred_region
          %s4438 = smul.u32 2, %s29
          %s4440 = ssub.s32 256, 256
          %4441 = vsyncadd %s4414, %s4440
          %s4442 = smul.addr %s4438, 128
          %s4443 = scalar_lea.hbm %s11, %s4442
          %s4444 = sshll.u32 %s4417, 4
          %s4445 = int_to_ptr.vmem [resolvable:$true] %s4444
          %4450 = dma.vmem_to_hbm [thread:$0]  %s4445, 256, %s4443, %s4414, 128, 128, 8
        $region68: #{tpu_custom_call.1} parent=59 // pred_fallthru
          _
      $region60: #{tpu_custom_call.1} parent=5 // pred_fallthru
        _
      %p4451 = scmp.le.s32.totalorder 2, %s24
      // Predicated region
      $region69: #{tpu_custom_call.1} parent=5 // pred_check
        %p4452 = pneg %p4451
      $region70: #{tpu_custom_call.1} parent=5 // pred_check_branch
        %4454 = sbr.rel (%p4452) target = $region72
      $region71: #{tpu_custom_call.1} parent=5 // pred_region
        %s4455 = ssub.s32 %s24, 2
        // Predicated region
        $region73: #{tpu_custom_call.1} parent=71 // pred_check
          %p4456 = pneg %p273
        $region74: #{tpu_custom_call.1} parent=71 // pred_check_branch
          %4458 = sbr.rel (%p4456) target = $region76
        $region75: #{tpu_custom_call.1} parent=71 // pred_region
          %s4459 = sand.u32 %s258, 1
          %s4460 = scalar_lea.sflag [#allocation3], %s4459
          %s4461 = sand.u32 %s258, 1
          %s4462 = smul.addr %s4461, 56
          %s4463 = scalar_lea.vmem [#allocation2], %s4462
          %4464 = dma.done %s4460, 896
        $region76: #{tpu_custom_call.1} parent=71 // pred_fallthru
          _
        // Predicated region
        $region77: #{tpu_custom_call.1} parent=71 // pred_check
          %p4465 = pneg %p299
        $region78: #{tpu_custom_call.1} parent=71 // pred_check_branch
          %4467 = sbr.rel (%p4465) target = $region80
        $region79: #{tpu_custom_call.1} parent=71 // pred_region
          %s4468 = sand.u32 %s284, 1
          %s4469 = scalar_lea.sflag [#allocation5], %s4468
          %s4470 = sand.u32 %s284, 1
          %s4471 = smul.addr %s4470, 16
          %s4472 = scalar_lea.vmem [#allocation4], %s4471
          %4473 = dma.done %s4469, 256
        $region80: #{tpu_custom_call.1} parent=71 // pred_fallthru
          _
      $region72: #{tpu_custom_call.1} parent=5 // pred_fallthru
        _
    $region6: #{tpu_custom_call.1} parent=1 // loop_footer
      %s28 = sadd.s32 1, %s24
    $region7: #{tpu_custom_call.1} parent=1 // loop_footer_branch
      %23 = sbr.rel target = $region3
    $region8: #{tpu_custom_call.1} parent=1 // loop_exit
      _
    %4474 = vsyncpa [#allocation3], 1
    %s4475 = scalar_lea.sflag [#allocation3], 1
    %4476 = vsyncpa %s4475, 1
    %4477 = vsyncpa [#allocation5], 1
    %s4478 = scalar_lea.sflag [#allocation5], 1
    %4479 = vsyncpa %s4478, 1

</llo_original>
